<compile_context>
chip_gen: v5e
topology: v5e:2x2
jax: 0.10.0
libtpu: 0.0.40
codegen_flags: <defaults>
</compile_context>

<pallas_src>
import numpy as np
import jax
import jax.numpy as jnp
from jax.experimental import pallas as pl
from jax.experimental.pallas import tpu as pltpu


# ----------------------------- model config ---------------------------------
DIN = 3
DOUT = 4
DHIDDEN = 32
NLAYERS = 4
SKIP_IN = (4,)
BIAS = 0.5
SCALE = 1.0
INSIDE_OUTSIDE = False
SOFTPLUS_BETA = 100.0
SOFTPLUS_THRESHOLD = 20.0  # PyTorch Softplus default threshold (on beta*x)

# packed-slab layout constants
_HID = DHIDDEN - DIN          # 29 : skip-layer's "hidden" half width
_W_ROWS = 4 * DHIDDEN + 16    # 144: 4 hidden bands of 32 rows + two 8-row head bands
_W_COLS = DHIDDEN             # 32
_B_ROWS = 4 * DHIDDEN + 8     # 136
_ROW_L4H = 4 * DHIDDEN        # 128: head weights over hidden features
_ROW_L4X = 4 * DHIDDEN + 8    # 136: head weights over raw inputs


def _softplus100(x):
    """PyTorch nn.Softplus(beta=100): (1/beta)*log1p(exp(beta*x)), linear past threshold."""
    bx = SOFTPLUS_BETA * x
    safe = jnp.minimum(bx, SOFTPLUS_THRESHOLD)
    sp = jnp.log1p(jnp.exp(safe)) / SOFTPLUS_BETA
    return jnp.where(bx > SOFTPLUS_THRESHOLD, x, sp)


def _softplus_scaled(t):
    """Scaled-space softplus: input t = beta*z, output s = beta*softplus_beta(z).

    No beta multiplies in-kernel (beta is folded into the packed weights).
    exp overflow in the discarded branch yields inf (not NaN) and is dropped
    by the where, matching PyTorch's threshold semantics.
    """
    return jnp.where(t > SOFTPLUS_THRESHOLD, t, jnp.log1p(jnp.exp(t)))


# ----------------------------- parameter init --------------------------------
def init_params(key):
    """Geometric init matching SDFNetwork.__init__ (multires=0).

    Returns a list of (w, b) in PyTorch nn.Linear layout: w [out, in], b [out].
    """
    dims = [DIN] + [DHIDDEN] * NLAYERS + [DOUT]
    num_layers = len(dims)
    params = []
    for l in range(num_layers - 1):
        if (l + 1) in SKIP_IN:
            out_dim = dims[l + 1] - dims[0]
        else:
            out_dim = dims[l + 1]
        key, sub = jax.random.split(key)
        if l == num_layers - 2:
            mean = np.sqrt(np.pi) / np.sqrt(dims[l])
            if INSIDE_OUTSIDE:
                mean, b_val = -mean, BIAS
            else:
                b_val = -BIAS
            w = mean + 1e-4 * jax.random.normal(sub, (out_dim, dims[l]), jnp.float32)
            b = jnp.full((out_dim,), b_val, jnp.float32)
        else:
            std = np.sqrt(2.0) / np.sqrt(out_dim)
            w = std * jax.random.normal(sub, (out_dim, dims[l]), jnp.float32)
            b = jnp.zeros((out_dim,), jnp.float32)
        params.append((w.astype(jnp.float32), b.astype(jnp.float32)))
    return params


def pack_params(params, scale=SCALE, beta=SOFTPLUS_BETA):
    """Pack PyTorch-layout params into one weight slab + one bias slab.

    Folds (offline, so the kernel never does them):
      * input `* scale` into layer-0 weights and the skip head's input half,
      * the skip 1/sqrt(2) into both halves of the last layer's weights,
      * the output `first column / scale` into row 0 of the head weights/bias,
      * the softplus beta: every hidden layer produces t = beta*(W a + b) and
        forwards s = beta*softplus(z); since the next hidden layer both divides
        by beta (consuming s) and multiplies by beta (producing its own t), its
        W is unchanged and only its bias scales by beta.  The head's hidden
        half divides by beta once.
    """
    inv_s2 = np.float32(1.0 / np.sqrt(2.0))
    ws = [np.asarray(w, np.float32) for w, _ in params]
    bs = [np.asarray(b, np.float32) for _, b in params]

    W = np.zeros((_W_ROWS, _W_COLS), np.float32)
    B = np.zeros((_B_ROWS, 1), np.float32)

    # layer 0: [32, 3]; fold input scale and beta
    W[0:DHIDDEN, 0:DIN] = ws[0] * (scale * beta)
    B[0:DHIDDEN, 0] = bs[0] * beta

    # layers 1..3: W unchanged (beta/beta cancels), bias * beta.
    # layer 3 has only 29 output rows; pad rows stay zero.
    for l in range(1, 4):
        o, i = ws[l].shape
        W[DHIDDEN * l:DHIDDEN * l + o, 0:i] = ws[l]
        B[DHIDDEN * l:DHIDDEN * l + o, 0] = bs[l] * beta

    # layer 4 (skip + output head): split [4, 32] = [hidden 29 | inputs 3]
    w4, b4 = ws[4].copy(), bs[4].copy()
    w4h = w4[:, :_HID] * (inv_s2 / beta)      # consumes s3 = beta*a3
    w4x = w4[:, _HID:] * (inv_s2 * scale)     # consumes raw inputs (scale folded)
    w4h[0, :] *= np.float32(1.0 / scale)      # output column 0 / scale folded in
    w4x[0, :] *= np.float32(1.0 / scale)
    b4[0] *= np.float32(1.0 / scale)
    W[_ROW_L4H:_ROW_L4H + DOUT, 0:_HID] = w4h   # cols 29..31 zero -> pad rows of h ignored
    W[_ROW_L4X:_ROW_L4X + DOUT, 0:DIN] = w4x
    B[_ROW_L4H:_ROW_L4H + DOUT, 0] = b4
    return jnp.asarray(W), jnp.asarray(B)


# ----------------------------- Pallas kernel ---------------------------------
def _sdf_kernel(x_ref, w_ref, b_ref, out_ref):
    # x: [DIN, T] -- points on lanes, features on sublanes.
    x = x_ref[...]

    # layer 0 (input scale and beta folded into the packed weights)
    h = jnp.dot(w_ref[0:DHIDDEN, 0:DIN], x,
                preferred_element_type=jnp.float32) + b_ref[0:DHIDDEN, :]
    h = _softplus_scaled(h)

    # layers 1..3; layer 3's padded rows (29..31) are killed by zero columns
    # in the head weight band, so no masking is needed here.
    for l in range(1, 4):
        r = DHIDDEN * l
        h = jnp.dot(w_ref[r:r + DHIDDEN, :], h,
                    preferred_element_type=jnp.float32) + b_ref[r:r + DHIDDEN, :]
        h = _softplus_scaled(h)

    # layer 4: skip concat replaced by two matmuls; 1/sqrt(2), scale, 1/scale
    # and beta are already folded into the packed weights / bias.
    # TODO(synk): on v5e the two head matmuls could be merged into one by
    # overwriting sublane rows 29..31 of h with x (saves one MRF drain).
    out = (jnp.dot(w_ref[_ROW_L4H:_ROW_L4H + 8, :], h,
                   preferred_element_type=jnp.float32)
           + jnp.dot(w_ref[_ROW_L4X:_ROW_L4X + 8, 0:DIN], x,
                     preferred_element_type=jnp.float32)
           + b_ref[_ROW_L4H:_ROW_L4H + 8, :])
    # Only the DOUT real rows are stored (rows 4..7 are exact zeros): halves
    # HBM writeback vs an 8-row output slab.
    out_ref[...] = out[0:DOUT, :]


def _round_up(a, m):
    return ((a + m - 1) // m) * m


def _choose_tiling(n, max_tile=4096):
    """Large, N-aware point tiles: even number of balanced grid steps (feeds
    both v7x TensorCores), tile <= max_tile, padded tail < one tile."""
    n128 = _round_up(max(n, 1), 128)
    g = max(2, -(-n128 // max_tile))   # cdiv
    g += g % 2                          # even step count
    tile = _round_up(-(-n128 // g), 128)
    grid = -(-n128 // tile)
    n_pad = grid * tile
    return tile, grid, n_pad


def sdf_forward_t(x_t, packed_w, packed_b, *, max_tile=4096):
    """Kernel-native layout: x_t is [DIN, N], returns [DOUT, N]."""
    din, n = x_t.shape
    assert din == DIN

    tile_n, grid, n_pad = _choose_tiling(n, max_tile)
    if n_pad != n:
        x_t = jnp.pad(x_t, ((0, 0), (0, n_pad - n)))

    # The kernel is EUP-bound (2 transcendentals per hidden activation); hint
    # XLA's scheduler accordingly.
    cost = pl.CostEstimate(
        flops=2 * (DIN * DHIDDEN + 3 * DHIDDEN * DHIDDEN
                   + DHIDDEN * DOUT + DIN * DOUT) * n_pad,
        transcendentals=2 * NLAYERS * DHIDDEN * n_pad,
        bytes_accessed=(DIN + DOUT) * 4 * n_pad
                       + 4 * (packed_w.size + packed_b.size),
    )

    out_t = pl.pallas_call(
        _sdf_kernel,
        out_shape=jax.ShapeDtypeStruct((DOUT, n_pad), jnp.float32),
        grid=(grid,),
        in_specs=[
            pl.BlockSpec((DIN, tile_n), lambda i: (0, i)),
            pl.BlockSpec(packed_w.shape, lambda i: (0, 0)),  # resident weight slab
            pl.BlockSpec(packed_b.shape, lambda i: (0, 0)),  # resident bias slab
        ],
        out_specs=pl.BlockSpec((DOUT, tile_n), lambda i: (0, i)),
        compiler_params=pltpu.CompilerParams(
            dimension_semantics=("parallel",)),
        cost_estimate=cost,
    )(x_t, packed_w, packed_b)

    return out_t[:, :n]


def sdf_forward(x, packed_w, packed_b, *, max_tile=4096):
    """Module-compatible API: x [N, DIN] -> [N, DOUT].

    The two .T relayouts here are separate, un-hidden XLA HBM passes; callers
    that can produce/consume the transposed [3,N]/[4,N] layouts should use
    sdf_forward_t directly.
    """
    return sdf_forward_t(x.T, packed_w, packed_b, max_tile=max_tile).T


# ----------------------------- pure-JAX reference ----------------------------
def ref_forward(x, params):
    """Direct transcription of SDFNetwork.forward from PyTorch-layout params."""
    inputs = x * SCALE
    h = inputs
    num_layers = len(params) + 1
    for l, (w, b) in enumerate(params):
        if l in SKIP_IN:
            h = jnp.concatenate([h, inputs], axis=1) / np.sqrt(2.0)
        h = h @ w.T + b
        if l < num_layers - 2:
            h = _softplus100(h)
    return jnp.concatenate([h[:, :1] / SCALE, h[:, 1:]], axis=-1)


# TODO(synk): multires>0 positional embedder (get_embedder) and the autograd
# `gradient()` method are not part of this forward-path kernel (multires=0 here).

if __name__ == "__main__":
    key = jax.random.PRNGKey(0)
    key, pkey, xkey = jax.random.split(key, 3)

    params = init_params(pkey)
    packed_w, packed_b = pack_params(params)

    # 2000 points: exercises the N-aware tiling (2 balanced 1024-point tiles,
    # 48 padded lanes) while staying small.
    n = 2000
    x = jax.random.normal(xkey, (n, DIN), jnp.float32)

    out = sdf_forward(x, packed_w, packed_b)
    out = jax.block_until_ready(out)

    ref = ref_forward(x, params)
    np.testing.assert_allclose(np.asarray(out), np.asarray(ref), rtol=1e-4, atol=1e-4)

    print("KERNEL_OK")
</pallas_src>

<mosaic_0001>
module attributes {stable_mosaic.version = 11 : i64} {
  func.func @_sdf_kernel(%arg0: i32, %arg1: memref<3x1024xf32, #tpu.memory_space<vmem>>, %arg2: memref<144x32xf32, #tpu.memory_space<vmem>>, %arg3: memref<136x1xf32, #tpu.memory_space<vmem>>, %arg4: memref<4x1024xf32, #tpu.memory_space<vmem>>) attributes {dimension_semantics = [#tpu.dimension_semantics<parallel>], iteration_bounds = array<i64: 2>, scalar_prefetch = 0 : i64, scratch_operands = 0 : i64, tpu.core_type = #tpu.core_type<tc>, window_params = [{transform_indices = @transform_0, window_bounds = array<i64: 3, 1024>}, {pipeline_mode = #tpu.pipeline_mode<synchronous>, transform_indices = @transform_1, window_bounds = array<i64: 144, 32>}, {pipeline_mode = #tpu.pipeline_mode<synchronous>, transform_indices = @transform_2, window_bounds = array<i64: 136, 1>}, {transform_indices = @transform_3, window_bounds = array<i64: 4, 1024>}]} {
    %c0 = arith.constant 0 : index
    %c0_0 = arith.constant 0 : index
    %0 = vector.load %arg1[%c0, %c0_0] : memref<3x1024xf32, #tpu.memory_space<vmem>>, vector<3x1024xf32>
    %c0_1 = arith.constant 0 : index
    %c0_2 = arith.constant 0 : index
    %1 = vector.load %arg2[%c0_1, %c0_2] : memref<144x32xf32, #tpu.memory_space<vmem>>, vector<32x3xf32>
    %cst = arith.constant dense<0.000000e+00> : vector<32x1024xf32>
    %2 = tpu.matmul %1, %0, %cst {dimension_numbers = #tpu.dot_dimension_numbers<[1], [0], [0], [1], [0, 0, 1, 1], [], []>} : vector<32x3xf32>, vector<3x1024xf32>, vector<32x1024xf32> -> vector<32x1024xf32>
    %c0_3 = arith.constant 0 : index
    %c0_4 = arith.constant 0 : index
    %3 = vector.load %arg3[%c0_3, %c0_4] : memref<136x1xf32, #tpu.memory_space<vmem>>, vector<32x1xf32>
    %4 = vector.broadcast %3 : vector<32x1xf32> to vector<32x1024xf32>
    %5 = arith.addf %2, %4 : vector<32x1024xf32>
    %cst_5 = arith.constant 2.000000e+01 : f32
    %6 = vector.broadcast %cst_5 : f32 to vector<32x1024xf32>
    %7 = arith.cmpf ogt, %5, %6 : vector<32x1024xf32>
    %8 = math.exp %5 : vector<32x1024xf32>
    %9 = math.log1p %8 : vector<32x1024xf32>
    %10 = arith.select %7, %5, %9 : vector<32x1024xi1>, vector<32x1024xf32>
    %c32 = arith.constant 32 : index
    %c0_6 = arith.constant 0 : index
    %11 = vector.load %arg2[%c32, %c0_6] : memref<144x32xf32, #tpu.memory_space<vmem>>, vector<32x32xf32>
    %cst_7 = arith.constant dense<0.000000e+00> : vector<32x1024xf32>
    %12 = tpu.matmul %11, %10, %cst_7 {dimension_numbers = #tpu.dot_dimension_numbers<[1], [0], [0], [1], [0, 0, 1, 1], [], []>} : vector<32x32xf32>, vector<32x1024xf32>, vector<32x1024xf32> -> vector<32x1024xf32>
    %c32_8 = arith.constant 32 : index
    %c0_9 = arith.constant 0 : index
    %13 = vector.load %arg3[%c32_8, %c0_9] : memref<136x1xf32, #tpu.memory_space<vmem>>, vector<32x1xf32>
    %14 = vector.broadcast %13 : vector<32x1xf32> to vector<32x1024xf32>
    %15 = arith.addf %12, %14 : vector<32x1024xf32>
    %cst_10 = arith.constant 2.000000e+01 : f32
    %16 = vector.broadcast %cst_10 : f32 to vector<32x1024xf32>
    %17 = arith.cmpf ogt, %15, %16 : vector<32x1024xf32>
    %18 = math.exp %15 : vector<32x1024xf32>
    %19 = math.log1p %18 : vector<32x1024xf32>
    %20 = arith.select %17, %15, %19 : vector<32x1024xi1>, vector<32x1024xf32>
    %c64 = arith.constant 64 : index
    %c0_11 = arith.constant 0 : index
    %21 = vector.load %arg2[%c64, %c0_11] : memref<144x32xf32, #tpu.memory_space<vmem>>, vector<32x32xf32>
    %cst_12 = arith.constant dense<0.000000e+00> : vector<32x1024xf32>
    %22 = tpu.matmul %21, %20, %cst_12 {dimension_numbers = #tpu.dot_dimension_numbers<[1], [0], [0], [1], [0, 0, 1, 1], [], []>} : vector<32x32xf32>, vector<32x1024xf32>, vector<32x1024xf32> -> vector<32x1024xf32>
    %c64_13 = arith.constant 64 : index
    %c0_14 = arith.constant 0 : index
    %23 = vector.load %arg3[%c64_13, %c0_14] : memref<136x1xf32, #tpu.memory_space<vmem>>, vector<32x1xf32>
    %24 = vector.broadcast %23 : vector<32x1xf32> to vector<32x1024xf32>
    %25 = arith.addf %22, %24 : vector<32x1024xf32>
    %cst_15 = arith.constant 2.000000e+01 : f32
    %26 = vector.broadcast %cst_15 : f32 to vector<32x1024xf32>
    %27 = arith.cmpf ogt, %25, %26 : vector<32x1024xf32>
    %28 = math.exp %25 : vector<32x1024xf32>
    %29 = math.log1p %28 : vector<32x1024xf32>
    %30 = arith.select %27, %25, %29 : vector<32x1024xi1>, vector<32x1024xf32>
    %c96 = arith.constant 96 : index
    %c0_16 = arith.constant 0 : index
    %31 = vector.load %arg2[%c96, %c0_16] : memref<144x32xf32, #tpu.memory_space<vmem>>, vector<32x32xf32>
    %cst_17 = arith.constant dense<0.000000e+00> : vector<32x1024xf32>
    %32 = tpu.matmul %31, %30, %cst_17 {dimension_numbers = #tpu.dot_dimension_numbers<[1], [0], [0], [1], [0, 0, 1, 1], [], []>} : vector<32x32xf32>, vector<32x1024xf32>, vector<32x1024xf32> -> vector<32x1024xf32>
    %c96_18 = arith.constant 96 : index
    %c0_19 = arith.constant 0 : index
    %33 = vector.load %arg3[%c96_18, %c0_19] : memref<136x1xf32, #tpu.memory_space<vmem>>, vector<32x1xf32>
    %34 = vector.broadcast %33 : vector<32x1xf32> to vector<32x1024xf32>
    %35 = arith.addf %32, %34 : vector<32x1024xf32>
    %cst_20 = arith.constant 2.000000e+01 : f32
    %36 = vector.broadcast %cst_20 : f32 to vector<32x1024xf32>
    %37 = arith.cmpf ogt, %35, %36 : vector<32x1024xf32>
    %38 = math.exp %35 : vector<32x1024xf32>
    %39 = math.log1p %38 : vector<32x1024xf32>
    %40 = arith.select %37, %35, %39 : vector<32x1024xi1>, vector<32x1024xf32>
    %c128 = arith.constant 128 : index
    %c0_21 = arith.constant 0 : index
    %41 = vector.load %arg2[%c128, %c0_21] : memref<144x32xf32, #tpu.memory_space<vmem>>, vector<8x32xf32>
    %cst_22 = arith.constant dense<0.000000e+00> : vector<8x1024xf32>
    %42 = tpu.matmul %41, %40, %cst_22 {dimension_numbers = #tpu.dot_dimension_numbers<[1], [0], [0], [1], [0, 0, 1, 1], [], []>} : vector<8x32xf32>, vector<32x1024xf32>, vector<8x1024xf32> -> vector<8x1024xf32>
    %c136 = arith.constant 136 : index
    %c0_23 = arith.constant 0 : index
    %43 = vector.load %arg2[%c136, %c0_23] : memref<144x32xf32, #tpu.memory_space<vmem>>, vector<8x3xf32>
    %cst_24 = arith.constant dense<0.000000e+00> : vector<8x1024xf32>
    %44 = tpu.matmul %43, %0, %cst_24 {dimension_numbers = #tpu.dot_dimension_numbers<[1], [0], [0], [1], [0, 0, 1, 1], [], []>} : vector<8x3xf32>, vector<3x1024xf32>, vector<8x1024xf32> -> vector<8x1024xf32>
    %45 = arith.addf %42, %44 : vector<8x1024xf32>
    %c128_25 = arith.constant 128 : index
    %c0_26 = arith.constant 0 : index
    %46 = vector.load %arg3[%c128_25, %c0_26] : memref<136x1xf32, #tpu.memory_space<vmem>>, vector<8x1xf32>
    %47 = vector.broadcast %46 : vector<8x1xf32> to vector<8x1024xf32>
    %48 = arith.addf %45, %47 : vector<8x1024xf32>
    %49 = vector.extract_strided_slice %48 {offsets = [0, 0], sizes = [4, 1024], strides = [1, 1]} : vector<8x1024xf32> to vector<4x1024xf32>
    %c0_27 = arith.constant 0 : index
    %c0_28 = arith.constant 0 : index
    %50 = vector.load %arg4[%c0_27, %c0_28] : memref<4x1024xf32, #tpu.memory_space<vmem>>, vector<4x1024xf32>
    tpu.vector_store %arg4[%c0_27, %c0_28], %49 {strides = array<i32>} : memref<4x1024xf32, #tpu.memory_space<vmem>>, vector<4x1024xf32>,
    return
  }
  func.func @transform_0(%arg0: i32) -> (i32, i32) {
    %c0_i32 = arith.constant 0 : i32
    %c0_i32_0 = arith.constant 0 : i32
    return %c0_i32, %arg0 : i32, i32
  }
  func.func @transform_1(%arg0: i32) -> (i32, i32) {
    %c0_i32 = arith.constant 0 : i32
    %c0_i32_0 = arith.constant 0 : i32
    %c0_i32_1 = arith.constant 0 : i32
    return %c0_i32, %c0_i32_0 : i32, i32
  }
  func.func @transform_2(%arg0: i32) -> (i32, i32) {
    %c0_i32 = arith.constant 0 : i32
    %c0_i32_0 = arith.constant 0 : i32
    %c0_i32_1 = arith.constant 0 : i32
    return %c0_i32, %c0_i32_0 : i32, i32
  }
  func.func @transform_3(%arg0: i32) -> (i32, i32) {
    %c0_i32 = arith.constant 0 : i32
    %c0_i32_0 = arith.constant 0 : i32
    return %c0_i32, %arg0 : i32, i32
  }
}

</mosaic_0001>

<llo_original>
// kernel: tpu_custom_call.1
$region0: #{tpu_custom_call.1}
  #allocation0 [shape = 'u32[]', space=smem, size = 0x4, offset = 0x4, fixed_abs, tag = 'smem constant byte address 0x4 - core index']
  #allocation1 [shape = 'u32[72,128]{1,0:T(1,128)}', space=vmem, size = 0x9000, scoped, tag = 'internal scratch']
  %s0 = inlined_call_operand.vmem [shape: f32[3,2048], index: 0, kind: input, shape index: {}]
  %s1 = inlined_call_operand.vmem [shape: f32[144,32], index: 1, kind: input, shape index: {}]
  %s2 = inlined_call_operand.vmem [shape: f32[136,1], index: 2, kind: input, shape index: {}]
  %s3 = inlined_call_operand.hbm [shape: f32[4,2048], index: 3, kind: output, shape index: {}]
  %s4 = sld [smem:[#allocation0]]
  $region45: #{tpu_custom_call.1} parent=0
    _
  %s6 = ssub.s32 1, %s4
  %s7 = scalar_select 0, %s6, %s4
  $region1: #{tpu_custom_call.1} parent=0
    #allocation2 [shape = 'u8[32768]{0}', space=vmem, size = 0x8000, scoped, tag = 'output window, operand 0']
    #allocation3 [shape = 's32[2]{0}', space=sflag, size = 0x8, scoped, tag = 'scoped memory for tpu_custom_call.1']
    %8 = vsyncpa [#allocation3], 0
    %s9 = scalar_lea.sflag [#allocation3], 1
    %10 = vsyncpa %s9, 0
    loop: start=0, step=1, limit=4
    $region2: #{tpu_custom_call.1} parent=1 // loop_pre_header
      _
    $region3: #{tpu_custom_call.1} parent=1 // loop_header
      %s12 = sphi 0, %s16
      %p13 = scmp.ge.s32.totalorder %s12, 4
      %s22 = sphi 0, %s24
      %s25 = sphi 0, %s22
      %s26 = sphi 0, %s25
      %s42 = sphi 0, %s26
      %s46 = sphi 0, %s46
      %s48 = sphi 0, %s46
      %s49 = sphi 0, %s48
      %s63 = sphi 0, %s49
      %s67 = sphi 0, %s67
      %s69 = sphi 0, %s67
      %s70 = sphi 0, %s69
      %s84 = sphi 0, %s70
      %s90 = sphi 0, %s92
      %s93 = sphi 0, %s90
      %s94 = sphi 0, %s93
      %s110 = sphi 0, %s94
    $region4: #{tpu_custom_call.1} parent=1 // loop_header_branch
      %15 = sbr.rel (%p13) target = $region8
    $region5: #{tpu_custom_call.1} parent=1 // loop_body
      %s17 = ssub.s32 %s12, 1
      %s18 = ssub.s32 %s12, 2
      %s19 = sadd.s32 %s12, 1
      %s20 = ssub.s32 %s12, %s19
      %p21 = scmp.eq.s32.totalorder %s20, 0
      %s23 = sadd.s32 %s22, 1
      %s24 = scalar_select %p21, %s22, %s23
      %p27 = pneg %p21
      %p28 = scmp.eq.s32.totalorder %s12, 1
      %p29 = por %p27, %p28
      %p30 = scmp.ne.s32.totalorder %s22, %s25
      %p31 = scmp.eq.s32.totalorder %s12, 0
      %p32 = por %p30, %p31
      %p33 = scmp.ne.s32.totalorder %s22, %s25
      %p34 = scmp.eq.s32.totalorder %s17, 1
      %p35 = por %p33, %p34
      %p36 = scmp.ne.s32.totalorder %s25, %s26
      %p37 = scmp.eq.s32.totalorder %s17, 0
      %p38 = por %p36, %p37
      %p39 = scmp.ne.s32.totalorder %s25, %s26
      %p40 = scmp.eq.s32.totalorder %s18, 1
      %p41 = por %p39, %p40
      %p43 = scmp.ne.s32.totalorder %s26, %s42
      %p44 = scmp.eq.s32.totalorder %s18, 0
      %p45 = por %p43, %p44
      %s47 = sadd.s32 %s46, 1
      %p50 = scmp.eq.s32.totalorder %s12, 1
      %p51 = scmp.ne.s32.totalorder %s46, %s48
      %p52 = scmp.eq.s32.totalorder %s12, 0
      %p53 = por %p51, %p52
      %p54 = scmp.ne.s32.totalorder %s46, %s48
      %p55 = scmp.eq.s32.totalorder %s17, 1
      %p56 = por %p54, %p55
      %p57 = scmp.ne.s32.totalorder %s48, %s49
      %p58 = scmp.eq.s32.totalorder %s17, 0
      %p59 = por %p57, %p58
      %p60 = scmp.ne.s32.totalorder %s48, %s49
      %p61 = scmp.eq.s32.totalorder %s18, 1
      %p62 = por %p60, %p61
      %p64 = scmp.ne.s32.totalorder %s49, %s63
      %p65 = scmp.eq.s32.totalorder %s18, 0
      %p66 = por %p64, %p65
      %s68 = sadd.s32 %s67, 1
      %p71 = scmp.eq.s32.totalorder %s12, 1
      %p72 = scmp.ne.s32.totalorder %s67, %s69
      %p73 = scmp.eq.s32.totalorder %s12, 0
      %p74 = por %p72, %p73
      %p75 = scmp.ne.s32.totalorder %s67, %s69
      %p76 = scmp.eq.s32.totalorder %s17, 1
      %p77 = por %p75, %p76
      %p78 = scmp.ne.s32.totalorder %s69, %s70
      %p79 = scmp.eq.s32.totalorder %s17, 0
      %p80 = por %p78, %p79
      %p81 = scmp.ne.s32.totalorder %s69, %s70
      %p82 = scmp.eq.s32.totalorder %s18, 1
      %p83 = por %p81, %p82
      %p85 = scmp.ne.s32.totalorder %s70, %s84
      %p86 = scmp.eq.s32.totalorder %s18, 0
      %p87 = por %p85, %p86
      %s88 = ssub.s32 %s12, %s19
      %p89 = scmp.eq.s32.totalorder %s88, 0
      %s91 = sadd.s32 %s90, 1
      %s92 = scalar_select %p89, %s90, %s91
      %p95 = pneg %p89
      %p96 = scmp.eq.s32.totalorder %s12, 1
      %p97 = por %p95, %p96
      %p98 = scmp.ne.s32.totalorder %s90, %s93
      %p99 = scmp.eq.s32.totalorder %s12, 0
      %p100 = por %p98, %p99
      %p101 = scmp.ne.s32.totalorder %s90, %s93
      %p102 = scmp.eq.s32.totalorder %s17, 1
      %p103 = por %p101, %p102
      %p104 = scmp.ne.s32.totalorder %s93, %s94
      %p105 = scmp.eq.s32.totalorder %s17, 0
      %p106 = por %p104, %p105
      %p107 = scmp.ne.s32.totalorder %s93, %s94
      %p108 = scmp.eq.s32.totalorder %s18, 1
      %p109 = por %p107, %p108
      %p111 = scmp.ne.s32.totalorder %s94, %s110
      %p112 = scmp.eq.s32.totalorder %s18, 0
      %p113 = por %p111, %p112
      %p114 = scmp.le.s32.totalorder 1, %s12
      %p115 = scmp.lt.s32.totalorder %s12, 3
      %p116 = pnand %p114, %p115
      %p117 = pneg %p116
      // Predicated region
      $region9: #{tpu_custom_call.1} parent=5 // pred_check
        _
      $region10: #{tpu_custom_call.1} parent=5 // pred_check_branch
        %119 = sbr.rel (%p116) target = $region12
      $region11: #{tpu_custom_call.1} parent=5 // pred_region
        %s120 = ssub.s32 %s12, 1
        // Predicated region
        $region13: #{tpu_custom_call.1} parent=11 // pred_check
          %p121 = pneg %p59
        $region14: #{tpu_custom_call.1} parent=11 // pred_check_branch
          %123 = sbr.rel (%p121) target = $region16
        $region15: #{tpu_custom_call.1} parent=11 // pred_region
          _
        $region16: #{tpu_custom_call.1} parent=11 // pred_fallthru
          _
        // Predicated region
        $region17: #{tpu_custom_call.1} parent=11 // pred_check
          %p124 = pneg %p80
        $region18: #{tpu_custom_call.1} parent=11 // pred_check_branch
          %126 = sbr.rel (%p124) target = $region20
        $region19: #{tpu_custom_call.1} parent=11 // pred_region
          _
        $region20: #{tpu_custom_call.1} parent=11 // pred_fallthru
          _
      $region12: #{tpu_custom_call.1} parent=5 // pred_fallthru
        _
      %p127 = scmp.lt.s32.totalorder %s12, 2
      // Predicated region
      $region21: #{tpu_custom_call.1} parent=5 // pred_check
        %p128 = pneg %p127
      $region22: #{tpu_custom_call.1} parent=5 // pred_check_branch
        %130 = sbr.rel (%p128) target = $region24
      $region23: #{tpu_custom_call.1} parent=5 // pred_region
        // Predicated region
        $region25: #{tpu_custom_call.1} parent=23 // pred_check
          %p131 = pneg %p32
        $region26: #{tpu_custom_call.1} parent=23 // pred_check_branch
          %133 = sbr.rel (%p131) target = $region28
        $region27: #{tpu_custom_call.1} parent=23 // pred_region
          %s134 = smul.u32 8, %s12
          %p135 = scmp.lt.s32.totalorder %s134, 15
          %s136 = scalar_select %p135, %s134, 15
          %s137 = smul.addr %s136, 4
          %s138 = scalar_lea.vmem %s0, %s137
          %s139 = smul.u32 8, %s12
        $region28: #{tpu_custom_call.1} parent=23 // pred_fallthru
          _
      $region24: #{tpu_custom_call.1} parent=5 // pred_fallthru
        _
      %p140 = scmp.le.s32.totalorder 1, %s12
      %p141 = scmp.lt.s32.totalorder %s12, 3
      %p142 = pnand %p140, %p141
      %p143 = pneg %p142
      // Predicated region
      $region29: #{tpu_custom_call.1} parent=5 // pred_check
        _
      $region30: #{tpu_custom_call.1} parent=5 // pred_check_branch
        %145 = sbr.rel (%p142) target = $region32
      $region31: #{tpu_custom_call.1} parent=5 // pred_region
        %s146 = ssub.s32 %s12, 1
        %s147 = smul.u32 8, %s17
        %p148 = scmp.lt.s32.totalorder %s147, 15
        %s149 = scalar_select %p148, %s147, 15
        %s150 = smul.addr %s149, 4
        %s151 = scalar_lea.vmem %s0, %s150
        %p152 = pneg %p38
        %p153 = pneg %p35
        %p154 = pneg %p59
        %p155 = pneg %p56
        %p156 = pneg %p80
        %p157 = pneg %p77
        %p158 = pneg %p106
        %p159 = pneg %p103
        %s160 = sand.u32 %s93, 1
        %s161 = scalar_lea.sflag [#allocation3], %s160
        %s162 = sand.u32 %s93, 1
        %s163 = smul.addr %s162, 32
        %s164 = scalar_lea.vmem [#allocation2], %s163
        %s165 = smul.u32 8, %s17
        %p166 = scmp.lt.s32.totalorder %s165, 15
        %s167 = scalar_select %p166, %s165, 15
        %s168 = smul.addr %s167, 4
        %s169 = scalar_lea.vmem %s0, %s168
        %s170 = smul.u32 8, %s17
        %s171 = smul.u32 8, %s17
        %v172 = vld [vmem:[%s169] sm:$0x77]
        %v173 = vld [vmem:[%s169 + $0x8] sm:$0x77]
        %v174 = vld [vmem:[%s169 + $0x10] sm:$0x77]
        %v175 = vld [vmem:[%s169 + $0x18] sm:$0x77]
        %v176 = vld [vmem:[%s1] sm:$0xff]
        %v177 = vld [vmem:[%s1 + $0x8] sm:$0xff]
        %v178 = vld [vmem:[%s1 + $0x10] sm:$0xff]
        %v179 = vld [vmem:[%s1 + $0x18] sm:$0xff]
        %v180 = vld [vmem:[%s2] sm:$0xff]
        %v181 = vld [vmem:[%s2 + $0x8] sm:$0xff]
        %v182 = vld [vmem:[%s2 + $0x10] sm:$0xff]
        %v183 = vld [vmem:[%s2 + $0x18] sm:$0xff]
        %185 = vset.pattern.permute.xlu0 0
        %186 = vperm.xlu0 %185, %v180
        %v187 = vpop.permute.xlu0 %186
        %190 = vset.pattern.permute.xlu0 0
        %191 = vperm.xlu0 %190, %v181
        %v192 = vpop.permute.xlu0 %191
        %195 = vset.pattern.permute.xlu0 0
        %196 = vperm.xlu0 %195, %v182
        %v197 = vpop.permute.xlu0 %196
        %200 = vset.pattern.permute.xlu0 0
        %201 = vperm.xlu0 %200, %v183
        %v202 = vpop.permute.xlu0 %201
        %208 = vst [vmem:[#allocation1] ss:$2 sm:$0xff] %v172
        %s209 = scalar_lea.vmem [#allocation1], 16
        %210 = vst [vmem:[%s209] ss:$2 sm:$0xff] %v173
        %s211 = scalar_lea.vmem [#allocation1], 32
        %212 = vst [vmem:[%s211] ss:$2 sm:$0xff] %v174
        %s213 = scalar_lea.vmem [#allocation1], 48
        %214 = vst [vmem:[%s213] ss:$2 sm:$0xff] %v175
        %v215 = vld.sshfl [vmem:[#allocation1] sm:$0xff pattern:$0x75316420]
        %v216 = vld.sshfl [vmem:[#allocation1 + $0x8] sm:$0xff pattern:$0x75316420]
        %v217 = vld.sshfl [vmem:[#allocation1 + $0x10] sm:$0xff pattern:$0x75316420]
        %v218 = vld.sshfl [vmem:[#allocation1 + $0x18] sm:$0xff pattern:$0x75316420]
        %v219 = vld.sshfl [vmem:[#allocation1 + $0x20] sm:$0xff pattern:$0x75316420]
        %v220 = vld.sshfl [vmem:[#allocation1 + $0x28] sm:$0xff pattern:$0x75316420]
        %v221 = vld.sshfl [vmem:[#allocation1 + $0x30] sm:$0xff pattern:$0x75316420]
        %v222 = vld.sshfl [vmem:[#allocation1 + $0x38] sm:$0xff pattern:$0x75316420]
        %vm223 = vcmask 23552
        %v225 = vsel %vm223, %v176, 0
        %v228 = vsel %vm223, %v177, 0
        %v231 = vsel %vm223, %v178, 0
        %v234 = vsel %vm223, %v179, 0
        %vm236 = vcmask 1042432
        %v237 = vsel %vm236, %v215, 0
        %v239 = vsel %vm236, %v216, 0
        %v241 = vsel %vm236, %v217, 0
        %v243 = vsel %vm236, %v218, 0
        %v245 = vsel %vm236, %v219, 0
        %v247 = vsel %vm236, %v220, 0
        %v249 = vsel %vm236, %v221, 0
        %v251 = vsel %vm236, %v222, 0
        %253 = vmatpush.msra.mxu0 0.0
        %254 = vmatpush.msra.mxu0 0.0
        %255 = vmatpush.msra.mxu0 0.0
        %256 = vmatpush.msra.mxu0 0.0
        %257 = vmatpush.msra.mxu0 0.0
        %258 = vmatpush.msra.mxu0 0.0
        %259 = vmatpush.msra.mxu0 0.0
        %260 = vmatpush.msra.mxu0 0.0
        %261 = vmatpush.msra.mxu0 0.0
        %262 = vmatpush.msra.mxu0 0.0
        %263 = vmatpush.msra.mxu0 0.0
        %264 = vmatpush.msra.mxu0 0.0
        %265 = vmatpush.msra.mxu0 0.0
        %266 = vmatpush.msra.mxu0 0.0
        %267 = vmatpush.msra.mxu0 0.0
        %268 = vmatpush.msra.mxu0 %v237
        %269 = vmatmul.f32.gmra.mxu0 %v225
        %v270 = vpop.f32.mrf.mxu0
        %v271 = vadd.f32 %v187, %v270
        %272 = vmatmul.f32.gmra.mxu0 %v228
        %v273 = vpop.f32.mrf.mxu0
        %v274 = vadd.f32 %v192, %v273
        %275 = vmatmul.f32.gmra.mxu0 %v231
        %v276 = vpop.f32.mrf.mxu0
        %v277 = vadd.f32 %v197, %v276
        %278 = vmatmul.f32.gmra.mxu0 %v234
        %v279 = vpop.f32.mrf.mxu0
        %v280 = vadd.f32 %v202, %v279
        %281 = vdwg.mxu0
        %282 = vmatpush.msra.mxu0 0.0
        %283 = vmatpush.msra.mxu0 0.0
        %284 = vmatpush.msra.mxu0 0.0
        %285 = vmatpush.msra.mxu0 0.0
        %286 = vmatpush.msra.mxu0 0.0
        %287 = vmatpush.msra.mxu0 0.0
        %288 = vmatpush.msra.mxu0 0.0
        %289 = vmatpush.msra.mxu0 0.0
        %290 = vmatpush.msra.mxu0 0.0
        %291 = vmatpush.msra.mxu0 0.0
        %292 = vmatpush.msra.mxu0 0.0
        %293 = vmatpush.msra.mxu0 0.0
        %294 = vmatpush.msra.mxu0 0.0
        %295 = vmatpush.msra.mxu0 0.0
        %296 = vmatpush.msra.mxu0 0.0
        %297 = vmatpush.msra.mxu0 %v239
        %298 = vmatmul.f32.gmra.mxu0 %v225
        %v299 = vpop.f32.mrf.mxu0
        %v300 = vadd.f32 %v187, %v299
        %301 = vmatmul.f32.gmra.mxu0 %v228
        %v302 = vpop.f32.mrf.mxu0
        %v303 = vadd.f32 %v192, %v302
        %304 = vmatmul.f32.gmra.mxu0 %v231
        %v305 = vpop.f32.mrf.mxu0
        %v306 = vadd.f32 %v197, %v305
        %307 = vmatmul.f32.gmra.mxu0 %v234
        %v308 = vpop.f32.mrf.mxu0
        %v309 = vadd.f32 %v202, %v308
        %310 = vdwg.mxu0
        %311 = vmatpush.msra.mxu0 0.0
        %312 = vmatpush.msra.mxu0 0.0
        %313 = vmatpush.msra.mxu0 0.0
        %314 = vmatpush.msra.mxu0 0.0
        %315 = vmatpush.msra.mxu0 0.0
        %316 = vmatpush.msra.mxu0 0.0
        %317 = vmatpush.msra.mxu0 0.0
        %318 = vmatpush.msra.mxu0 0.0
        %319 = vmatpush.msra.mxu0 0.0
        %320 = vmatpush.msra.mxu0 0.0
        %321 = vmatpush.msra.mxu0 0.0
        %322 = vmatpush.msra.mxu0 0.0
        %323 = vmatpush.msra.mxu0 0.0
        %324 = vmatpush.msra.mxu0 0.0
        %325 = vmatpush.msra.mxu0 0.0
        %326 = vmatpush.msra.mxu0 %v241
        %327 = vmatmul.f32.gmra.mxu0 %v225
        %v328 = vpop.f32.mrf.mxu0
        %v329 = vadd.f32 %v187, %v328
        %330 = vmatmul.f32.gmra.mxu0 %v228
        %v331 = vpop.f32.mrf.mxu0
        %v332 = vadd.f32 %v192, %v331
        %333 = vmatmul.f32.gmra.mxu0 %v231
        %v334 = vpop.f32.mrf.mxu0
        %v335 = vadd.f32 %v197, %v334
        %336 = vmatmul.f32.gmra.mxu0 %v234
        %v337 = vpop.f32.mrf.mxu0
        %v338 = vadd.f32 %v202, %v337
        %339 = vdwg.mxu0
        %340 = vmatpush.msra.mxu0 0.0
        %341 = vmatpush.msra.mxu0 0.0
        %342 = vmatpush.msra.mxu0 0.0
        %343 = vmatpush.msra.mxu0 0.0
        %344 = vmatpush.msra.mxu0 0.0
        %345 = vmatpush.msra.mxu0 0.0
        %346 = vmatpush.msra.mxu0 0.0
        %347 = vmatpush.msra.mxu0 0.0
        %348 = vmatpush.msra.mxu0 0.0
        %349 = vmatpush.msra.mxu0 0.0
        %350 = vmatpush.msra.mxu0 0.0
        %351 = vmatpush.msra.mxu0 0.0
        %352 = vmatpush.msra.mxu0 0.0
        %353 = vmatpush.msra.mxu0 0.0
        %354 = vmatpush.msra.mxu0 0.0
        %355 = vmatpush.msra.mxu0 %v243
        %356 = vmatmul.f32.gmra.mxu0 %v225
        %v357 = vpop.f32.mrf.mxu0
        %v358 = vadd.f32 %v187, %v357
        %359 = vmatmul.f32.gmra.mxu0 %v228
        %v360 = vpop.f32.mrf.mxu0
        %v361 = vadd.f32 %v192, %v360
        %362 = vmatmul.f32.gmra.mxu0 %v231
        %v363 = vpop.f32.mrf.mxu0
        %v364 = vadd.f32 %v197, %v363
        %365 = vmatmul.f32.gmra.mxu0 %v234
        %v366 = vpop.f32.mrf.mxu0
        %v367 = vadd.f32 %v202, %v366
        %368 = vdwg.mxu0
        %369 = vmatpush.msra.mxu0 0.0
        %370 = vmatpush.msra.mxu0 0.0
        %371 = vmatpush.msra.mxu0 0.0
        %372 = vmatpush.msra.mxu0 0.0
        %373 = vmatpush.msra.mxu0 0.0
        %374 = vmatpush.msra.mxu0 0.0
        %375 = vmatpush.msra.mxu0 0.0
        %376 = vmatpush.msra.mxu0 0.0
        %377 = vmatpush.msra.mxu0 0.0
        %378 = vmatpush.msra.mxu0 0.0
        %379 = vmatpush.msra.mxu0 0.0
        %380 = vmatpush.msra.mxu0 0.0
        %381 = vmatpush.msra.mxu0 0.0
        %382 = vmatpush.msra.mxu0 0.0
        %383 = vmatpush.msra.mxu0 0.0
        %384 = vmatpush.msra.mxu0 %v245
        %385 = vmatmul.f32.gmra.mxu0 %v225
        %v386 = vpop.f32.mrf.mxu0
        %v387 = vadd.f32 %v187, %v386
        %388 = vmatmul.f32.gmra.mxu0 %v228
        %v389 = vpop.f32.mrf.mxu0
        %v390 = vadd.f32 %v192, %v389
        %391 = vmatmul.f32.gmra.mxu0 %v231
        %v392 = vpop.f32.mrf.mxu0
        %v393 = vadd.f32 %v197, %v392
        %394 = vmatmul.f32.gmra.mxu0 %v234
        %v395 = vpop.f32.mrf.mxu0
        %v396 = vadd.f32 %v202, %v395
        %397 = vdwg.mxu0
        %398 = vmatpush.msra.mxu0 0.0
        %399 = vmatpush.msra.mxu0 0.0
        %400 = vmatpush.msra.mxu0 0.0
        %401 = vmatpush.msra.mxu0 0.0
        %402 = vmatpush.msra.mxu0 0.0
        %403 = vmatpush.msra.mxu0 0.0
        %404 = vmatpush.msra.mxu0 0.0
        %405 = vmatpush.msra.mxu0 0.0
        %406 = vmatpush.msra.mxu0 0.0
        %407 = vmatpush.msra.mxu0 0.0
        %408 = vmatpush.msra.mxu0 0.0
        %409 = vmatpush.msra.mxu0 0.0
        %410 = vmatpush.msra.mxu0 0.0
        %411 = vmatpush.msra.mxu0 0.0
        %412 = vmatpush.msra.mxu0 0.0
        %413 = vmatpush.msra.mxu0 %v247
        %414 = vmatmul.f32.gmra.mxu0 %v225
        %v415 = vpop.f32.mrf.mxu0
        %v416 = vadd.f32 %v187, %v415
        %417 = vmatmul.f32.gmra.mxu0 %v228
        %v418 = vpop.f32.mrf.mxu0
        %v419 = vadd.f32 %v192, %v418
        %420 = vmatmul.f32.gmra.mxu0 %v231
        %v421 = vpop.f32.mrf.mxu0
        %v422 = vadd.f32 %v197, %v421
        %423 = vmatmul.f32.gmra.mxu0 %v234
        %v424 = vpop.f32.mrf.mxu0
        %v425 = vadd.f32 %v202, %v424
        %426 = vdwg.mxu0
        %427 = vmatpush.msra.mxu0 0.0
        %428 = vmatpush.msra.mxu0 0.0
        %429 = vmatpush.msra.mxu0 0.0
        %430 = vmatpush.msra.mxu0 0.0
        %431 = vmatpush.msra.mxu0 0.0
        %432 = vmatpush.msra.mxu0 0.0
        %433 = vmatpush.msra.mxu0 0.0
        %434 = vmatpush.msra.mxu0 0.0
        %435 = vmatpush.msra.mxu0 0.0
        %436 = vmatpush.msra.mxu0 0.0
        %437 = vmatpush.msra.mxu0 0.0
        %438 = vmatpush.msra.mxu0 0.0
        %439 = vmatpush.msra.mxu0 0.0
        %440 = vmatpush.msra.mxu0 0.0
        %441 = vmatpush.msra.mxu0 0.0
        %442 = vmatpush.msra.mxu0 %v249
        %443 = vmatmul.f32.gmra.mxu0 %v225
        %v444 = vpop.f32.mrf.mxu0
        %v445 = vadd.f32 %v187, %v444
        %446 = vmatmul.f32.gmra.mxu0 %v228
        %v447 = vpop.f32.mrf.mxu0
        %v448 = vadd.f32 %v192, %v447
        %449 = vmatmul.f32.gmra.mxu0 %v231
        %v450 = vpop.f32.mrf.mxu0
        %v451 = vadd.f32 %v197, %v450
        %452 = vmatmul.f32.gmra.mxu0 %v234
        %v453 = vpop.f32.mrf.mxu0
        %v454 = vadd.f32 %v202, %v453
        %455 = vdwg.mxu0
        %456 = vmatpush.msra.mxu0 0.0
        %457 = vmatpush.msra.mxu0 0.0
        %458 = vmatpush.msra.mxu0 0.0
        %459 = vmatpush.msra.mxu0 0.0
        %460 = vmatpush.msra.mxu0 0.0
        %461 = vmatpush.msra.mxu0 0.0
        %462 = vmatpush.msra.mxu0 0.0
        %463 = vmatpush.msra.mxu0 0.0
        %464 = vmatpush.msra.mxu0 0.0
        %465 = vmatpush.msra.mxu0 0.0
        %466 = vmatpush.msra.mxu0 0.0
        %467 = vmatpush.msra.mxu0 0.0
        %468 = vmatpush.msra.mxu0 0.0
        %469 = vmatpush.msra.mxu0 0.0
        %470 = vmatpush.msra.mxu0 0.0
        %471 = vmatpush.msra.mxu0 %v251
        %472 = vmatmul.f32.gmra.mxu0 %v225
        %v473 = vpop.f32.mrf.mxu0
        %v474 = vadd.f32 %v187, %v473
        %475 = vmatmul.f32.gmra.mxu0 %v228
        %v476 = vpop.f32.mrf.mxu0
        %v477 = vadd.f32 %v192, %v476
        %478 = vmatmul.f32.gmra.mxu0 %v231
        %v479 = vpop.f32.mrf.mxu0
        %v480 = vadd.f32 %v197, %v479
        %481 = vmatmul.f32.gmra.mxu0 %v234
        %v482 = vpop.f32.mrf.mxu0
        %v483 = vadd.f32 %v202, %v482
        %484 = vdwg.mxu0
        %vm485 = vcmp.gt.f32.partialorder %v271, 20.0
        %vm486 = vcmp.gt.f32.partialorder %v300, 20.0
        %vm487 = vcmp.gt.f32.partialorder %v329, 20.0
        %vm488 = vcmp.gt.f32.partialorder %v358, 20.0
        %vm489 = vcmp.gt.f32.partialorder %v387, 20.0
        %vm490 = vcmp.gt.f32.partialorder %v416, 20.0
        %vm491 = vcmp.gt.f32.partialorder %v445, 20.0
        %vm492 = vcmp.gt.f32.partialorder %v474, 20.0
        %vm493 = vcmp.gt.f32.partialorder %v274, 20.0
        %vm494 = vcmp.gt.f32.partialorder %v303, 20.0
        %vm495 = vcmp.gt.f32.partialorder %v332, 20.0
        %vm496 = vcmp.gt.f32.partialorder %v361, 20.0
        %vm497 = vcmp.gt.f32.partialorder %v390, 20.0
        %vm498 = vcmp.gt.f32.partialorder %v419, 20.0
        %vm499 = vcmp.gt.f32.partialorder %v448, 20.0
        %vm500 = vcmp.gt.f32.partialorder %v477, 20.0
        %vm501 = vcmp.gt.f32.partialorder %v277, 20.0
        %vm502 = vcmp.gt.f32.partialorder %v306, 20.0
        %vm503 = vcmp.gt.f32.partialorder %v335, 20.0
        %vm504 = vcmp.gt.f32.partialorder %v364, 20.0
        %vm505 = vcmp.gt.f32.partialorder %v393, 20.0
        %vm506 = vcmp.gt.f32.partialorder %v422, 20.0
        %vm507 = vcmp.gt.f32.partialorder %v451, 20.0
        %vm508 = vcmp.gt.f32.partialorder %v480, 20.0
        %vm509 = vcmp.gt.f32.partialorder %v280, 20.0
        %vm510 = vcmp.gt.f32.partialorder %v309, 20.0
        %vm511 = vcmp.gt.f32.partialorder %v338, 20.0
        %vm512 = vcmp.gt.f32.partialorder %v367, 20.0
        %vm513 = vcmp.gt.f32.partialorder %v396, 20.0
        %vm514 = vcmp.gt.f32.partialorder %v425, 20.0
        %vm515 = vcmp.gt.f32.partialorder %v454, 20.0
        %vm516 = vcmp.gt.f32.partialorder %v483, 20.0
        %v517 = vmul.f32 %v271, 1.442695
        %v518 = vpow.pop %v517
        %v519 = vmul.f32 %v300, 1.442695
        %v520 = vpow.pop %v519
        %v521 = vmul.f32 %v329, 1.442695
        %v522 = vpow.pop %v521
        %v523 = vmul.f32 %v358, 1.442695
        %v524 = vpow.pop %v523
        %v525 = vmul.f32 %v387, 1.442695
        %v526 = vpow.pop %v525
        %v527 = vmul.f32 %v416, 1.442695
        %v528 = vpow.pop %v527
        %v529 = vmul.f32 %v445, 1.442695
        %v530 = vpow.pop %v529
        %v531 = vmul.f32 %v474, 1.442695
        %v532 = vpow.pop %v531
        %v533 = vmul.f32 %v274, 1.442695
        %v534 = vpow.pop %v533
        %v535 = vmul.f32 %v303, 1.442695
        %v536 = vpow.pop %v535
        %v537 = vmul.f32 %v332, 1.442695
        %v538 = vpow.pop %v537
        %v539 = vmul.f32 %v361, 1.442695
        %v540 = vpow.pop %v539
        %v541 = vmul.f32 %v390, 1.442695
        %v542 = vpow.pop %v541
        %v543 = vmul.f32 %v419, 1.442695
        %v544 = vpow.pop %v543
        %v545 = vmul.f32 %v448, 1.442695
        %v546 = vpow.pop %v545
        %v547 = vmul.f32 %v477, 1.442695
        %v548 = vpow.pop %v547
        %v549 = vmul.f32 %v277, 1.442695
        %v550 = vpow.pop %v549
        %v551 = vmul.f32 %v306, 1.442695
        %v552 = vpow.pop %v551
        %v553 = vmul.f32 %v335, 1.442695
        %v554 = vpow.pop %v553
        %v555 = vmul.f32 %v364, 1.442695
        %v556 = vpow.pop %v555
        %v557 = vmul.f32 %v393, 1.442695
        %v558 = vpow.pop %v557
        %v559 = vmul.f32 %v422, 1.442695
        %v560 = vpow.pop %v559
        %v561 = vmul.f32 %v451, 1.442695
        %v562 = vpow.pop %v561
        %v563 = vmul.f32 %v480, 1.442695
        %v564 = vpow.pop %v563
        %v565 = vmul.f32 %v280, 1.442695
        %v566 = vpow.pop %v565
        %v567 = vmul.f32 %v309, 1.442695
        %v568 = vpow.pop %v567
        %v569 = vmul.f32 %v338, 1.442695
        %v570 = vpow.pop %v569
        %v571 = vmul.f32 %v367, 1.442695
        %v572 = vpow.pop %v571
        %v573 = vmul.f32 %v396, 1.442695
        %v574 = vpow.pop %v573
        %v575 = vmul.f32 %v425, 1.442695
        %v576 = vpow.pop %v575
        %v577 = vmul.f32 %v454, 1.442695
        %v578 = vpow.pop %v577
        %v579 = vmul.f32 %v483, 1.442695
        %v580 = vpow.pop %v579
        %v581 = vadd.f32 %v518, 1.0
        %v582 = vlog2.pop %v581
        %v583 = vmul.f32 %v582, 0.6931472
        %v584 = vmul.f32 -0.5, %v518
        %v585 = vadd.f32 %v584, 1.0
        %v586 = vmul.f32 %v585, %v518
        %v587 = vand.u32 2147483647, %v518
        %vm588 = vcmp.lt.f32.partialorder %v587, 0.0004427343
        %v589 = vsel %vm588, %v586, %v583
        %v590 = vadd.f32 %v520, 1.0
        %v591 = vlog2.pop %v590
        %v592 = vmul.f32 %v591, 0.6931472
        %v593 = vmul.f32 -0.5, %v520
        %v594 = vadd.f32 %v593, 1.0
        %v595 = vmul.f32 %v594, %v520
        %v596 = vand.u32 2147483647, %v520
        %vm597 = vcmp.lt.f32.partialorder %v596, 0.0004427343
        %v598 = vsel %vm597, %v595, %v592
        %v599 = vadd.f32 %v522, 1.0
        %v600 = vlog2.pop %v599
        %v601 = vmul.f32 %v600, 0.6931472
        %v602 = vmul.f32 -0.5, %v522
        %v603 = vadd.f32 %v602, 1.0
        %v604 = vmul.f32 %v603, %v522
        %v605 = vand.u32 2147483647, %v522
        %vm606 = vcmp.lt.f32.partialorder %v605, 0.0004427343
        %v607 = vsel %vm606, %v604, %v601
        %v608 = vadd.f32 %v524, 1.0
        %v609 = vlog2.pop %v608
        %v610 = vmul.f32 %v609, 0.6931472
        %v611 = vmul.f32 -0.5, %v524
        %v612 = vadd.f32 %v611, 1.0
        %v613 = vmul.f32 %v612, %v524
        %v614 = vand.u32 2147483647, %v524
        %vm615 = vcmp.lt.f32.partialorder %v614, 0.0004427343
        %v616 = vsel %vm615, %v613, %v610
        %v617 = vadd.f32 %v526, 1.0
        %v618 = vlog2.pop %v617
        %v619 = vmul.f32 %v618, 0.6931472
        %v620 = vmul.f32 -0.5, %v526
        %v621 = vadd.f32 %v620, 1.0
        %v622 = vmul.f32 %v621, %v526
        %v623 = vand.u32 2147483647, %v526
        %vm624 = vcmp.lt.f32.partialorder %v623, 0.0004427343
        %v625 = vsel %vm624, %v622, %v619
        %v626 = vadd.f32 %v528, 1.0
        %v627 = vlog2.pop %v626
        %v628 = vmul.f32 %v627, 0.6931472
        %v629 = vmul.f32 -0.5, %v528
        %v630 = vadd.f32 %v629, 1.0
        %v631 = vmul.f32 %v630, %v528
        %v632 = vand.u32 2147483647, %v528
        %vm633 = vcmp.lt.f32.partialorder %v632, 0.0004427343
        %v634 = vsel %vm633, %v631, %v628
        %v635 = vadd.f32 %v530, 1.0
        %v636 = vlog2.pop %v635
        %v637 = vmul.f32 %v636, 0.6931472
        %v638 = vmul.f32 -0.5, %v530
        %v639 = vadd.f32 %v638, 1.0
        %v640 = vmul.f32 %v639, %v530
        %v641 = vand.u32 2147483647, %v530
        %vm642 = vcmp.lt.f32.partialorder %v641, 0.0004427343
        %v643 = vsel %vm642, %v640, %v637
        %v644 = vadd.f32 %v532, 1.0
        %v645 = vlog2.pop %v644
        %v646 = vmul.f32 %v645, 0.6931472
        %v647 = vmul.f32 -0.5, %v532
        %v648 = vadd.f32 %v647, 1.0
        %v649 = vmul.f32 %v648, %v532
        %v650 = vand.u32 2147483647, %v532
        %vm651 = vcmp.lt.f32.partialorder %v650, 0.0004427343
        %v652 = vsel %vm651, %v649, %v646
        %v653 = vadd.f32 %v534, 1.0
        %v654 = vlog2.pop %v653
        %v655 = vmul.f32 %v654, 0.6931472
        %v656 = vmul.f32 -0.5, %v534
        %v657 = vadd.f32 %v656, 1.0
        %v658 = vmul.f32 %v657, %v534
        %v659 = vand.u32 2147483647, %v534
        %vm660 = vcmp.lt.f32.partialorder %v659, 0.0004427343
        %v661 = vsel %vm660, %v658, %v655
        %v662 = vadd.f32 %v536, 1.0
        %v663 = vlog2.pop %v662
        %v664 = vmul.f32 %v663, 0.6931472
        %v665 = vmul.f32 -0.5, %v536
        %v666 = vadd.f32 %v665, 1.0
        %v667 = vmul.f32 %v666, %v536
        %v668 = vand.u32 2147483647, %v536
        %vm669 = vcmp.lt.f32.partialorder %v668, 0.0004427343
        %v670 = vsel %vm669, %v667, %v664
        %v671 = vadd.f32 %v538, 1.0
        %v672 = vlog2.pop %v671
        %v673 = vmul.f32 %v672, 0.6931472
        %v674 = vmul.f32 -0.5, %v538
        %v675 = vadd.f32 %v674, 1.0
        %v676 = vmul.f32 %v675, %v538
        %v677 = vand.u32 2147483647, %v538
        %vm678 = vcmp.lt.f32.partialorder %v677, 0.0004427343
        %v679 = vsel %vm678, %v676, %v673
        %v680 = vadd.f32 %v540, 1.0
        %v681 = vlog2.pop %v680
        %v682 = vmul.f32 %v681, 0.6931472
        %v683 = vmul.f32 -0.5, %v540
        %v684 = vadd.f32 %v683, 1.0
        %v685 = vmul.f32 %v684, %v540
        %v686 = vand.u32 2147483647, %v540
        %vm687 = vcmp.lt.f32.partialorder %v686, 0.0004427343
        %v688 = vsel %vm687, %v685, %v682
        %v689 = vadd.f32 %v542, 1.0
        %v690 = vlog2.pop %v689
        %v691 = vmul.f32 %v690, 0.6931472
        %v692 = vmul.f32 -0.5, %v542
        %v693 = vadd.f32 %v692, 1.0
        %v694 = vmul.f32 %v693, %v542
        %v695 = vand.u32 2147483647, %v542
        %vm696 = vcmp.lt.f32.partialorder %v695, 0.0004427343
        %v697 = vsel %vm696, %v694, %v691
        %v698 = vadd.f32 %v544, 1.0
        %v699 = vlog2.pop %v698
        %v700 = vmul.f32 %v699, 0.6931472
        %v701 = vmul.f32 -0.5, %v544
        %v702 = vadd.f32 %v701, 1.0
        %v703 = vmul.f32 %v702, %v544
        %v704 = vand.u32 2147483647, %v544
        %vm705 = vcmp.lt.f32.partialorder %v704, 0.0004427343
        %v706 = vsel %vm705, %v703, %v700
        %v707 = vadd.f32 %v546, 1.0
        %v708 = vlog2.pop %v707
        %v709 = vmul.f32 %v708, 0.6931472
        %v710 = vmul.f32 -0.5, %v546
        %v711 = vadd.f32 %v710, 1.0
        %v712 = vmul.f32 %v711, %v546
        %v713 = vand.u32 2147483647, %v546
        %vm714 = vcmp.lt.f32.partialorder %v713, 0.0004427343
        %v715 = vsel %vm714, %v712, %v709
        %v716 = vadd.f32 %v548, 1.0
        %v717 = vlog2.pop %v716
        %v718 = vmul.f32 %v717, 0.6931472
        %v719 = vmul.f32 -0.5, %v548
        %v720 = vadd.f32 %v719, 1.0
        %v721 = vmul.f32 %v720, %v548
        %v722 = vand.u32 2147483647, %v548
        %vm723 = vcmp.lt.f32.partialorder %v722, 0.0004427343
        %v724 = vsel %vm723, %v721, %v718
        %v725 = vadd.f32 %v550, 1.0
        %v726 = vlog2.pop %v725
        %v727 = vmul.f32 %v726, 0.6931472
        %v728 = vmul.f32 -0.5, %v550
        %v729 = vadd.f32 %v728, 1.0
        %v730 = vmul.f32 %v729, %v550
        %v731 = vand.u32 2147483647, %v550
        %vm732 = vcmp.lt.f32.partialorder %v731, 0.0004427343
        %v733 = vsel %vm732, %v730, %v727
        %v734 = vadd.f32 %v552, 1.0
        %v735 = vlog2.pop %v734
        %v736 = vmul.f32 %v735, 0.6931472
        %v737 = vmul.f32 -0.5, %v552
        %v738 = vadd.f32 %v737, 1.0
        %v739 = vmul.f32 %v738, %v552
        %v740 = vand.u32 2147483647, %v552
        %vm741 = vcmp.lt.f32.partialorder %v740, 0.0004427343
        %v742 = vsel %vm741, %v739, %v736
        %v743 = vadd.f32 %v554, 1.0
        %v744 = vlog2.pop %v743
        %v745 = vmul.f32 %v744, 0.6931472
        %v746 = vmul.f32 -0.5, %v554
        %v747 = vadd.f32 %v746, 1.0
        %v748 = vmul.f32 %v747, %v554
        %v749 = vand.u32 2147483647, %v554
        %vm750 = vcmp.lt.f32.partialorder %v749, 0.0004427343
        %v751 = vsel %vm750, %v748, %v745
        %v752 = vadd.f32 %v556, 1.0
        %v753 = vlog2.pop %v752
        %v754 = vmul.f32 %v753, 0.6931472
        %v755 = vmul.f32 -0.5, %v556
        %v756 = vadd.f32 %v755, 1.0
        %v757 = vmul.f32 %v756, %v556
        %v758 = vand.u32 2147483647, %v556
        %vm759 = vcmp.lt.f32.partialorder %v758, 0.0004427343
        %v760 = vsel %vm759, %v757, %v754
        %v761 = vadd.f32 %v558, 1.0
        %v762 = vlog2.pop %v761
        %v763 = vmul.f32 %v762, 0.6931472
        %v764 = vmul.f32 -0.5, %v558
        %v765 = vadd.f32 %v764, 1.0
        %v766 = vmul.f32 %v765, %v558
        %v767 = vand.u32 2147483647, %v558
        %vm768 = vcmp.lt.f32.partialorder %v767, 0.0004427343
        %v769 = vsel %vm768, %v766, %v763
        %v770 = vadd.f32 %v560, 1.0
        %v771 = vlog2.pop %v770
        %v772 = vmul.f32 %v771, 0.6931472
        %v773 = vmul.f32 -0.5, %v560
        %v774 = vadd.f32 %v773, 1.0
        %v775 = vmul.f32 %v774, %v560
        %v776 = vand.u32 2147483647, %v560
        %vm777 = vcmp.lt.f32.partialorder %v776, 0.0004427343
        %v778 = vsel %vm777, %v775, %v772
        %v779 = vadd.f32 %v562, 1.0
        %v780 = vlog2.pop %v779
        %v781 = vmul.f32 %v780, 0.6931472
        %v782 = vmul.f32 -0.5, %v562
        %v783 = vadd.f32 %v782, 1.0
        %v784 = vmul.f32 %v783, %v562
        %v785 = vand.u32 2147483647, %v562
        %vm786 = vcmp.lt.f32.partialorder %v785, 0.0004427343
        %v787 = vsel %vm786, %v784, %v781
        %v788 = vadd.f32 %v564, 1.0
        %v789 = vlog2.pop %v788
        %v790 = vmul.f32 %v789, 0.6931472
        %v791 = vmul.f32 -0.5, %v564
        %v792 = vadd.f32 %v791, 1.0
        %v793 = vmul.f32 %v792, %v564
        %v794 = vand.u32 2147483647, %v564
        %vm795 = vcmp.lt.f32.partialorder %v794, 0.0004427343
        %v796 = vsel %vm795, %v793, %v790
        %v797 = vadd.f32 %v566, 1.0
        %v798 = vlog2.pop %v797
        %v799 = vmul.f32 %v798, 0.6931472
        %v800 = vmul.f32 -0.5, %v566
        %v801 = vadd.f32 %v800, 1.0
        %v802 = vmul.f32 %v801, %v566
        %v803 = vand.u32 2147483647, %v566
        %vm804 = vcmp.lt.f32.partialorder %v803, 0.0004427343
        %v805 = vsel %vm804, %v802, %v799
        %v806 = vadd.f32 %v568, 1.0
        %v807 = vlog2.pop %v806
        %v808 = vmul.f32 %v807, 0.6931472
        %v809 = vmul.f32 -0.5, %v568
        %v810 = vadd.f32 %v809, 1.0
        %v811 = vmul.f32 %v810, %v568
        %v812 = vand.u32 2147483647, %v568
        %vm813 = vcmp.lt.f32.partialorder %v812, 0.0004427343
        %v814 = vsel %vm813, %v811, %v808
        %v815 = vadd.f32 %v570, 1.0
        %v816 = vlog2.pop %v815
        %v817 = vmul.f32 %v816, 0.6931472
        %v818 = vmul.f32 -0.5, %v570
        %v819 = vadd.f32 %v818, 1.0
        %v820 = vmul.f32 %v819, %v570
        %v821 = vand.u32 2147483647, %v570
        %vm822 = vcmp.lt.f32.partialorder %v821, 0.0004427343
        %v823 = vsel %vm822, %v820, %v817
        %v824 = vadd.f32 %v572, 1.0
        %v825 = vlog2.pop %v824
        %v826 = vmul.f32 %v825, 0.6931472
        %v827 = vmul.f32 -0.5, %v572
        %v828 = vadd.f32 %v827, 1.0
        %v829 = vmul.f32 %v828, %v572
        %v830 = vand.u32 2147483647, %v572
        %vm831 = vcmp.lt.f32.partialorder %v830, 0.0004427343
        %v832 = vsel %vm831, %v829, %v826
        %v833 = vadd.f32 %v574, 1.0
        %v834 = vlog2.pop %v833
        %v835 = vmul.f32 %v834, 0.6931472
        %v836 = vmul.f32 -0.5, %v574
        %v837 = vadd.f32 %v836, 1.0
        %v838 = vmul.f32 %v837, %v574
        %v839 = vand.u32 2147483647, %v574
        %vm840 = vcmp.lt.f32.partialorder %v839, 0.0004427343
        %v841 = vsel %vm840, %v838, %v835
        %v842 = vadd.f32 %v576, 1.0
        %v843 = vlog2.pop %v842
        %v844 = vmul.f32 %v843, 0.6931472
        %v845 = vmul.f32 -0.5, %v576
        %v846 = vadd.f32 %v845, 1.0
        %v847 = vmul.f32 %v846, %v576
        %v848 = vand.u32 2147483647, %v576
        %vm849 = vcmp.lt.f32.partialorder %v848, 0.0004427343
        %v850 = vsel %vm849, %v847, %v844
        %v851 = vadd.f32 %v578, 1.0
        %v852 = vlog2.pop %v851
        %v853 = vmul.f32 %v852, 0.6931472
        %v854 = vmul.f32 -0.5, %v578
        %v855 = vadd.f32 %v854, 1.0
        %v856 = vmul.f32 %v855, %v578
        %v857 = vand.u32 2147483647, %v578
        %vm858 = vcmp.lt.f32.partialorder %v857, 0.0004427343
        %v859 = vsel %vm858, %v856, %v853
        %v860 = vadd.f32 %v580, 1.0
        %v861 = vlog2.pop %v860
        %v862 = vmul.f32 %v861, 0.6931472
        %v863 = vmul.f32 -0.5, %v580
        %v864 = vadd.f32 %v863, 1.0
        %v865 = vmul.f32 %v864, %v580
        %v866 = vand.u32 2147483647, %v580
        %vm867 = vcmp.lt.f32.partialorder %v866, 0.0004427343
        %v868 = vsel %vm867, %v865, %v862
        %v869 = vsel %vm485, %v271, %v589
        %v870 = vsel %vm486, %v300, %v598
        %v871 = vsel %vm487, %v329, %v607
        %v872 = vsel %vm488, %v358, %v616
        %v873 = vsel %vm489, %v387, %v625
        %v874 = vsel %vm490, %v416, %v634
        %v875 = vsel %vm491, %v445, %v643
        %v876 = vsel %vm492, %v474, %v652
        %v877 = vsel %vm493, %v274, %v661
        %v878 = vsel %vm494, %v303, %v670
        %v879 = vsel %vm495, %v332, %v679
        %v880 = vsel %vm496, %v361, %v688
        %v881 = vsel %vm497, %v390, %v697
        %v882 = vsel %vm498, %v419, %v706
        %v883 = vsel %vm499, %v448, %v715
        %v884 = vsel %vm500, %v477, %v724
        %v885 = vsel %vm501, %v277, %v733
        %v886 = vsel %vm502, %v306, %v742
        %v887 = vsel %vm503, %v335, %v751
        %v888 = vsel %vm504, %v364, %v760
        %v889 = vsel %vm505, %v393, %v769
        %v890 = vsel %vm506, %v422, %v778
        %v891 = vsel %vm507, %v451, %v787
        %v892 = vsel %vm508, %v480, %v796
        %v893 = vsel %vm509, %v280, %v805
        %v894 = vsel %vm510, %v309, %v814
        %v895 = vsel %vm511, %v338, %v823
        %v896 = vsel %vm512, %v367, %v832
        %v897 = vsel %vm513, %v396, %v841
        %v898 = vsel %vm514, %v425, %v850
        %v899 = vsel %vm515, %v454, %v859
        %v900 = vsel %vm516, %v483, %v868
        %v901 = vld [vmem:[%s1 + $0x20] sm:$0xff]
        %v902 = vld [vmem:[%s1 + $0x28] sm:$0xff]
        %v903 = vld [vmem:[%s1 + $0x30] sm:$0xff]
        %v904 = vld [vmem:[%s1 + $0x38] sm:$0xff]
        %v905 = vld [vmem:[%s2 + $0x20] sm:$0xff]
        %v906 = vld [vmem:[%s2 + $0x28] sm:$0xff]
        %v907 = vld [vmem:[%s2 + $0x30] sm:$0xff]
        %v908 = vld [vmem:[%s2 + $0x38] sm:$0xff]
        %910 = vset.pattern.permute.xlu0 0
        %911 = vperm.xlu0 %910, %v905
        %v912 = vpop.permute.xlu0 %911
        %915 = vset.pattern.permute.xlu0 0
        %916 = vperm.xlu0 %915, %v906
        %v917 = vpop.permute.xlu0 %916
        %920 = vset.pattern.permute.xlu0 0
        %921 = vperm.xlu0 %920, %v907
        %v922 = vpop.permute.xlu0 %921
        %925 = vset.pattern.permute.xlu0 0
        %926 = vperm.xlu0 %925, %v908
        %v927 = vpop.permute.xlu0 %926
        %vm929 = vcmask 261120
        %v931 = vsel %vm929, %v901, 0
        %v934 = vsel %vm929, %v902, 0
        %v937 = vsel %vm929, %v903, 0
        %v940 = vsel %vm929, %v904, 0
        %942 = vmatpush.msra.mxu0 0.0
        %943 = vmatpush.msra.mxu0 0.0
        %944 = vmatpush.msra.mxu0 0.0
        %945 = vmatpush.msra.mxu0 0.0
        %946 = vmatpush.msra.mxu0 0.0
        %947 = vmatpush.msra.mxu0 0.0
        %948 = vmatpush.msra.mxu0 0.0
        %949 = vmatpush.msra.mxu0 0.0
        %950 = vmatpush.msra.mxu0 0.0
        %951 = vmatpush.msra.mxu0 0.0
        %952 = vmatpush.msra.mxu0 0.0
        %953 = vmatpush.msra.mxu0 0.0
        %954 = vmatpush.msra.mxu0 %v893
        %955 = vmatpush.msra.mxu0 %v885
        %956 = vmatpush.msra.mxu0 %v877
        %957 = vmatpush.msra.mxu0 %v869
        %958 = vmatmul.f32.gmra.mxu0 %v931
        %v959 = vpop.f32.mrf.mxu0
        %v960 = vadd.f32 %v912, %v959
        %961 = vmatmul.f32.gmra.mxu0 %v934
        %v962 = vpop.f32.mrf.mxu0
        %v963 = vadd.f32 %v917, %v962
        %964 = vmatmul.f32.gmra.mxu0 %v937
        %v965 = vpop.f32.mrf.mxu0
        %v966 = vadd.f32 %v922, %v965
        %967 = vmatmul.f32.gmra.mxu0 %v940
        %v968 = vpop.f32.mrf.mxu0
        %v969 = vadd.f32 %v927, %v968
        %970 = vdwg.mxu0
        %971 = vmatpush.msra.mxu0 0.0
        %972 = vmatpush.msra.mxu0 0.0
        %973 = vmatpush.msra.mxu0 0.0
        %974 = vmatpush.msra.mxu0 0.0
        %975 = vmatpush.msra.mxu0 0.0
        %976 = vmatpush.msra.mxu0 0.0
        %977 = vmatpush.msra.mxu0 0.0
        %978 = vmatpush.msra.mxu0 0.0
        %979 = vmatpush.msra.mxu0 0.0
        %980 = vmatpush.msra.mxu0 0.0
        %981 = vmatpush.msra.mxu0 0.0
        %982 = vmatpush.msra.mxu0 0.0
        %983 = vmatpush.msra.mxu0 %v894
        %984 = vmatpush.msra.mxu0 %v886
        %985 = vmatpush.msra.mxu0 %v878
        %986 = vmatpush.msra.mxu0 %v870
        %987 = vmatmul.f32.gmra.mxu0 %v931
        %v988 = vpop.f32.mrf.mxu0
        %v989 = vadd.f32 %v912, %v988
        %990 = vmatmul.f32.gmra.mxu0 %v934
        %v991 = vpop.f32.mrf.mxu0
        %v992 = vadd.f32 %v917, %v991
        %993 = vmatmul.f32.gmra.mxu0 %v937
        %v994 = vpop.f32.mrf.mxu0
        %v995 = vadd.f32 %v922, %v994
        %996 = vmatmul.f32.gmra.mxu0 %v940
        %v997 = vpop.f32.mrf.mxu0
        %v998 = vadd.f32 %v927, %v997
        %999 = vdwg.mxu0
        %1000 = vmatpush.msra.mxu0 0.0
        %1001 = vmatpush.msra.mxu0 0.0
        %1002 = vmatpush.msra.mxu0 0.0
        %1003 = vmatpush.msra.mxu0 0.0
        %1004 = vmatpush.msra.mxu0 0.0
        %1005 = vmatpush.msra.mxu0 0.0
        %1006 = vmatpush.msra.mxu0 0.0
        %1007 = vmatpush.msra.mxu0 0.0
        %1008 = vmatpush.msra.mxu0 0.0
        %1009 = vmatpush.msra.mxu0 0.0
        %1010 = vmatpush.msra.mxu0 0.0
        %1011 = vmatpush.msra.mxu0 0.0
        %1012 = vmatpush.msra.mxu0 %v895
        %1013 = vmatpush.msra.mxu0 %v887
        %1014 = vmatpush.msra.mxu0 %v879
        %1015 = vmatpush.msra.mxu0 %v871
        %1016 = vmatmul.f32.gmra.mxu0 %v931
        %v1017 = vpop.f32.mrf.mxu0
        %v1018 = vadd.f32 %v912, %v1017
        %1019 = vmatmul.f32.gmra.mxu0 %v934
        %v1020 = vpop.f32.mrf.mxu0
        %v1021 = vadd.f32 %v917, %v1020
        %1022 = vmatmul.f32.gmra.mxu0 %v937
        %v1023 = vpop.f32.mrf.mxu0
        %v1024 = vadd.f32 %v922, %v1023
        %1025 = vmatmul.f32.gmra.mxu0 %v940
        %v1026 = vpop.f32.mrf.mxu0
        %v1027 = vadd.f32 %v927, %v1026
        %1028 = vdwg.mxu0
        %1029 = vmatpush.msra.mxu0 0.0
        %1030 = vmatpush.msra.mxu0 0.0
        %1031 = vmatpush.msra.mxu0 0.0
        %1032 = vmatpush.msra.mxu0 0.0
        %1033 = vmatpush.msra.mxu0 0.0
        %1034 = vmatpush.msra.mxu0 0.0
        %1035 = vmatpush.msra.mxu0 0.0
        %1036 = vmatpush.msra.mxu0 0.0
        %1037 = vmatpush.msra.mxu0 0.0
        %1038 = vmatpush.msra.mxu0 0.0
        %1039 = vmatpush.msra.mxu0 0.0
        %1040 = vmatpush.msra.mxu0 0.0
        %1041 = vmatpush.msra.mxu0 %v896
        %1042 = vmatpush.msra.mxu0 %v888
        %1043 = vmatpush.msra.mxu0 %v880
        %1044 = vmatpush.msra.mxu0 %v872
        %1045 = vmatmul.f32.gmra.mxu0 %v931
        %v1046 = vpop.f32.mrf.mxu0
        %v1047 = vadd.f32 %v912, %v1046
        %1048 = vmatmul.f32.gmra.mxu0 %v934
        %v1049 = vpop.f32.mrf.mxu0
        %v1050 = vadd.f32 %v917, %v1049
        %1051 = vmatmul.f32.gmra.mxu0 %v937
        %v1052 = vpop.f32.mrf.mxu0
        %v1053 = vadd.f32 %v922, %v1052
        %1054 = vmatmul.f32.gmra.mxu0 %v940
        %v1055 = vpop.f32.mrf.mxu0
        %v1056 = vadd.f32 %v927, %v1055
        %1057 = vdwg.mxu0
        %1058 = vmatpush.msra.mxu0 0.0
        %1059 = vmatpush.msra.mxu0 0.0
        %1060 = vmatpush.msra.mxu0 0.0
        %1061 = vmatpush.msra.mxu0 0.0
        %1062 = vmatpush.msra.mxu0 0.0
        %1063 = vmatpush.msra.mxu0 0.0
        %1064 = vmatpush.msra.mxu0 0.0
        %1065 = vmatpush.msra.mxu0 0.0
        %1066 = vmatpush.msra.mxu0 0.0
        %1067 = vmatpush.msra.mxu0 0.0
        %1068 = vmatpush.msra.mxu0 0.0
        %1069 = vmatpush.msra.mxu0 0.0
        %1070 = vmatpush.msra.mxu0 %v897
        %1071 = vmatpush.msra.mxu0 %v889
        %1072 = vmatpush.msra.mxu0 %v881
        %1073 = vmatpush.msra.mxu0 %v873
        %1074 = vmatmul.f32.gmra.mxu0 %v931
        %v1075 = vpop.f32.mrf.mxu0
        %v1076 = vadd.f32 %v912, %v1075
        %1077 = vmatmul.f32.gmra.mxu0 %v934
        %v1078 = vpop.f32.mrf.mxu0
        %v1079 = vadd.f32 %v917, %v1078
        %1080 = vmatmul.f32.gmra.mxu0 %v937
        %v1081 = vpop.f32.mrf.mxu0
        %v1082 = vadd.f32 %v922, %v1081
        %1083 = vmatmul.f32.gmra.mxu0 %v940
        %v1084 = vpop.f32.mrf.mxu0
        %v1085 = vadd.f32 %v927, %v1084
        %1086 = vdwg.mxu0
        %1087 = vmatpush.msra.mxu0 0.0
        %1088 = vmatpush.msra.mxu0 0.0
        %1089 = vmatpush.msra.mxu0 0.0
        %1090 = vmatpush.msra.mxu0 0.0
        %1091 = vmatpush.msra.mxu0 0.0
        %1092 = vmatpush.msra.mxu0 0.0
        %1093 = vmatpush.msra.mxu0 0.0
        %1094 = vmatpush.msra.mxu0 0.0
        %1095 = vmatpush.msra.mxu0 0.0
        %1096 = vmatpush.msra.mxu0 0.0
        %1097 = vmatpush.msra.mxu0 0.0
        %1098 = vmatpush.msra.mxu0 0.0
        %1099 = vmatpush.msra.mxu0 %v898
        %1100 = vmatpush.msra.mxu0 %v890
        %1101 = vmatpush.msra.mxu0 %v882
        %1102 = vmatpush.msra.mxu0 %v874
        %1103 = vmatmul.f32.gmra.mxu0 %v931
        %v1104 = vpop.f32.mrf.mxu0
        %v1105 = vadd.f32 %v912, %v1104
        %1106 = vmatmul.f32.gmra.mxu0 %v934
        %v1107 = vpop.f32.mrf.mxu0
        %v1108 = vadd.f32 %v917, %v1107
        %1109 = vmatmul.f32.gmra.mxu0 %v937
        %v1110 = vpop.f32.mrf.mxu0
        %v1111 = vadd.f32 %v922, %v1110
        %1112 = vmatmul.f32.gmra.mxu0 %v940
        %v1113 = vpop.f32.mrf.mxu0
        %v1114 = vadd.f32 %v927, %v1113
        %1115 = vdwg.mxu0
        %1116 = vmatpush.msra.mxu0 0.0
        %1117 = vmatpush.msra.mxu0 0.0
        %1118 = vmatpush.msra.mxu0 0.0
        %1119 = vmatpush.msra.mxu0 0.0
        %1120 = vmatpush.msra.mxu0 0.0
        %1121 = vmatpush.msra.mxu0 0.0
        %1122 = vmatpush.msra.mxu0 0.0
        %1123 = vmatpush.msra.mxu0 0.0
        %1124 = vmatpush.msra.mxu0 0.0
        %1125 = vmatpush.msra.mxu0 0.0
        %1126 = vmatpush.msra.mxu0 0.0
        %1127 = vmatpush.msra.mxu0 0.0
        %1128 = vmatpush.msra.mxu0 %v899
        %1129 = vmatpush.msra.mxu0 %v891
        %1130 = vmatpush.msra.mxu0 %v883
        %1131 = vmatpush.msra.mxu0 %v875
        %1132 = vmatmul.f32.gmra.mxu0 %v931
        %v1133 = vpop.f32.mrf.mxu0
        %v1134 = vadd.f32 %v912, %v1133
        %1135 = vmatmul.f32.gmra.mxu0 %v934
        %v1136 = vpop.f32.mrf.mxu0
        %v1137 = vadd.f32 %v917, %v1136
        %1138 = vmatmul.f32.gmra.mxu0 %v937
        %v1139 = vpop.f32.mrf.mxu0
        %v1140 = vadd.f32 %v922, %v1139
        %1141 = vmatmul.f32.gmra.mxu0 %v940
        %v1142 = vpop.f32.mrf.mxu0
        %v1143 = vadd.f32 %v927, %v1142
        %1144 = vdwg.mxu0
        %1145 = vmatpush.msra.mxu0 0.0
        %1146 = vmatpush.msra.mxu0 0.0
        %1147 = vmatpush.msra.mxu0 0.0
        %1148 = vmatpush.msra.mxu0 0.0
        %1149 = vmatpush.msra.mxu0 0.0
        %1150 = vmatpush.msra.mxu0 0.0
        %1151 = vmatpush.msra.mxu0 0.0
        %1152 = vmatpush.msra.mxu0 0.0
        %1153 = vmatpush.msra.mxu0 0.0
        %1154 = vmatpush.msra.mxu0 0.0
        %1155 = vmatpush.msra.mxu0 0.0
        %1156 = vmatpush.msra.mxu0 0.0
        %1157 = vmatpush.msra.mxu0 %v900
        %1158 = vmatpush.msra.mxu0 %v892
        %1159 = vmatpush.msra.mxu0 %v884
        %1160 = vmatpush.msra.mxu0 %v876
        %1161 = vmatmul.f32.gmra.mxu0 %v931
        %v1162 = vpop.f32.mrf.mxu0
        %v1163 = vadd.f32 %v912, %v1162
        %1164 = vmatmul.f32.gmra.mxu0 %v934
        %v1165 = vpop.f32.mrf.mxu0
        %v1166 = vadd.f32 %v917, %v1165
        %1167 = vmatmul.f32.gmra.mxu0 %v937
        %v1168 = vpop.f32.mrf.mxu0
        %v1169 = vadd.f32 %v922, %v1168
        %1170 = vmatmul.f32.gmra.mxu0 %v940
        %v1171 = vpop.f32.mrf.mxu0
        %v1172 = vadd.f32 %v927, %v1171
        %1173 = vdwg.mxu0
        %vm1174 = vcmp.gt.f32.partialorder %v960, 20.0
        %vm1175 = vcmp.gt.f32.partialorder %v989, 20.0
        %vm1176 = vcmp.gt.f32.partialorder %v1018, 20.0
        %vm1177 = vcmp.gt.f32.partialorder %v1047, 20.0
        %vm1178 = vcmp.gt.f32.partialorder %v1076, 20.0
        %vm1179 = vcmp.gt.f32.partialorder %v1105, 20.0
        %vm1180 = vcmp.gt.f32.partialorder %v1134, 20.0
        %vm1181 = vcmp.gt.f32.partialorder %v1163, 20.0
        %vm1182 = vcmp.gt.f32.partialorder %v963, 20.0
        %vm1183 = vcmp.gt.f32.partialorder %v992, 20.0
        %vm1184 = vcmp.gt.f32.partialorder %v1021, 20.0
        %vm1185 = vcmp.gt.f32.partialorder %v1050, 20.0
        %vm1186 = vcmp.gt.f32.partialorder %v1079, 20.0
        %vm1187 = vcmp.gt.f32.partialorder %v1108, 20.0
        %vm1188 = vcmp.gt.f32.partialorder %v1137, 20.0
        %vm1189 = vcmp.gt.f32.partialorder %v1166, 20.0
        %vm1190 = vcmp.gt.f32.partialorder %v966, 20.0
        %vm1191 = vcmp.gt.f32.partialorder %v995, 20.0
        %vm1192 = vcmp.gt.f32.partialorder %v1024, 20.0
        %vm1193 = vcmp.gt.f32.partialorder %v1053, 20.0
        %vm1194 = vcmp.gt.f32.partialorder %v1082, 20.0
        %vm1195 = vcmp.gt.f32.partialorder %v1111, 20.0
        %vm1196 = vcmp.gt.f32.partialorder %v1140, 20.0
        %vm1197 = vcmp.gt.f32.partialorder %v1169, 20.0
        %vm1198 = vcmp.gt.f32.partialorder %v969, 20.0
        %vm1199 = vcmp.gt.f32.partialorder %v998, 20.0
        %vm1200 = vcmp.gt.f32.partialorder %v1027, 20.0
        %vm1201 = vcmp.gt.f32.partialorder %v1056, 20.0
        %vm1202 = vcmp.gt.f32.partialorder %v1085, 20.0
        %vm1203 = vcmp.gt.f32.partialorder %v1114, 20.0
        %vm1204 = vcmp.gt.f32.partialorder %v1143, 20.0
        %vm1205 = vcmp.gt.f32.partialorder %v1172, 20.0
        %v1206 = vmul.f32 %v960, 1.442695
        %v1207 = vpow.pop %v1206
        %v1208 = vmul.f32 %v989, 1.442695
        %v1209 = vpow.pop %v1208
        %v1210 = vmul.f32 %v1018, 1.442695
        %v1211 = vpow.pop %v1210
        %v1212 = vmul.f32 %v1047, 1.442695
        %v1213 = vpow.pop %v1212
        %v1214 = vmul.f32 %v1076, 1.442695
        %v1215 = vpow.pop %v1214
        %v1216 = vmul.f32 %v1105, 1.442695
        %v1217 = vpow.pop %v1216
        %v1218 = vmul.f32 %v1134, 1.442695
        %v1219 = vpow.pop %v1218
        %v1220 = vmul.f32 %v1163, 1.442695
        %v1221 = vpow.pop %v1220
        %v1222 = vmul.f32 %v963, 1.442695
        %v1223 = vpow.pop %v1222
        %v1224 = vmul.f32 %v992, 1.442695
        %v1225 = vpow.pop %v1224
        %v1226 = vmul.f32 %v1021, 1.442695
        %v1227 = vpow.pop %v1226
        %v1228 = vmul.f32 %v1050, 1.442695
        %v1229 = vpow.pop %v1228
        %v1230 = vmul.f32 %v1079, 1.442695
        %v1231 = vpow.pop %v1230
        %v1232 = vmul.f32 %v1108, 1.442695
        %v1233 = vpow.pop %v1232
        %v1234 = vmul.f32 %v1137, 1.442695
        %v1235 = vpow.pop %v1234
        %v1236 = vmul.f32 %v1166, 1.442695
        %v1237 = vpow.pop %v1236
        %v1238 = vmul.f32 %v966, 1.442695
        %v1239 = vpow.pop %v1238
        %v1240 = vmul.f32 %v995, 1.442695
        %v1241 = vpow.pop %v1240
        %v1242 = vmul.f32 %v1024, 1.442695
        %v1243 = vpow.pop %v1242
        %v1244 = vmul.f32 %v1053, 1.442695
        %v1245 = vpow.pop %v1244
        %v1246 = vmul.f32 %v1082, 1.442695
        %v1247 = vpow.pop %v1246
        %v1248 = vmul.f32 %v1111, 1.442695
        %v1249 = vpow.pop %v1248
        %v1250 = vmul.f32 %v1140, 1.442695
        %v1251 = vpow.pop %v1250
        %v1252 = vmul.f32 %v1169, 1.442695
        %v1253 = vpow.pop %v1252
        %v1254 = vmul.f32 %v969, 1.442695
        %v1255 = vpow.pop %v1254
        %v1256 = vmul.f32 %v998, 1.442695
        %v1257 = vpow.pop %v1256
        %v1258 = vmul.f32 %v1027, 1.442695
        %v1259 = vpow.pop %v1258
        %v1260 = vmul.f32 %v1056, 1.442695
        %v1261 = vpow.pop %v1260
        %v1262 = vmul.f32 %v1085, 1.442695
        %v1263 = vpow.pop %v1262
        %v1264 = vmul.f32 %v1114, 1.442695
        %v1265 = vpow.pop %v1264
        %v1266 = vmul.f32 %v1143, 1.442695
        %v1267 = vpow.pop %v1266
        %v1268 = vmul.f32 %v1172, 1.442695
        %v1269 = vpow.pop %v1268
        %v1270 = vadd.f32 %v1207, 1.0
        %v1271 = vlog2.pop %v1270
        %v1272 = vmul.f32 %v1271, 0.6931472
        %v1273 = vmul.f32 -0.5, %v1207
        %v1274 = vadd.f32 %v1273, 1.0
        %v1275 = vmul.f32 %v1274, %v1207
        %v1276 = vand.u32 2147483647, %v1207
        %vm1277 = vcmp.lt.f32.partialorder %v1276, 0.0004427343
        %v1278 = vsel %vm1277, %v1275, %v1272
        %v1279 = vadd.f32 %v1209, 1.0
        %v1280 = vlog2.pop %v1279
        %v1281 = vmul.f32 %v1280, 0.6931472
        %v1282 = vmul.f32 -0.5, %v1209
        %v1283 = vadd.f32 %v1282, 1.0
        %v1284 = vmul.f32 %v1283, %v1209
        %v1285 = vand.u32 2147483647, %v1209
        %vm1286 = vcmp.lt.f32.partialorder %v1285, 0.0004427343
        %v1287 = vsel %vm1286, %v1284, %v1281
        %v1288 = vadd.f32 %v1211, 1.0
        %v1289 = vlog2.pop %v1288
        %v1290 = vmul.f32 %v1289, 0.6931472
        %v1291 = vmul.f32 -0.5, %v1211
        %v1292 = vadd.f32 %v1291, 1.0
        %v1293 = vmul.f32 %v1292, %v1211
        %v1294 = vand.u32 2147483647, %v1211
        %vm1295 = vcmp.lt.f32.partialorder %v1294, 0.0004427343
        %v1296 = vsel %vm1295, %v1293, %v1290
        %v1297 = vadd.f32 %v1213, 1.0
        %v1298 = vlog2.pop %v1297
        %v1299 = vmul.f32 %v1298, 0.6931472
        %v1300 = vmul.f32 -0.5, %v1213
        %v1301 = vadd.f32 %v1300, 1.0
        %v1302 = vmul.f32 %v1301, %v1213
        %v1303 = vand.u32 2147483647, %v1213
        %vm1304 = vcmp.lt.f32.partialorder %v1303, 0.0004427343
        %v1305 = vsel %vm1304, %v1302, %v1299
        %v1306 = vadd.f32 %v1215, 1.0
        %v1307 = vlog2.pop %v1306
        %v1308 = vmul.f32 %v1307, 0.6931472
        %v1309 = vmul.f32 -0.5, %v1215
        %v1310 = vadd.f32 %v1309, 1.0
        %v1311 = vmul.f32 %v1310, %v1215
        %v1312 = vand.u32 2147483647, %v1215
        %vm1313 = vcmp.lt.f32.partialorder %v1312, 0.0004427343
        %v1314 = vsel %vm1313, %v1311, %v1308
        %v1315 = vadd.f32 %v1217, 1.0
        %v1316 = vlog2.pop %v1315
        %v1317 = vmul.f32 %v1316, 0.6931472
        %v1318 = vmul.f32 -0.5, %v1217
        %v1319 = vadd.f32 %v1318, 1.0
        %v1320 = vmul.f32 %v1319, %v1217
        %v1321 = vand.u32 2147483647, %v1217
        %vm1322 = vcmp.lt.f32.partialorder %v1321, 0.0004427343
        %v1323 = vsel %vm1322, %v1320, %v1317
        %v1324 = vadd.f32 %v1219, 1.0
        %v1325 = vlog2.pop %v1324
        %v1326 = vmul.f32 %v1325, 0.6931472
        %v1327 = vmul.f32 -0.5, %v1219
        %v1328 = vadd.f32 %v1327, 1.0
        %v1329 = vmul.f32 %v1328, %v1219
        %v1330 = vand.u32 2147483647, %v1219
        %vm1331 = vcmp.lt.f32.partialorder %v1330, 0.0004427343
        %v1332 = vsel %vm1331, %v1329, %v1326
        %v1333 = vadd.f32 %v1221, 1.0
        %v1334 = vlog2.pop %v1333
        %v1335 = vmul.f32 %v1334, 0.6931472
        %v1336 = vmul.f32 -0.5, %v1221
        %v1337 = vadd.f32 %v1336, 1.0
        %v1338 = vmul.f32 %v1337, %v1221
        %v1339 = vand.u32 2147483647, %v1221
        %vm1340 = vcmp.lt.f32.partialorder %v1339, 0.0004427343
        %v1341 = vsel %vm1340, %v1338, %v1335
        %v1342 = vadd.f32 %v1223, 1.0
        %v1343 = vlog2.pop %v1342
        %v1344 = vmul.f32 %v1343, 0.6931472
        %v1345 = vmul.f32 -0.5, %v1223
        %v1346 = vadd.f32 %v1345, 1.0
        %v1347 = vmul.f32 %v1346, %v1223
        %v1348 = vand.u32 2147483647, %v1223
        %vm1349 = vcmp.lt.f32.partialorder %v1348, 0.0004427343
        %v1350 = vsel %vm1349, %v1347, %v1344
        %v1351 = vadd.f32 %v1225, 1.0
        %v1352 = vlog2.pop %v1351
        %v1353 = vmul.f32 %v1352, 0.6931472
        %v1354 = vmul.f32 -0.5, %v1225
        %v1355 = vadd.f32 %v1354, 1.0
        %v1356 = vmul.f32 %v1355, %v1225
        %v1357 = vand.u32 2147483647, %v1225
        %vm1358 = vcmp.lt.f32.partialorder %v1357, 0.0004427343
        %v1359 = vsel %vm1358, %v1356, %v1353
        %v1360 = vadd.f32 %v1227, 1.0
        %v1361 = vlog2.pop %v1360
        %v1362 = vmul.f32 %v1361, 0.6931472
        %v1363 = vmul.f32 -0.5, %v1227
        %v1364 = vadd.f32 %v1363, 1.0
        %v1365 = vmul.f32 %v1364, %v1227
        %v1366 = vand.u32 2147483647, %v1227
        %vm1367 = vcmp.lt.f32.partialorder %v1366, 0.0004427343
        %v1368 = vsel %vm1367, %v1365, %v1362
        %v1369 = vadd.f32 %v1229, 1.0
        %v1370 = vlog2.pop %v1369
        %v1371 = vmul.f32 %v1370, 0.6931472
        %v1372 = vmul.f32 -0.5, %v1229
        %v1373 = vadd.f32 %v1372, 1.0
        %v1374 = vmul.f32 %v1373, %v1229
        %v1375 = vand.u32 2147483647, %v1229
        %vm1376 = vcmp.lt.f32.partialorder %v1375, 0.0004427343
        %v1377 = vsel %vm1376, %v1374, %v1371
        %v1378 = vadd.f32 %v1231, 1.0
        %v1379 = vlog2.pop %v1378
        %v1380 = vmul.f32 %v1379, 0.6931472
        %v1381 = vmul.f32 -0.5, %v1231
        %v1382 = vadd.f32 %v1381, 1.0
        %v1383 = vmul.f32 %v1382, %v1231
        %v1384 = vand.u32 2147483647, %v1231
        %vm1385 = vcmp.lt.f32.partialorder %v1384, 0.0004427343
        %v1386 = vsel %vm1385, %v1383, %v1380
        %v1387 = vadd.f32 %v1233, 1.0
        %v1388 = vlog2.pop %v1387
        %v1389 = vmul.f32 %v1388, 0.6931472
        %v1390 = vmul.f32 -0.5, %v1233
        %v1391 = vadd.f32 %v1390, 1.0
        %v1392 = vmul.f32 %v1391, %v1233
        %v1393 = vand.u32 2147483647, %v1233
        %vm1394 = vcmp.lt.f32.partialorder %v1393, 0.0004427343
        %v1395 = vsel %vm1394, %v1392, %v1389
        %v1396 = vadd.f32 %v1235, 1.0
        %v1397 = vlog2.pop %v1396
        %v1398 = vmul.f32 %v1397, 0.6931472
        %v1399 = vmul.f32 -0.5, %v1235
        %v1400 = vadd.f32 %v1399, 1.0
        %v1401 = vmul.f32 %v1400, %v1235
        %v1402 = vand.u32 2147483647, %v1235
        %vm1403 = vcmp.lt.f32.partialorder %v1402, 0.0004427343
        %v1404 = vsel %vm1403, %v1401, %v1398
        %v1405 = vadd.f32 %v1237, 1.0
        %v1406 = vlog2.pop %v1405
        %v1407 = vmul.f32 %v1406, 0.6931472
        %v1408 = vmul.f32 -0.5, %v1237
        %v1409 = vadd.f32 %v1408, 1.0
        %v1410 = vmul.f32 %v1409, %v1237
        %v1411 = vand.u32 2147483647, %v1237
        %vm1412 = vcmp.lt.f32.partialorder %v1411, 0.0004427343
        %v1413 = vsel %vm1412, %v1410, %v1407
        %v1414 = vadd.f32 %v1239, 1.0
        %v1415 = vlog2.pop %v1414
        %v1416 = vmul.f32 %v1415, 0.6931472
        %v1417 = vmul.f32 -0.5, %v1239
        %v1418 = vadd.f32 %v1417, 1.0
        %v1419 = vmul.f32 %v1418, %v1239
        %v1420 = vand.u32 2147483647, %v1239
        %vm1421 = vcmp.lt.f32.partialorder %v1420, 0.0004427343
        %v1422 = vsel %vm1421, %v1419, %v1416
        %v1423 = vadd.f32 %v1241, 1.0
        %v1424 = vlog2.pop %v1423
        %v1425 = vmul.f32 %v1424, 0.6931472
        %v1426 = vmul.f32 -0.5, %v1241
        %v1427 = vadd.f32 %v1426, 1.0
        %v1428 = vmul.f32 %v1427, %v1241
        %v1429 = vand.u32 2147483647, %v1241
        %vm1430 = vcmp.lt.f32.partialorder %v1429, 0.0004427343
        %v1431 = vsel %vm1430, %v1428, %v1425
        %v1432 = vadd.f32 %v1243, 1.0
        %v1433 = vlog2.pop %v1432
        %v1434 = vmul.f32 %v1433, 0.6931472
        %v1435 = vmul.f32 -0.5, %v1243
        %v1436 = vadd.f32 %v1435, 1.0
        %v1437 = vmul.f32 %v1436, %v1243
        %v1438 = vand.u32 2147483647, %v1243
        %vm1439 = vcmp.lt.f32.partialorder %v1438, 0.0004427343
        %v1440 = vsel %vm1439, %v1437, %v1434
        %v1441 = vadd.f32 %v1245, 1.0
        %v1442 = vlog2.pop %v1441
        %v1443 = vmul.f32 %v1442, 0.6931472
        %v1444 = vmul.f32 -0.5, %v1245
        %v1445 = vadd.f32 %v1444, 1.0
        %v1446 = vmul.f32 %v1445, %v1245
        %v1447 = vand.u32 2147483647, %v1245
        %vm1448 = vcmp.lt.f32.partialorder %v1447, 0.0004427343
        %v1449 = vsel %vm1448, %v1446, %v1443
        %v1450 = vadd.f32 %v1247, 1.0
        %v1451 = vlog2.pop %v1450
        %v1452 = vmul.f32 %v1451, 0.6931472
        %v1453 = vmul.f32 -0.5, %v1247
        %v1454 = vadd.f32 %v1453, 1.0
        %v1455 = vmul.f32 %v1454, %v1247
        %v1456 = vand.u32 2147483647, %v1247
        %vm1457 = vcmp.lt.f32.partialorder %v1456, 0.0004427343
        %v1458 = vsel %vm1457, %v1455, %v1452
        %v1459 = vadd.f32 %v1249, 1.0
        %v1460 = vlog2.pop %v1459
        %v1461 = vmul.f32 %v1460, 0.6931472
        %v1462 = vmul.f32 -0.5, %v1249
        %v1463 = vadd.f32 %v1462, 1.0
        %v1464 = vmul.f32 %v1463, %v1249
        %v1465 = vand.u32 2147483647, %v1249
        %vm1466 = vcmp.lt.f32.partialorder %v1465, 0.0004427343
        %v1467 = vsel %vm1466, %v1464, %v1461
        %v1468 = vadd.f32 %v1251, 1.0
        %v1469 = vlog2.pop %v1468
        %v1470 = vmul.f32 %v1469, 0.6931472
        %v1471 = vmul.f32 -0.5, %v1251
        %v1472 = vadd.f32 %v1471, 1.0
        %v1473 = vmul.f32 %v1472, %v1251
        %v1474 = vand.u32 2147483647, %v1251
        %vm1475 = vcmp.lt.f32.partialorder %v1474, 0.0004427343
        %v1476 = vsel %vm1475, %v1473, %v1470
        %v1477 = vadd.f32 %v1253, 1.0
        %v1478 = vlog2.pop %v1477
        %v1479 = vmul.f32 %v1478, 0.6931472
        %v1480 = vmul.f32 -0.5, %v1253
        %v1481 = vadd.f32 %v1480, 1.0
        %v1482 = vmul.f32 %v1481, %v1253
        %v1483 = vand.u32 2147483647, %v1253
        %vm1484 = vcmp.lt.f32.partialorder %v1483, 0.0004427343
        %v1485 = vsel %vm1484, %v1482, %v1479
        %v1486 = vadd.f32 %v1255, 1.0
        %v1487 = vlog2.pop %v1486
        %v1488 = vmul.f32 %v1487, 0.6931472
        %v1489 = vmul.f32 -0.5, %v1255
        %v1490 = vadd.f32 %v1489, 1.0
        %v1491 = vmul.f32 %v1490, %v1255
        %v1492 = vand.u32 2147483647, %v1255
        %vm1493 = vcmp.lt.f32.partialorder %v1492, 0.0004427343
        %v1494 = vsel %vm1493, %v1491, %v1488
        %v1495 = vadd.f32 %v1257, 1.0
        %v1496 = vlog2.pop %v1495
        %v1497 = vmul.f32 %v1496, 0.6931472
        %v1498 = vmul.f32 -0.5, %v1257
        %v1499 = vadd.f32 %v1498, 1.0
        %v1500 = vmul.f32 %v1499, %v1257
        %v1501 = vand.u32 2147483647, %v1257
        %vm1502 = vcmp.lt.f32.partialorder %v1501, 0.0004427343
        %v1503 = vsel %vm1502, %v1500, %v1497
        %v1504 = vadd.f32 %v1259, 1.0
        %v1505 = vlog2.pop %v1504
        %v1506 = vmul.f32 %v1505, 0.6931472
        %v1507 = vmul.f32 -0.5, %v1259
        %v1508 = vadd.f32 %v1507, 1.0
        %v1509 = vmul.f32 %v1508, %v1259
        %v1510 = vand.u32 2147483647, %v1259
        %vm1511 = vcmp.lt.f32.partialorder %v1510, 0.0004427343
        %v1512 = vsel %vm1511, %v1509, %v1506
        %v1513 = vadd.f32 %v1261, 1.0
        %v1514 = vlog2.pop %v1513
        %v1515 = vmul.f32 %v1514, 0.6931472
        %v1516 = vmul.f32 -0.5, %v1261
        %v1517 = vadd.f32 %v1516, 1.0
        %v1518 = vmul.f32 %v1517, %v1261
        %v1519 = vand.u32 2147483647, %v1261
        %vm1520 = vcmp.lt.f32.partialorder %v1519, 0.0004427343
        %v1521 = vsel %vm1520, %v1518, %v1515
        %v1522 = vadd.f32 %v1263, 1.0
        %v1523 = vlog2.pop %v1522
        %v1524 = vmul.f32 %v1523, 0.6931472
        %v1525 = vmul.f32 -0.5, %v1263
        %v1526 = vadd.f32 %v1525, 1.0
        %v1527 = vmul.f32 %v1526, %v1263
        %v1528 = vand.u32 2147483647, %v1263
        %vm1529 = vcmp.lt.f32.partialorder %v1528, 0.0004427343
        %v1530 = vsel %vm1529, %v1527, %v1524
        %v1531 = vadd.f32 %v1265, 1.0
        %v1532 = vlog2.pop %v1531
        %v1533 = vmul.f32 %v1532, 0.6931472
        %v1534 = vmul.f32 -0.5, %v1265
        %v1535 = vadd.f32 %v1534, 1.0
        %v1536 = vmul.f32 %v1535, %v1265
        %v1537 = vand.u32 2147483647, %v1265
        %vm1538 = vcmp.lt.f32.partialorder %v1537, 0.0004427343
        %v1539 = vsel %vm1538, %v1536, %v1533
        %v1540 = vadd.f32 %v1267, 1.0
        %v1541 = vlog2.pop %v1540
        %v1542 = vmul.f32 %v1541, 0.6931472
        %v1543 = vmul.f32 -0.5, %v1267
        %v1544 = vadd.f32 %v1543, 1.0
        %v1545 = vmul.f32 %v1544, %v1267
        %v1546 = vand.u32 2147483647, %v1267
        %vm1547 = vcmp.lt.f32.partialorder %v1546, 0.0004427343
        %v1548 = vsel %vm1547, %v1545, %v1542
        %v1549 = vadd.f32 %v1269, 1.0
        %v1550 = vlog2.pop %v1549
        %v1551 = vmul.f32 %v1550, 0.6931472
        %v1552 = vmul.f32 -0.5, %v1269
        %v1553 = vadd.f32 %v1552, 1.0
        %v1554 = vmul.f32 %v1553, %v1269
        %v1555 = vand.u32 2147483647, %v1269
        %vm1556 = vcmp.lt.f32.partialorder %v1555, 0.0004427343
        %v1557 = vsel %vm1556, %v1554, %v1551
        %v1558 = vsel %vm1174, %v960, %v1278
        %v1559 = vsel %vm1175, %v989, %v1287
        %v1560 = vsel %vm1176, %v1018, %v1296
        %v1561 = vsel %vm1177, %v1047, %v1305
        %v1562 = vsel %vm1178, %v1076, %v1314
        %v1563 = vsel %vm1179, %v1105, %v1323
        %v1564 = vsel %vm1180, %v1134, %v1332
        %v1565 = vsel %vm1181, %v1163, %v1341
        %v1566 = vsel %vm1182, %v963, %v1350
        %v1567 = vsel %vm1183, %v992, %v1359
        %v1568 = vsel %vm1184, %v1021, %v1368
        %v1569 = vsel %vm1185, %v1050, %v1377
        %v1570 = vsel %vm1186, %v1079, %v1386
        %v1571 = vsel %vm1187, %v1108, %v1395
        %v1572 = vsel %vm1188, %v1137, %v1404
        %v1573 = vsel %vm1189, %v1166, %v1413
        %v1574 = vsel %vm1190, %v966, %v1422
        %v1575 = vsel %vm1191, %v995, %v1431
        %v1576 = vsel %vm1192, %v1024, %v1440
        %v1577 = vsel %vm1193, %v1053, %v1449
        %v1578 = vsel %vm1194, %v1082, %v1458
        %v1579 = vsel %vm1195, %v1111, %v1467
        %v1580 = vsel %vm1196, %v1140, %v1476
        %v1581 = vsel %vm1197, %v1169, %v1485
        %v1582 = vsel %vm1198, %v969, %v1494
        %v1583 = vsel %vm1199, %v998, %v1503
        %v1584 = vsel %vm1200, %v1027, %v1512
        %v1585 = vsel %vm1201, %v1056, %v1521
        %v1586 = vsel %vm1202, %v1085, %v1530
        %v1587 = vsel %vm1203, %v1114, %v1539
        %v1588 = vsel %vm1204, %v1143, %v1548
        %v1589 = vsel %vm1205, %v1172, %v1557
        %v1590 = vld [vmem:[%s1 + $0x40] sm:$0xff]
        %v1591 = vld [vmem:[%s1 + $0x48] sm:$0xff]
        %v1592 = vld [vmem:[%s1 + $0x50] sm:$0xff]
        %v1593 = vld [vmem:[%s1 + $0x58] sm:$0xff]
        %v1594 = vld [vmem:[%s2 + $0x40] sm:$0xff]
        %v1595 = vld [vmem:[%s2 + $0x48] sm:$0xff]
        %v1596 = vld [vmem:[%s2 + $0x50] sm:$0xff]
        %v1597 = vld [vmem:[%s2 + $0x58] sm:$0xff]
        %1599 = vset.pattern.permute.xlu0 0
        %1600 = vperm.xlu0 %1599, %v1594
        %v1601 = vpop.permute.xlu0 %1600
        %1604 = vset.pattern.permute.xlu0 0
        %1605 = vperm.xlu0 %1604, %v1595
        %v1606 = vpop.permute.xlu0 %1605
        %1609 = vset.pattern.permute.xlu0 0
        %1610 = vperm.xlu0 %1609, %v1596
        %v1611 = vpop.permute.xlu0 %1610
        %1614 = vset.pattern.permute.xlu0 0
        %1615 = vperm.xlu0 %1614, %v1597
        %v1616 = vpop.permute.xlu0 %1615
        %v1619 = vsel %vm929, %v1590, 0
        %v1622 = vsel %vm929, %v1591, 0
        %v1625 = vsel %vm929, %v1592, 0
        %v1628 = vsel %vm929, %v1593, 0
        %1630 = vmatpush.msra.mxu0 0.0
        %1631 = vmatpush.msra.mxu0 0.0
        %1632 = vmatpush.msra.mxu0 0.0
        %1633 = vmatpush.msra.mxu0 0.0
        %1634 = vmatpush.msra.mxu0 0.0
        %1635 = vmatpush.msra.mxu0 0.0
        %1636 = vmatpush.msra.mxu0 0.0
        %1637 = vmatpush.msra.mxu0 0.0
        %1638 = vmatpush.msra.mxu0 0.0
        %1639 = vmatpush.msra.mxu0 0.0
        %1640 = vmatpush.msra.mxu0 0.0
        %1641 = vmatpush.msra.mxu0 0.0
        %1642 = vmatpush.msra.mxu0 %v1582
        %1643 = vmatpush.msra.mxu0 %v1574
        %1644 = vmatpush.msra.mxu0 %v1566
        %1645 = vmatpush.msra.mxu0 %v1558
        %1646 = vmatmul.f32.gmra.mxu0 %v1619
        %v1647 = vpop.f32.mrf.mxu0
        %v1648 = vadd.f32 %v1601, %v1647
        %1649 = vmatmul.f32.gmra.mxu0 %v1622
        %v1650 = vpop.f32.mrf.mxu0
        %v1651 = vadd.f32 %v1606, %v1650
        %1652 = vmatmul.f32.gmra.mxu0 %v1625
        %v1653 = vpop.f32.mrf.mxu0
        %v1654 = vadd.f32 %v1611, %v1653
        %1655 = vmatmul.f32.gmra.mxu0 %v1628
        %v1656 = vpop.f32.mrf.mxu0
        %v1657 = vadd.f32 %v1616, %v1656
        %1658 = vdwg.mxu0
        %1659 = vmatpush.msra.mxu0 0.0
        %1660 = vmatpush.msra.mxu0 0.0
        %1661 = vmatpush.msra.mxu0 0.0
        %1662 = vmatpush.msra.mxu0 0.0
        %1663 = vmatpush.msra.mxu0 0.0
        %1664 = vmatpush.msra.mxu0 0.0
        %1665 = vmatpush.msra.mxu0 0.0
        %1666 = vmatpush.msra.mxu0 0.0
        %1667 = vmatpush.msra.mxu0 0.0
        %1668 = vmatpush.msra.mxu0 0.0
        %1669 = vmatpush.msra.mxu0 0.0
        %1670 = vmatpush.msra.mxu0 0.0
        %1671 = vmatpush.msra.mxu0 %v1583
        %1672 = vmatpush.msra.mxu0 %v1575
        %1673 = vmatpush.msra.mxu0 %v1567
        %1674 = vmatpush.msra.mxu0 %v1559
        %1675 = vmatmul.f32.gmra.mxu0 %v1619
        %v1676 = vpop.f32.mrf.mxu0
        %v1677 = vadd.f32 %v1601, %v1676
        %1678 = vmatmul.f32.gmra.mxu0 %v1622
        %v1679 = vpop.f32.mrf.mxu0
        %v1680 = vadd.f32 %v1606, %v1679
        %1681 = vmatmul.f32.gmra.mxu0 %v1625
        %v1682 = vpop.f32.mrf.mxu0
        %v1683 = vadd.f32 %v1611, %v1682
        %1684 = vmatmul.f32.gmra.mxu0 %v1628
        %v1685 = vpop.f32.mrf.mxu0
        %v1686 = vadd.f32 %v1616, %v1685
        %1687 = vdwg.mxu0
        %1688 = vmatpush.msra.mxu0 0.0
        %1689 = vmatpush.msra.mxu0 0.0
        %1690 = vmatpush.msra.mxu0 0.0
        %1691 = vmatpush.msra.mxu0 0.0
        %1692 = vmatpush.msra.mxu0 0.0
        %1693 = vmatpush.msra.mxu0 0.0
        %1694 = vmatpush.msra.mxu0 0.0
        %1695 = vmatpush.msra.mxu0 0.0
        %1696 = vmatpush.msra.mxu0 0.0
        %1697 = vmatpush.msra.mxu0 0.0
        %1698 = vmatpush.msra.mxu0 0.0
        %1699 = vmatpush.msra.mxu0 0.0
        %1700 = vmatpush.msra.mxu0 %v1584
        %1701 = vmatpush.msra.mxu0 %v1576
        %1702 = vmatpush.msra.mxu0 %v1568
        %1703 = vmatpush.msra.mxu0 %v1560
        %1704 = vmatmul.f32.gmra.mxu0 %v1619
        %v1705 = vpop.f32.mrf.mxu0
        %v1706 = vadd.f32 %v1601, %v1705
        %1707 = vmatmul.f32.gmra.mxu0 %v1622
        %v1708 = vpop.f32.mrf.mxu0
        %v1709 = vadd.f32 %v1606, %v1708
        %1710 = vmatmul.f32.gmra.mxu0 %v1625
        %v1711 = vpop.f32.mrf.mxu0
        %v1712 = vadd.f32 %v1611, %v1711
        %1713 = vmatmul.f32.gmra.mxu0 %v1628
        %v1714 = vpop.f32.mrf.mxu0
        %v1715 = vadd.f32 %v1616, %v1714
        %1716 = vdwg.mxu0
        %1717 = vmatpush.msra.mxu0 0.0
        %1718 = vmatpush.msra.mxu0 0.0
        %1719 = vmatpush.msra.mxu0 0.0
        %1720 = vmatpush.msra.mxu0 0.0
        %1721 = vmatpush.msra.mxu0 0.0
        %1722 = vmatpush.msra.mxu0 0.0
        %1723 = vmatpush.msra.mxu0 0.0
        %1724 = vmatpush.msra.mxu0 0.0
        %1725 = vmatpush.msra.mxu0 0.0
        %1726 = vmatpush.msra.mxu0 0.0
        %1727 = vmatpush.msra.mxu0 0.0
        %1728 = vmatpush.msra.mxu0 0.0
        %1729 = vmatpush.msra.mxu0 %v1585
        %1730 = vmatpush.msra.mxu0 %v1577
        %1731 = vmatpush.msra.mxu0 %v1569
        %1732 = vmatpush.msra.mxu0 %v1561
        %1733 = vmatmul.f32.gmra.mxu0 %v1619
        %v1734 = vpop.f32.mrf.mxu0
        %v1735 = vadd.f32 %v1601, %v1734
        %1736 = vmatmul.f32.gmra.mxu0 %v1622
        %v1737 = vpop.f32.mrf.mxu0
        %v1738 = vadd.f32 %v1606, %v1737
        %1739 = vmatmul.f32.gmra.mxu0 %v1625
        %v1740 = vpop.f32.mrf.mxu0
        %v1741 = vadd.f32 %v1611, %v1740
        %1742 = vmatmul.f32.gmra.mxu0 %v1628
        %v1743 = vpop.f32.mrf.mxu0
        %v1744 = vadd.f32 %v1616, %v1743
        %1745 = vdwg.mxu0
        %1746 = vmatpush.msra.mxu0 0.0
        %1747 = vmatpush.msra.mxu0 0.0
        %1748 = vmatpush.msra.mxu0 0.0
        %1749 = vmatpush.msra.mxu0 0.0
        %1750 = vmatpush.msra.mxu0 0.0
        %1751 = vmatpush.msra.mxu0 0.0
        %1752 = vmatpush.msra.mxu0 0.0
        %1753 = vmatpush.msra.mxu0 0.0
        %1754 = vmatpush.msra.mxu0 0.0
        %1755 = vmatpush.msra.mxu0 0.0
        %1756 = vmatpush.msra.mxu0 0.0
        %1757 = vmatpush.msra.mxu0 0.0
        %1758 = vmatpush.msra.mxu0 %v1586
        %1759 = vmatpush.msra.mxu0 %v1578
        %1760 = vmatpush.msra.mxu0 %v1570
        %1761 = vmatpush.msra.mxu0 %v1562
        %1762 = vmatmul.f32.gmra.mxu0 %v1619
        %v1763 = vpop.f32.mrf.mxu0
        %v1764 = vadd.f32 %v1601, %v1763
        %1765 = vmatmul.f32.gmra.mxu0 %v1622
        %v1766 = vpop.f32.mrf.mxu0
        %v1767 = vadd.f32 %v1606, %v1766
        %1768 = vmatmul.f32.gmra.mxu0 %v1625
        %v1769 = vpop.f32.mrf.mxu0
        %v1770 = vadd.f32 %v1611, %v1769
        %1771 = vmatmul.f32.gmra.mxu0 %v1628
        %v1772 = vpop.f32.mrf.mxu0
        %v1773 = vadd.f32 %v1616, %v1772
        %1774 = vdwg.mxu0
        %1775 = vmatpush.msra.mxu0 0.0
        %1776 = vmatpush.msra.mxu0 0.0
        %1777 = vmatpush.msra.mxu0 0.0
        %1778 = vmatpush.msra.mxu0 0.0
        %1779 = vmatpush.msra.mxu0 0.0
        %1780 = vmatpush.msra.mxu0 0.0
        %1781 = vmatpush.msra.mxu0 0.0
        %1782 = vmatpush.msra.mxu0 0.0
        %1783 = vmatpush.msra.mxu0 0.0
        %1784 = vmatpush.msra.mxu0 0.0
        %1785 = vmatpush.msra.mxu0 0.0
        %1786 = vmatpush.msra.mxu0 0.0
        %1787 = vmatpush.msra.mxu0 %v1587
        %1788 = vmatpush.msra.mxu0 %v1579
        %1789 = vmatpush.msra.mxu0 %v1571
        %1790 = vmatpush.msra.mxu0 %v1563
        %1791 = vmatmul.f32.gmra.mxu0 %v1619
        %v1792 = vpop.f32.mrf.mxu0
        %v1793 = vadd.f32 %v1601, %v1792
        %1794 = vmatmul.f32.gmra.mxu0 %v1622
        %v1795 = vpop.f32.mrf.mxu0
        %v1796 = vadd.f32 %v1606, %v1795
        %1797 = vmatmul.f32.gmra.mxu0 %v1625
        %v1798 = vpop.f32.mrf.mxu0
        %v1799 = vadd.f32 %v1611, %v1798
        %1800 = vmatmul.f32.gmra.mxu0 %v1628
        %v1801 = vpop.f32.mrf.mxu0
        %v1802 = vadd.f32 %v1616, %v1801
        %1803 = vdwg.mxu0
        %1804 = vmatpush.msra.mxu0 0.0
        %1805 = vmatpush.msra.mxu0 0.0
        %1806 = vmatpush.msra.mxu0 0.0
        %1807 = vmatpush.msra.mxu0 0.0
        %1808 = vmatpush.msra.mxu0 0.0
        %1809 = vmatpush.msra.mxu0 0.0
        %1810 = vmatpush.msra.mxu0 0.0
        %1811 = vmatpush.msra.mxu0 0.0
        %1812 = vmatpush.msra.mxu0 0.0
        %1813 = vmatpush.msra.mxu0 0.0
        %1814 = vmatpush.msra.mxu0 0.0
        %1815 = vmatpush.msra.mxu0 0.0
        %1816 = vmatpush.msra.mxu0 %v1588
        %1817 = vmatpush.msra.mxu0 %v1580
        %1818 = vmatpush.msra.mxu0 %v1572
        %1819 = vmatpush.msra.mxu0 %v1564
        %1820 = vmatmul.f32.gmra.mxu0 %v1619
        %v1821 = vpop.f32.mrf.mxu0
        %v1822 = vadd.f32 %v1601, %v1821
        %1823 = vmatmul.f32.gmra.mxu0 %v1622
        %v1824 = vpop.f32.mrf.mxu0
        %v1825 = vadd.f32 %v1606, %v1824
        %1826 = vmatmul.f32.gmra.mxu0 %v1625
        %v1827 = vpop.f32.mrf.mxu0
        %v1828 = vadd.f32 %v1611, %v1827
        %1829 = vmatmul.f32.gmra.mxu0 %v1628
        %v1830 = vpop.f32.mrf.mxu0
        %v1831 = vadd.f32 %v1616, %v1830
        %1832 = vdwg.mxu0
        %1833 = vmatpush.msra.mxu0 0.0
        %1834 = vmatpush.msra.mxu0 0.0
        %1835 = vmatpush.msra.mxu0 0.0
        %1836 = vmatpush.msra.mxu0 0.0
        %1837 = vmatpush.msra.mxu0 0.0
        %1838 = vmatpush.msra.mxu0 0.0
        %1839 = vmatpush.msra.mxu0 0.0
        %1840 = vmatpush.msra.mxu0 0.0
        %1841 = vmatpush.msra.mxu0 0.0
        %1842 = vmatpush.msra.mxu0 0.0
        %1843 = vmatpush.msra.mxu0 0.0
        %1844 = vmatpush.msra.mxu0 0.0
        %1845 = vmatpush.msra.mxu0 %v1589
        %1846 = vmatpush.msra.mxu0 %v1581
        %1847 = vmatpush.msra.mxu0 %v1573
        %1848 = vmatpush.msra.mxu0 %v1565
        %1849 = vmatmul.f32.gmra.mxu0 %v1619
        %v1850 = vpop.f32.mrf.mxu0
        %v1851 = vadd.f32 %v1601, %v1850
        %1852 = vmatmul.f32.gmra.mxu0 %v1622
        %v1853 = vpop.f32.mrf.mxu0
        %v1854 = vadd.f32 %v1606, %v1853
        %1855 = vmatmul.f32.gmra.mxu0 %v1625
        %v1856 = vpop.f32.mrf.mxu0
        %v1857 = vadd.f32 %v1611, %v1856
        %1858 = vmatmul.f32.gmra.mxu0 %v1628
        %v1859 = vpop.f32.mrf.mxu0
        %v1860 = vadd.f32 %v1616, %v1859
        %1861 = vdwg.mxu0
        %vm1862 = vcmp.gt.f32.partialorder %v1648, 20.0
        %vm1863 = vcmp.gt.f32.partialorder %v1677, 20.0
        %vm1864 = vcmp.gt.f32.partialorder %v1706, 20.0
        %vm1865 = vcmp.gt.f32.partialorder %v1735, 20.0
        %vm1866 = vcmp.gt.f32.partialorder %v1764, 20.0
        %vm1867 = vcmp.gt.f32.partialorder %v1793, 20.0
        %vm1868 = vcmp.gt.f32.partialorder %v1822, 20.0
        %vm1869 = vcmp.gt.f32.partialorder %v1851, 20.0
        %vm1870 = vcmp.gt.f32.partialorder %v1651, 20.0
        %vm1871 = vcmp.gt.f32.partialorder %v1680, 20.0
        %vm1872 = vcmp.gt.f32.partialorder %v1709, 20.0
        %vm1873 = vcmp.gt.f32.partialorder %v1738, 20.0
        %vm1874 = vcmp.gt.f32.partialorder %v1767, 20.0
        %vm1875 = vcmp.gt.f32.partialorder %v1796, 20.0
        %vm1876 = vcmp.gt.f32.partialorder %v1825, 20.0
        %vm1877 = vcmp.gt.f32.partialorder %v1854, 20.0
        %vm1878 = vcmp.gt.f32.partialorder %v1654, 20.0
        %vm1879 = vcmp.gt.f32.partialorder %v1683, 20.0
        %vm1880 = vcmp.gt.f32.partialorder %v1712, 20.0
        %vm1881 = vcmp.gt.f32.partialorder %v1741, 20.0
        %vm1882 = vcmp.gt.f32.partialorder %v1770, 20.0
        %vm1883 = vcmp.gt.f32.partialorder %v1799, 20.0
        %vm1884 = vcmp.gt.f32.partialorder %v1828, 20.0
        %vm1885 = vcmp.gt.f32.partialorder %v1857, 20.0
        %vm1886 = vcmp.gt.f32.partialorder %v1657, 20.0
        %vm1887 = vcmp.gt.f32.partialorder %v1686, 20.0
        %vm1888 = vcmp.gt.f32.partialorder %v1715, 20.0
        %vm1889 = vcmp.gt.f32.partialorder %v1744, 20.0
        %vm1890 = vcmp.gt.f32.partialorder %v1773, 20.0
        %vm1891 = vcmp.gt.f32.partialorder %v1802, 20.0
        %vm1892 = vcmp.gt.f32.partialorder %v1831, 20.0
        %vm1893 = vcmp.gt.f32.partialorder %v1860, 20.0
        %v1894 = vmul.f32 %v1648, 1.442695
        %v1895 = vpow.pop %v1894
        %v1896 = vmul.f32 %v1677, 1.442695
        %v1897 = vpow.pop %v1896
        %v1898 = vmul.f32 %v1706, 1.442695
        %v1899 = vpow.pop %v1898
        %v1900 = vmul.f32 %v1735, 1.442695
        %v1901 = vpow.pop %v1900
        %v1902 = vmul.f32 %v1764, 1.442695
        %v1903 = vpow.pop %v1902
        %v1904 = vmul.f32 %v1793, 1.442695
        %v1905 = vpow.pop %v1904
        %v1906 = vmul.f32 %v1822, 1.442695
        %v1907 = vpow.pop %v1906
        %v1908 = vmul.f32 %v1851, 1.442695
        %v1909 = vpow.pop %v1908
        %v1910 = vmul.f32 %v1651, 1.442695
        %v1911 = vpow.pop %v1910
        %v1912 = vmul.f32 %v1680, 1.442695
        %v1913 = vpow.pop %v1912
        %v1914 = vmul.f32 %v1709, 1.442695
        %v1915 = vpow.pop %v1914
        %v1916 = vmul.f32 %v1738, 1.442695
        %v1917 = vpow.pop %v1916
        %v1918 = vmul.f32 %v1767, 1.442695
        %v1919 = vpow.pop %v1918
        %v1920 = vmul.f32 %v1796, 1.442695
        %v1921 = vpow.pop %v1920
        %v1922 = vmul.f32 %v1825, 1.442695
        %v1923 = vpow.pop %v1922
        %v1924 = vmul.f32 %v1854, 1.442695
        %v1925 = vpow.pop %v1924
        %v1926 = vmul.f32 %v1654, 1.442695
        %v1927 = vpow.pop %v1926
        %v1928 = vmul.f32 %v1683, 1.442695
        %v1929 = vpow.pop %v1928
        %v1930 = vmul.f32 %v1712, 1.442695
        %v1931 = vpow.pop %v1930
        %v1932 = vmul.f32 %v1741, 1.442695
        %v1933 = vpow.pop %v1932
        %v1934 = vmul.f32 %v1770, 1.442695
        %v1935 = vpow.pop %v1934
        %v1936 = vmul.f32 %v1799, 1.442695
        %v1937 = vpow.pop %v1936
        %v1938 = vmul.f32 %v1828, 1.442695
        %v1939 = vpow.pop %v1938
        %v1940 = vmul.f32 %v1857, 1.442695
        %v1941 = vpow.pop %v1940
        %v1942 = vmul.f32 %v1657, 1.442695
        %v1943 = vpow.pop %v1942
        %v1944 = vmul.f32 %v1686, 1.442695
        %v1945 = vpow.pop %v1944
        %v1946 = vmul.f32 %v1715, 1.442695
        %v1947 = vpow.pop %v1946
        %v1948 = vmul.f32 %v1744, 1.442695
        %v1949 = vpow.pop %v1948
        %v1950 = vmul.f32 %v1773, 1.442695
        %v1951 = vpow.pop %v1950
        %v1952 = vmul.f32 %v1802, 1.442695
        %v1953 = vpow.pop %v1952
        %v1954 = vmul.f32 %v1831, 1.442695
        %v1955 = vpow.pop %v1954
        %v1956 = vmul.f32 %v1860, 1.442695
        %v1957 = vpow.pop %v1956
        %v1958 = vadd.f32 %v1895, 1.0
        %v1959 = vlog2.pop %v1958
        %v1960 = vmul.f32 %v1959, 0.6931472
        %v1961 = vmul.f32 -0.5, %v1895
        %v1962 = vadd.f32 %v1961, 1.0
        %v1963 = vmul.f32 %v1962, %v1895
        %v1964 = vand.u32 2147483647, %v1895
        %vm1965 = vcmp.lt.f32.partialorder %v1964, 0.0004427343
        %v1966 = vsel %vm1965, %v1963, %v1960
        %v1967 = vadd.f32 %v1897, 1.0
        %v1968 = vlog2.pop %v1967
        %v1969 = vmul.f32 %v1968, 0.6931472
        %v1970 = vmul.f32 -0.5, %v1897
        %v1971 = vadd.f32 %v1970, 1.0
        %v1972 = vmul.f32 %v1971, %v1897
        %v1973 = vand.u32 2147483647, %v1897
        %vm1974 = vcmp.lt.f32.partialorder %v1973, 0.0004427343
        %v1975 = vsel %vm1974, %v1972, %v1969
        %v1976 = vadd.f32 %v1899, 1.0
        %v1977 = vlog2.pop %v1976
        %v1978 = vmul.f32 %v1977, 0.6931472
        %v1979 = vmul.f32 -0.5, %v1899
        %v1980 = vadd.f32 %v1979, 1.0
        %v1981 = vmul.f32 %v1980, %v1899
        %v1982 = vand.u32 2147483647, %v1899
        %vm1983 = vcmp.lt.f32.partialorder %v1982, 0.0004427343
        %v1984 = vsel %vm1983, %v1981, %v1978
        %v1985 = vadd.f32 %v1901, 1.0
        %v1986 = vlog2.pop %v1985
        %v1987 = vmul.f32 %v1986, 0.6931472
        %v1988 = vmul.f32 -0.5, %v1901
        %v1989 = vadd.f32 %v1988, 1.0
        %v1990 = vmul.f32 %v1989, %v1901
        %v1991 = vand.u32 2147483647, %v1901
        %vm1992 = vcmp.lt.f32.partialorder %v1991, 0.0004427343
        %v1993 = vsel %vm1992, %v1990, %v1987
        %v1994 = vadd.f32 %v1903, 1.0
        %v1995 = vlog2.pop %v1994
        %v1996 = vmul.f32 %v1995, 0.6931472
        %v1997 = vmul.f32 -0.5, %v1903
        %v1998 = vadd.f32 %v1997, 1.0
        %v1999 = vmul.f32 %v1998, %v1903
        %v2000 = vand.u32 2147483647, %v1903
        %vm2001 = vcmp.lt.f32.partialorder %v2000, 0.0004427343
        %v2002 = vsel %vm2001, %v1999, %v1996
        %v2003 = vadd.f32 %v1905, 1.0
        %v2004 = vlog2.pop %v2003
        %v2005 = vmul.f32 %v2004, 0.6931472
        %v2006 = vmul.f32 -0.5, %v1905
        %v2007 = vadd.f32 %v2006, 1.0
        %v2008 = vmul.f32 %v2007, %v1905
        %v2009 = vand.u32 2147483647, %v1905
        %vm2010 = vcmp.lt.f32.partialorder %v2009, 0.0004427343
        %v2011 = vsel %vm2010, %v2008, %v2005
        %v2012 = vadd.f32 %v1907, 1.0
        %v2013 = vlog2.pop %v2012
        %v2014 = vmul.f32 %v2013, 0.6931472
        %v2015 = vmul.f32 -0.5, %v1907
        %v2016 = vadd.f32 %v2015, 1.0
        %v2017 = vmul.f32 %v2016, %v1907
        %v2018 = vand.u32 2147483647, %v1907
        %vm2019 = vcmp.lt.f32.partialorder %v2018, 0.0004427343
        %v2020 = vsel %vm2019, %v2017, %v2014
        %v2021 = vadd.f32 %v1909, 1.0
        %v2022 = vlog2.pop %v2021
        %v2023 = vmul.f32 %v2022, 0.6931472
        %v2024 = vmul.f32 -0.5, %v1909
        %v2025 = vadd.f32 %v2024, 1.0
        %v2026 = vmul.f32 %v2025, %v1909
        %v2027 = vand.u32 2147483647, %v1909
        %vm2028 = vcmp.lt.f32.partialorder %v2027, 0.0004427343
        %v2029 = vsel %vm2028, %v2026, %v2023
        %v2030 = vadd.f32 %v1911, 1.0
        %v2031 = vlog2.pop %v2030
        %v2032 = vmul.f32 %v2031, 0.6931472
        %v2033 = vmul.f32 -0.5, %v1911
        %v2034 = vadd.f32 %v2033, 1.0
        %v2035 = vmul.f32 %v2034, %v1911
        %v2036 = vand.u32 2147483647, %v1911
        %vm2037 = vcmp.lt.f32.partialorder %v2036, 0.0004427343
        %v2038 = vsel %vm2037, %v2035, %v2032
        %v2039 = vadd.f32 %v1913, 1.0
        %v2040 = vlog2.pop %v2039
        %v2041 = vmul.f32 %v2040, 0.6931472
        %v2042 = vmul.f32 -0.5, %v1913
        %v2043 = vadd.f32 %v2042, 1.0
        %v2044 = vmul.f32 %v2043, %v1913
        %v2045 = vand.u32 2147483647, %v1913
        %vm2046 = vcmp.lt.f32.partialorder %v2045, 0.0004427343
        %v2047 = vsel %vm2046, %v2044, %v2041
        %v2048 = vadd.f32 %v1915, 1.0
        %v2049 = vlog2.pop %v2048
        %v2050 = vmul.f32 %v2049, 0.6931472
        %v2051 = vmul.f32 -0.5, %v1915
        %v2052 = vadd.f32 %v2051, 1.0
        %v2053 = vmul.f32 %v2052, %v1915
        %v2054 = vand.u32 2147483647, %v1915
        %vm2055 = vcmp.lt.f32.partialorder %v2054, 0.0004427343
        %v2056 = vsel %vm2055, %v2053, %v2050
        %v2057 = vadd.f32 %v1917, 1.0
        %v2058 = vlog2.pop %v2057
        %v2059 = vmul.f32 %v2058, 0.6931472
        %v2060 = vmul.f32 -0.5, %v1917
        %v2061 = vadd.f32 %v2060, 1.0
        %v2062 = vmul.f32 %v2061, %v1917
        %v2063 = vand.u32 2147483647, %v1917
        %vm2064 = vcmp.lt.f32.partialorder %v2063, 0.0004427343
        %v2065 = vsel %vm2064, %v2062, %v2059
        %v2066 = vadd.f32 %v1919, 1.0
        %v2067 = vlog2.pop %v2066
        %v2068 = vmul.f32 %v2067, 0.6931472
        %v2069 = vmul.f32 -0.5, %v1919
        %v2070 = vadd.f32 %v2069, 1.0
        %v2071 = vmul.f32 %v2070, %v1919
        %v2072 = vand.u32 2147483647, %v1919
        %vm2073 = vcmp.lt.f32.partialorder %v2072, 0.0004427343
        %v2074 = vsel %vm2073, %v2071, %v2068
        %v2075 = vadd.f32 %v1921, 1.0
        %v2076 = vlog2.pop %v2075
        %v2077 = vmul.f32 %v2076, 0.6931472
        %v2078 = vmul.f32 -0.5, %v1921
        %v2079 = vadd.f32 %v2078, 1.0
        %v2080 = vmul.f32 %v2079, %v1921
        %v2081 = vand.u32 2147483647, %v1921
        %vm2082 = vcmp.lt.f32.partialorder %v2081, 0.0004427343
        %v2083 = vsel %vm2082, %v2080, %v2077
        %v2084 = vadd.f32 %v1923, 1.0
        %v2085 = vlog2.pop %v2084
        %v2086 = vmul.f32 %v2085, 0.6931472
        %v2087 = vmul.f32 -0.5, %v1923
        %v2088 = vadd.f32 %v2087, 1.0
        %v2089 = vmul.f32 %v2088, %v1923
        %v2090 = vand.u32 2147483647, %v1923
        %vm2091 = vcmp.lt.f32.partialorder %v2090, 0.0004427343
        %v2092 = vsel %vm2091, %v2089, %v2086
        %v2093 = vadd.f32 %v1925, 1.0
        %v2094 = vlog2.pop %v2093
        %v2095 = vmul.f32 %v2094, 0.6931472
        %v2096 = vmul.f32 -0.5, %v1925
        %v2097 = vadd.f32 %v2096, 1.0
        %v2098 = vmul.f32 %v2097, %v1925
        %v2099 = vand.u32 2147483647, %v1925
        %vm2100 = vcmp.lt.f32.partialorder %v2099, 0.0004427343
        %v2101 = vsel %vm2100, %v2098, %v2095
        %v2102 = vadd.f32 %v1927, 1.0
        %v2103 = vlog2.pop %v2102
        %v2104 = vmul.f32 %v2103, 0.6931472
        %v2105 = vmul.f32 -0.5, %v1927
        %v2106 = vadd.f32 %v2105, 1.0
        %v2107 = vmul.f32 %v2106, %v1927
        %v2108 = vand.u32 2147483647, %v1927
        %vm2109 = vcmp.lt.f32.partialorder %v2108, 0.0004427343
        %v2110 = vsel %vm2109, %v2107, %v2104
        %v2111 = vadd.f32 %v1929, 1.0
        %v2112 = vlog2.pop %v2111
        %v2113 = vmul.f32 %v2112, 0.6931472
        %v2114 = vmul.f32 -0.5, %v1929
        %v2115 = vadd.f32 %v2114, 1.0
        %v2116 = vmul.f32 %v2115, %v1929
        %v2117 = vand.u32 2147483647, %v1929
        %vm2118 = vcmp.lt.f32.partialorder %v2117, 0.0004427343
        %v2119 = vsel %vm2118, %v2116, %v2113
        %v2120 = vadd.f32 %v1931, 1.0
        %v2121 = vlog2.pop %v2120
        %v2122 = vmul.f32 %v2121, 0.6931472
        %v2123 = vmul.f32 -0.5, %v1931
        %v2124 = vadd.f32 %v2123, 1.0
        %v2125 = vmul.f32 %v2124, %v1931
        %v2126 = vand.u32 2147483647, %v1931
        %vm2127 = vcmp.lt.f32.partialorder %v2126, 0.0004427343
        %v2128 = vsel %vm2127, %v2125, %v2122
        %v2129 = vadd.f32 %v1933, 1.0
        %v2130 = vlog2.pop %v2129
        %v2131 = vmul.f32 %v2130, 0.6931472
        %v2132 = vmul.f32 -0.5, %v1933
        %v2133 = vadd.f32 %v2132, 1.0
        %v2134 = vmul.f32 %v2133, %v1933
        %v2135 = vand.u32 2147483647, %v1933
        %vm2136 = vcmp.lt.f32.partialorder %v2135, 0.0004427343
        %v2137 = vsel %vm2136, %v2134, %v2131
        %v2138 = vadd.f32 %v1935, 1.0
        %v2139 = vlog2.pop %v2138
        %v2140 = vmul.f32 %v2139, 0.6931472
        %v2141 = vmul.f32 -0.5, %v1935
        %v2142 = vadd.f32 %v2141, 1.0
        %v2143 = vmul.f32 %v2142, %v1935
        %v2144 = vand.u32 2147483647, %v1935
        %vm2145 = vcmp.lt.f32.partialorder %v2144, 0.0004427343
        %v2146 = vsel %vm2145, %v2143, %v2140
        %v2147 = vadd.f32 %v1937, 1.0
        %v2148 = vlog2.pop %v2147
        %v2149 = vmul.f32 %v2148, 0.6931472
        %v2150 = vmul.f32 -0.5, %v1937
        %v2151 = vadd.f32 %v2150, 1.0
        %v2152 = vmul.f32 %v2151, %v1937
        %v2153 = vand.u32 2147483647, %v1937
        %vm2154 = vcmp.lt.f32.partialorder %v2153, 0.0004427343
        %v2155 = vsel %vm2154, %v2152, %v2149
        %v2156 = vadd.f32 %v1939, 1.0
        %v2157 = vlog2.pop %v2156
        %v2158 = vmul.f32 %v2157, 0.6931472
        %v2159 = vmul.f32 -0.5, %v1939
        %v2160 = vadd.f32 %v2159, 1.0
        %v2161 = vmul.f32 %v2160, %v1939
        %v2162 = vand.u32 2147483647, %v1939
        %vm2163 = vcmp.lt.f32.partialorder %v2162, 0.0004427343
        %v2164 = vsel %vm2163, %v2161, %v2158
        %v2165 = vadd.f32 %v1941, 1.0
        %v2166 = vlog2.pop %v2165
        %v2167 = vmul.f32 %v2166, 0.6931472
        %v2168 = vmul.f32 -0.5, %v1941
        %v2169 = vadd.f32 %v2168, 1.0
        %v2170 = vmul.f32 %v2169, %v1941
        %v2171 = vand.u32 2147483647, %v1941
        %vm2172 = vcmp.lt.f32.partialorder %v2171, 0.0004427343
        %v2173 = vsel %vm2172, %v2170, %v2167
        %v2174 = vadd.f32 %v1943, 1.0
        %v2175 = vlog2.pop %v2174
        %v2176 = vmul.f32 %v2175, 0.6931472
        %v2177 = vmul.f32 -0.5, %v1943
        %v2178 = vadd.f32 %v2177, 1.0
        %v2179 = vmul.f32 %v2178, %v1943
        %v2180 = vand.u32 2147483647, %v1943
        %vm2181 = vcmp.lt.f32.partialorder %v2180, 0.0004427343
        %v2182 = vsel %vm2181, %v2179, %v2176
        %v2183 = vadd.f32 %v1945, 1.0
        %v2184 = vlog2.pop %v2183
        %v2185 = vmul.f32 %v2184, 0.6931472
        %v2186 = vmul.f32 -0.5, %v1945
        %v2187 = vadd.f32 %v2186, 1.0
        %v2188 = vmul.f32 %v2187, %v1945
        %v2189 = vand.u32 2147483647, %v1945
        %vm2190 = vcmp.lt.f32.partialorder %v2189, 0.0004427343
        %v2191 = vsel %vm2190, %v2188, %v2185
        %v2192 = vadd.f32 %v1947, 1.0
        %v2193 = vlog2.pop %v2192
        %v2194 = vmul.f32 %v2193, 0.6931472
        %v2195 = vmul.f32 -0.5, %v1947
        %v2196 = vadd.f32 %v2195, 1.0
        %v2197 = vmul.f32 %v2196, %v1947
        %v2198 = vand.u32 2147483647, %v1947
        %vm2199 = vcmp.lt.f32.partialorder %v2198, 0.0004427343
        %v2200 = vsel %vm2199, %v2197, %v2194
        %v2201 = vadd.f32 %v1949, 1.0
        %v2202 = vlog2.pop %v2201
        %v2203 = vmul.f32 %v2202, 0.6931472
        %v2204 = vmul.f32 -0.5, %v1949
        %v2205 = vadd.f32 %v2204, 1.0
        %v2206 = vmul.f32 %v2205, %v1949
        %v2207 = vand.u32 2147483647, %v1949
        %vm2208 = vcmp.lt.f32.partialorder %v2207, 0.0004427343
        %v2209 = vsel %vm2208, %v2206, %v2203
        %v2210 = vadd.f32 %v1951, 1.0
        %v2211 = vlog2.pop %v2210
        %v2212 = vmul.f32 %v2211, 0.6931472
        %v2213 = vmul.f32 -0.5, %v1951
        %v2214 = vadd.f32 %v2213, 1.0
        %v2215 = vmul.f32 %v2214, %v1951
        %v2216 = vand.u32 2147483647, %v1951
        %vm2217 = vcmp.lt.f32.partialorder %v2216, 0.0004427343
        %v2218 = vsel %vm2217, %v2215, %v2212
        %v2219 = vadd.f32 %v1953, 1.0
        %v2220 = vlog2.pop %v2219
        %v2221 = vmul.f32 %v2220, 0.6931472
        %v2222 = vmul.f32 -0.5, %v1953
        %v2223 = vadd.f32 %v2222, 1.0
        %v2224 = vmul.f32 %v2223, %v1953
        %v2225 = vand.u32 2147483647, %v1953
        %vm2226 = vcmp.lt.f32.partialorder %v2225, 0.0004427343
        %v2227 = vsel %vm2226, %v2224, %v2221
        %v2228 = vadd.f32 %v1955, 1.0
        %v2229 = vlog2.pop %v2228
        %v2230 = vmul.f32 %v2229, 0.6931472
        %v2231 = vmul.f32 -0.5, %v1955
        %v2232 = vadd.f32 %v2231, 1.0
        %v2233 = vmul.f32 %v2232, %v1955
        %v2234 = vand.u32 2147483647, %v1955
        %vm2235 = vcmp.lt.f32.partialorder %v2234, 0.0004427343
        %v2236 = vsel %vm2235, %v2233, %v2230
        %v2237 = vadd.f32 %v1957, 1.0
        %v2238 = vlog2.pop %v2237
        %v2239 = vmul.f32 %v2238, 0.6931472
        %v2240 = vmul.f32 -0.5, %v1957
        %v2241 = vadd.f32 %v2240, 1.0
        %v2242 = vmul.f32 %v2241, %v1957
        %v2243 = vand.u32 2147483647, %v1957
        %vm2244 = vcmp.lt.f32.partialorder %v2243, 0.0004427343
        %v2245 = vsel %vm2244, %v2242, %v2239
        %v2246 = vsel %vm1862, %v1648, %v1966
        %v2247 = vsel %vm1863, %v1677, %v1975
        %v2248 = vsel %vm1864, %v1706, %v1984
        %v2249 = vsel %vm1865, %v1735, %v1993
        %v2250 = vsel %vm1866, %v1764, %v2002
        %v2251 = vsel %vm1867, %v1793, %v2011
        %v2252 = vsel %vm1868, %v1822, %v2020
        %v2253 = vsel %vm1869, %v1851, %v2029
        %v2254 = vsel %vm1870, %v1651, %v2038
        %v2255 = vsel %vm1871, %v1680, %v2047
        %v2256 = vsel %vm1872, %v1709, %v2056
        %v2257 = vsel %vm1873, %v1738, %v2065
        %v2258 = vsel %vm1874, %v1767, %v2074
        %v2259 = vsel %vm1875, %v1796, %v2083
        %v2260 = vsel %vm1876, %v1825, %v2092
        %v2261 = vsel %vm1877, %v1854, %v2101
        %v2262 = vsel %vm1878, %v1654, %v2110
        %v2263 = vsel %vm1879, %v1683, %v2119
        %v2264 = vsel %vm1880, %v1712, %v2128
        %v2265 = vsel %vm1881, %v1741, %v2137
        %v2266 = vsel %vm1882, %v1770, %v2146
        %v2267 = vsel %vm1883, %v1799, %v2155
        %v2268 = vsel %vm1884, %v1828, %v2164
        %v2269 = vsel %vm1885, %v1857, %v2173
        %v2270 = vsel %vm1886, %v1657, %v2182
        %v2271 = vsel %vm1887, %v1686, %v2191
        %v2272 = vsel %vm1888, %v1715, %v2200
        %v2273 = vsel %vm1889, %v1744, %v2209
        %v2274 = vsel %vm1890, %v1773, %v2218
        %v2275 = vsel %vm1891, %v1802, %v2227
        %v2276 = vsel %vm1892, %v1831, %v2236
        %v2277 = vsel %vm1893, %v1860, %v2245
        %v2278 = vld [vmem:[%s1 + $0x60] sm:$0xff]
        %v2279 = vld [vmem:[%s1 + $0x68] sm:$0xff]
        %v2280 = vld [vmem:[%s1 + $0x70] sm:$0xff]
        %v2281 = vld [vmem:[%s1 + $0x78] sm:$0xff]
        %v2282 = vld [vmem:[%s2 + $0x60] sm:$0xff]
        %v2283 = vld [vmem:[%s2 + $0x68] sm:$0xff]
        %v2284 = vld [vmem:[%s2 + $0x70] sm:$0xff]
        %v2285 = vld [vmem:[%s2 + $0x78] sm:$0xff]
        %2287 = vset.pattern.permute.xlu0 0
        %2288 = vperm.xlu0 %2287, %v2282
        %v2289 = vpop.permute.xlu0 %2288
        %2292 = vset.pattern.permute.xlu0 0
        %2293 = vperm.xlu0 %2292, %v2283
        %v2294 = vpop.permute.xlu0 %2293
        %2297 = vset.pattern.permute.xlu0 0
        %2298 = vperm.xlu0 %2297, %v2284
        %v2299 = vpop.permute.xlu0 %2298
        %2302 = vset.pattern.permute.xlu0 0
        %2303 = vperm.xlu0 %2302, %v2285
        %v2304 = vpop.permute.xlu0 %2303
        %v2307 = vsel %vm929, %v2278, 0
        %v2310 = vsel %vm929, %v2279, 0
        %v2313 = vsel %vm929, %v2280, 0
        %v2316 = vsel %vm929, %v2281, 0
        %2318 = vmatpush.msra.mxu0 0.0
        %2319 = vmatpush.msra.mxu0 0.0
        %2320 = vmatpush.msra.mxu0 0.0
        %2321 = vmatpush.msra.mxu0 0.0
        %2322 = vmatpush.msra.mxu0 0.0
        %2323 = vmatpush.msra.mxu0 0.0
        %2324 = vmatpush.msra.mxu0 0.0
        %2325 = vmatpush.msra.mxu0 0.0
        %2326 = vmatpush.msra.mxu0 0.0
        %2327 = vmatpush.msra.mxu0 0.0
        %2328 = vmatpush.msra.mxu0 0.0
        %2329 = vmatpush.msra.mxu0 0.0
        %2330 = vmatpush.msra.mxu0 %v2270
        %2331 = vmatpush.msra.mxu0 %v2262
        %2332 = vmatpush.msra.mxu0 %v2254
        %2333 = vmatpush.msra.mxu0 %v2246
        %2334 = vmatmul.f32.gmra.mxu0 %v2307
        %v2335 = vpop.f32.mrf.mxu0
        %v2336 = vadd.f32 %v2289, %v2335
        %2337 = vmatmul.f32.gmra.mxu0 %v2310
        %v2338 = vpop.f32.mrf.mxu0
        %v2339 = vadd.f32 %v2294, %v2338
        %2340 = vmatmul.f32.gmra.mxu0 %v2313
        %v2341 = vpop.f32.mrf.mxu0
        %v2342 = vadd.f32 %v2299, %v2341
        %2343 = vmatmul.f32.gmra.mxu0 %v2316
        %v2344 = vpop.f32.mrf.mxu0
        %v2345 = vadd.f32 %v2304, %v2344
        %2346 = vdwg.mxu0
        %2347 = vmatpush.msra.mxu0 0.0
        %2348 = vmatpush.msra.mxu0 0.0
        %2349 = vmatpush.msra.mxu0 0.0
        %2350 = vmatpush.msra.mxu0 0.0
        %2351 = vmatpush.msra.mxu0 0.0
        %2352 = vmatpush.msra.mxu0 0.0
        %2353 = vmatpush.msra.mxu0 0.0
        %2354 = vmatpush.msra.mxu0 0.0
        %2355 = vmatpush.msra.mxu0 0.0
        %2356 = vmatpush.msra.mxu0 0.0
        %2357 = vmatpush.msra.mxu0 0.0
        %2358 = vmatpush.msra.mxu0 0.0
        %2359 = vmatpush.msra.mxu0 %v2271
        %2360 = vmatpush.msra.mxu0 %v2263
        %2361 = vmatpush.msra.mxu0 %v2255
        %2362 = vmatpush.msra.mxu0 %v2247
        %2363 = vmatmul.f32.gmra.mxu0 %v2307
        %v2364 = vpop.f32.mrf.mxu0
        %v2365 = vadd.f32 %v2289, %v2364
        %2366 = vmatmul.f32.gmra.mxu0 %v2310
        %v2367 = vpop.f32.mrf.mxu0
        %v2368 = vadd.f32 %v2294, %v2367
        %2369 = vmatmul.f32.gmra.mxu0 %v2313
        %v2370 = vpop.f32.mrf.mxu0
        %v2371 = vadd.f32 %v2299, %v2370
        %2372 = vmatmul.f32.gmra.mxu0 %v2316
        %v2373 = vpop.f32.mrf.mxu0
        %v2374 = vadd.f32 %v2304, %v2373
        %2375 = vdwg.mxu0
        %2376 = vmatpush.msra.mxu0 0.0
        %2377 = vmatpush.msra.mxu0 0.0
        %2378 = vmatpush.msra.mxu0 0.0
        %2379 = vmatpush.msra.mxu0 0.0
        %2380 = vmatpush.msra.mxu0 0.0
        %2381 = vmatpush.msra.mxu0 0.0
        %2382 = vmatpush.msra.mxu0 0.0
        %2383 = vmatpush.msra.mxu0 0.0
        %2384 = vmatpush.msra.mxu0 0.0
        %2385 = vmatpush.msra.mxu0 0.0
        %2386 = vmatpush.msra.mxu0 0.0
        %2387 = vmatpush.msra.mxu0 0.0
        %2388 = vmatpush.msra.mxu0 %v2272
        %2389 = vmatpush.msra.mxu0 %v2264
        %2390 = vmatpush.msra.mxu0 %v2256
        %2391 = vmatpush.msra.mxu0 %v2248
        %2392 = vmatmul.f32.gmra.mxu0 %v2307
        %v2393 = vpop.f32.mrf.mxu0
        %v2394 = vadd.f32 %v2289, %v2393
        %2395 = vmatmul.f32.gmra.mxu0 %v2310
        %v2396 = vpop.f32.mrf.mxu0
        %v2397 = vadd.f32 %v2294, %v2396
        %2398 = vmatmul.f32.gmra.mxu0 %v2313
        %v2399 = vpop.f32.mrf.mxu0
        %v2400 = vadd.f32 %v2299, %v2399
        %2401 = vmatmul.f32.gmra.mxu0 %v2316
        %v2402 = vpop.f32.mrf.mxu0
        %v2403 = vadd.f32 %v2304, %v2402
        %2404 = vdwg.mxu0
        %2405 = vmatpush.msra.mxu0 0.0
        %2406 = vmatpush.msra.mxu0 0.0
        %2407 = vmatpush.msra.mxu0 0.0
        %2408 = vmatpush.msra.mxu0 0.0
        %2409 = vmatpush.msra.mxu0 0.0
        %2410 = vmatpush.msra.mxu0 0.0
        %2411 = vmatpush.msra.mxu0 0.0
        %2412 = vmatpush.msra.mxu0 0.0
        %2413 = vmatpush.msra.mxu0 0.0
        %2414 = vmatpush.msra.mxu0 0.0
        %2415 = vmatpush.msra.mxu0 0.0
        %2416 = vmatpush.msra.mxu0 0.0
        %2417 = vmatpush.msra.mxu0 %v2273
        %2418 = vmatpush.msra.mxu0 %v2265
        %2419 = vmatpush.msra.mxu0 %v2257
        %2420 = vmatpush.msra.mxu0 %v2249
        %2421 = vmatmul.f32.gmra.mxu0 %v2307
        %v2422 = vpop.f32.mrf.mxu0
        %v2423 = vadd.f32 %v2289, %v2422
        %2424 = vmatmul.f32.gmra.mxu0 %v2310
        %v2425 = vpop.f32.mrf.mxu0
        %v2426 = vadd.f32 %v2294, %v2425
        %2427 = vmatmul.f32.gmra.mxu0 %v2313
        %v2428 = vpop.f32.mrf.mxu0
        %v2429 = vadd.f32 %v2299, %v2428
        %2430 = vmatmul.f32.gmra.mxu0 %v2316
        %v2431 = vpop.f32.mrf.mxu0
        %v2432 = vadd.f32 %v2304, %v2431
        %2433 = vdwg.mxu0
        %2434 = vmatpush.msra.mxu0 0.0
        %2435 = vmatpush.msra.mxu0 0.0
        %2436 = vmatpush.msra.mxu0 0.0
        %2437 = vmatpush.msra.mxu0 0.0
        %2438 = vmatpush.msra.mxu0 0.0
        %2439 = vmatpush.msra.mxu0 0.0
        %2440 = vmatpush.msra.mxu0 0.0
        %2441 = vmatpush.msra.mxu0 0.0
        %2442 = vmatpush.msra.mxu0 0.0
        %2443 = vmatpush.msra.mxu0 0.0
        %2444 = vmatpush.msra.mxu0 0.0
        %2445 = vmatpush.msra.mxu0 0.0
        %2446 = vmatpush.msra.mxu0 %v2274
        %2447 = vmatpush.msra.mxu0 %v2266
        %2448 = vmatpush.msra.mxu0 %v2258
        %2449 = vmatpush.msra.mxu0 %v2250
        %2450 = vmatmul.f32.gmra.mxu0 %v2307
        %v2451 = vpop.f32.mrf.mxu0
        %v2452 = vadd.f32 %v2289, %v2451
        %2453 = vmatmul.f32.gmra.mxu0 %v2310
        %v2454 = vpop.f32.mrf.mxu0
        %v2455 = vadd.f32 %v2294, %v2454
        %2456 = vmatmul.f32.gmra.mxu0 %v2313
        %v2457 = vpop.f32.mrf.mxu0
        %v2458 = vadd.f32 %v2299, %v2457
        %2459 = vmatmul.f32.gmra.mxu0 %v2316
        %v2460 = vpop.f32.mrf.mxu0
        %v2461 = vadd.f32 %v2304, %v2460
        %2462 = vdwg.mxu0
        %2463 = vmatpush.msra.mxu0 0.0
        %2464 = vmatpush.msra.mxu0 0.0
        %2465 = vmatpush.msra.mxu0 0.0
        %2466 = vmatpush.msra.mxu0 0.0
        %2467 = vmatpush.msra.mxu0 0.0
        %2468 = vmatpush.msra.mxu0 0.0
        %2469 = vmatpush.msra.mxu0 0.0
        %2470 = vmatpush.msra.mxu0 0.0
        %2471 = vmatpush.msra.mxu0 0.0
        %2472 = vmatpush.msra.mxu0 0.0
        %2473 = vmatpush.msra.mxu0 0.0
        %2474 = vmatpush.msra.mxu0 0.0
        %2475 = vmatpush.msra.mxu0 %v2275
        %2476 = vmatpush.msra.mxu0 %v2267
        %2477 = vmatpush.msra.mxu0 %v2259
        %2478 = vmatpush.msra.mxu0 %v2251
        %2479 = vmatmul.f32.gmra.mxu0 %v2307
        %v2480 = vpop.f32.mrf.mxu0
        %v2481 = vadd.f32 %v2289, %v2480
        %2482 = vmatmul.f32.gmra.mxu0 %v2310
        %v2483 = vpop.f32.mrf.mxu0
        %v2484 = vadd.f32 %v2294, %v2483
        %2485 = vmatmul.f32.gmra.mxu0 %v2313
        %v2486 = vpop.f32.mrf.mxu0
        %v2487 = vadd.f32 %v2299, %v2486
        %2488 = vmatmul.f32.gmra.mxu0 %v2316
        %v2489 = vpop.f32.mrf.mxu0
        %v2490 = vadd.f32 %v2304, %v2489
        %2491 = vdwg.mxu0
        %2492 = vmatpush.msra.mxu0 0.0
        %2493 = vmatpush.msra.mxu0 0.0
        %2494 = vmatpush.msra.mxu0 0.0
        %2495 = vmatpush.msra.mxu0 0.0
        %2496 = vmatpush.msra.mxu0 0.0
        %2497 = vmatpush.msra.mxu0 0.0
        %2498 = vmatpush.msra.mxu0 0.0
        %2499 = vmatpush.msra.mxu0 0.0
        %2500 = vmatpush.msra.mxu0 0.0
        %2501 = vmatpush.msra.mxu0 0.0
        %2502 = vmatpush.msra.mxu0 0.0
        %2503 = vmatpush.msra.mxu0 0.0
        %2504 = vmatpush.msra.mxu0 %v2276
        %2505 = vmatpush.msra.mxu0 %v2268
        %2506 = vmatpush.msra.mxu0 %v2260
        %2507 = vmatpush.msra.mxu0 %v2252
        %2508 = vmatmul.f32.gmra.mxu0 %v2307
        %v2509 = vpop.f32.mrf.mxu0
        %v2510 = vadd.f32 %v2289, %v2509
        %2511 = vmatmul.f32.gmra.mxu0 %v2310
        %v2512 = vpop.f32.mrf.mxu0
        %v2513 = vadd.f32 %v2294, %v2512
        %2514 = vmatmul.f32.gmra.mxu0 %v2313
        %v2515 = vpop.f32.mrf.mxu0
        %v2516 = vadd.f32 %v2299, %v2515
        %2517 = vmatmul.f32.gmra.mxu0 %v2316
        %v2518 = vpop.f32.mrf.mxu0
        %v2519 = vadd.f32 %v2304, %v2518
        %2520 = vdwg.mxu0
        %2521 = vmatpush.msra.mxu0 0.0
        %2522 = vmatpush.msra.mxu0 0.0
        %2523 = vmatpush.msra.mxu0 0.0
        %2524 = vmatpush.msra.mxu0 0.0
        %2525 = vmatpush.msra.mxu0 0.0
        %2526 = vmatpush.msra.mxu0 0.0
        %2527 = vmatpush.msra.mxu0 0.0
        %2528 = vmatpush.msra.mxu0 0.0
        %2529 = vmatpush.msra.mxu0 0.0
        %2530 = vmatpush.msra.mxu0 0.0
        %2531 = vmatpush.msra.mxu0 0.0
        %2532 = vmatpush.msra.mxu0 0.0
        %2533 = vmatpush.msra.mxu0 %v2277
        %2534 = vmatpush.msra.mxu0 %v2269
        %2535 = vmatpush.msra.mxu0 %v2261
        %2536 = vmatpush.msra.mxu0 %v2253
        %2537 = vmatmul.f32.gmra.mxu0 %v2307
        %v2538 = vpop.f32.mrf.mxu0
        %v2539 = vadd.f32 %v2289, %v2538
        %2540 = vmatmul.f32.gmra.mxu0 %v2310
        %v2541 = vpop.f32.mrf.mxu0
        %v2542 = vadd.f32 %v2294, %v2541
        %2543 = vmatmul.f32.gmra.mxu0 %v2313
        %v2544 = vpop.f32.mrf.mxu0
        %v2545 = vadd.f32 %v2299, %v2544
        %2546 = vmatmul.f32.gmra.mxu0 %v2316
        %v2547 = vpop.f32.mrf.mxu0
        %v2548 = vadd.f32 %v2304, %v2547
        %2549 = vdwg.mxu0
        %vm2550 = vcmp.gt.f32.partialorder %v2336, 20.0
        %vm2551 = vcmp.gt.f32.partialorder %v2365, 20.0
        %vm2552 = vcmp.gt.f32.partialorder %v2394, 20.0
        %vm2553 = vcmp.gt.f32.partialorder %v2423, 20.0
        %vm2554 = vcmp.gt.f32.partialorder %v2452, 20.0
        %vm2555 = vcmp.gt.f32.partialorder %v2481, 20.0
        %vm2556 = vcmp.gt.f32.partialorder %v2510, 20.0
        %vm2557 = vcmp.gt.f32.partialorder %v2539, 20.0
        %vm2558 = vcmp.gt.f32.partialorder %v2339, 20.0
        %vm2559 = vcmp.gt.f32.partialorder %v2368, 20.0
        %vm2560 = vcmp.gt.f32.partialorder %v2397, 20.0
        %vm2561 = vcmp.gt.f32.partialorder %v2426, 20.0
        %vm2562 = vcmp.gt.f32.partialorder %v2455, 20.0
        %vm2563 = vcmp.gt.f32.partialorder %v2484, 20.0
        %vm2564 = vcmp.gt.f32.partialorder %v2513, 20.0
        %vm2565 = vcmp.gt.f32.partialorder %v2542, 20.0
        %vm2566 = vcmp.gt.f32.partialorder %v2342, 20.0
        %vm2567 = vcmp.gt.f32.partialorder %v2371, 20.0
        %vm2568 = vcmp.gt.f32.partialorder %v2400, 20.0
        %vm2569 = vcmp.gt.f32.partialorder %v2429, 20.0
        %vm2570 = vcmp.gt.f32.partialorder %v2458, 20.0
        %vm2571 = vcmp.gt.f32.partialorder %v2487, 20.0
        %vm2572 = vcmp.gt.f32.partialorder %v2516, 20.0
        %vm2573 = vcmp.gt.f32.partialorder %v2545, 20.0
        %vm2574 = vcmp.gt.f32.partialorder %v2345, 20.0
        %vm2575 = vcmp.gt.f32.partialorder %v2374, 20.0
        %vm2576 = vcmp.gt.f32.partialorder %v2403, 20.0
        %vm2577 = vcmp.gt.f32.partialorder %v2432, 20.0
        %vm2578 = vcmp.gt.f32.partialorder %v2461, 20.0
        %vm2579 = vcmp.gt.f32.partialorder %v2490, 20.0
        %vm2580 = vcmp.gt.f32.partialorder %v2519, 20.0
        %vm2581 = vcmp.gt.f32.partialorder %v2548, 20.0
        %v2582 = vmul.f32 %v2336, 1.442695
        %v2583 = vpow.pop %v2582
        %v2584 = vmul.f32 %v2365, 1.442695
        %v2585 = vpow.pop %v2584
        %v2586 = vmul.f32 %v2394, 1.442695
        %v2587 = vpow.pop %v2586
        %v2588 = vmul.f32 %v2423, 1.442695
        %v2589 = vpow.pop %v2588
        %v2590 = vmul.f32 %v2452, 1.442695
        %v2591 = vpow.pop %v2590
        %v2592 = vmul.f32 %v2481, 1.442695
        %v2593 = vpow.pop %v2592
        %v2594 = vmul.f32 %v2510, 1.442695
        %v2595 = vpow.pop %v2594
        %v2596 = vmul.f32 %v2539, 1.442695
        %v2597 = vpow.pop %v2596
        %v2598 = vmul.f32 %v2339, 1.442695
        %v2599 = vpow.pop %v2598
        %v2600 = vmul.f32 %v2368, 1.442695
        %v2601 = vpow.pop %v2600
        %v2602 = vmul.f32 %v2397, 1.442695
        %v2603 = vpow.pop %v2602
        %v2604 = vmul.f32 %v2426, 1.442695
        %v2605 = vpow.pop %v2604
        %v2606 = vmul.f32 %v2455, 1.442695
        %v2607 = vpow.pop %v2606
        %v2608 = vmul.f32 %v2484, 1.442695
        %v2609 = vpow.pop %v2608
        %v2610 = vmul.f32 %v2513, 1.442695
        %v2611 = vpow.pop %v2610
        %v2612 = vmul.f32 %v2542, 1.442695
        %v2613 = vpow.pop %v2612
        %v2614 = vmul.f32 %v2342, 1.442695
        %v2615 = vpow.pop %v2614
        %v2616 = vmul.f32 %v2371, 1.442695
        %v2617 = vpow.pop %v2616
        %v2618 = vmul.f32 %v2400, 1.442695
        %v2619 = vpow.pop %v2618
        %v2620 = vmul.f32 %v2429, 1.442695
        %v2621 = vpow.pop %v2620
        %v2622 = vmul.f32 %v2458, 1.442695
        %v2623 = vpow.pop %v2622
        %v2624 = vmul.f32 %v2487, 1.442695
        %v2625 = vpow.pop %v2624
        %v2626 = vmul.f32 %v2516, 1.442695
        %v2627 = vpow.pop %v2626
        %v2628 = vmul.f32 %v2545, 1.442695
        %v2629 = vpow.pop %v2628
        %v2630 = vmul.f32 %v2345, 1.442695
        %v2631 = vpow.pop %v2630
        %v2632 = vmul.f32 %v2374, 1.442695
        %v2633 = vpow.pop %v2632
        %v2634 = vmul.f32 %v2403, 1.442695
        %v2635 = vpow.pop %v2634
        %v2636 = vmul.f32 %v2432, 1.442695
        %v2637 = vpow.pop %v2636
        %v2638 = vmul.f32 %v2461, 1.442695
        %v2639 = vpow.pop %v2638
        %v2640 = vmul.f32 %v2490, 1.442695
        %v2641 = vpow.pop %v2640
        %v2642 = vmul.f32 %v2519, 1.442695
        %v2643 = vpow.pop %v2642
        %v2644 = vmul.f32 %v2548, 1.442695
        %v2645 = vpow.pop %v2644
        %v2646 = vadd.f32 %v2583, 1.0
        %v2647 = vlog2.pop %v2646
        %v2648 = vmul.f32 %v2647, 0.6931472
        %v2649 = vmul.f32 -0.5, %v2583
        %v2650 = vadd.f32 %v2649, 1.0
        %v2651 = vmul.f32 %v2650, %v2583
        %v2652 = vand.u32 2147483647, %v2583
        %vm2653 = vcmp.lt.f32.partialorder %v2652, 0.0004427343
        %v2654 = vsel %vm2653, %v2651, %v2648
        %v2655 = vadd.f32 %v2585, 1.0
        %v2656 = vlog2.pop %v2655
        %v2657 = vmul.f32 %v2656, 0.6931472
        %v2658 = vmul.f32 -0.5, %v2585
        %v2659 = vadd.f32 %v2658, 1.0
        %v2660 = vmul.f32 %v2659, %v2585
        %v2661 = vand.u32 2147483647, %v2585
        %vm2662 = vcmp.lt.f32.partialorder %v2661, 0.0004427343
        %v2663 = vsel %vm2662, %v2660, %v2657
        %v2664 = vadd.f32 %v2587, 1.0
        %v2665 = vlog2.pop %v2664
        %v2666 = vmul.f32 %v2665, 0.6931472
        %v2667 = vmul.f32 -0.5, %v2587
        %v2668 = vadd.f32 %v2667, 1.0
        %v2669 = vmul.f32 %v2668, %v2587
        %v2670 = vand.u32 2147483647, %v2587
        %vm2671 = vcmp.lt.f32.partialorder %v2670, 0.0004427343
        %v2672 = vsel %vm2671, %v2669, %v2666
        %v2673 = vadd.f32 %v2589, 1.0
        %v2674 = vlog2.pop %v2673
        %v2675 = vmul.f32 %v2674, 0.6931472
        %v2676 = vmul.f32 -0.5, %v2589
        %v2677 = vadd.f32 %v2676, 1.0
        %v2678 = vmul.f32 %v2677, %v2589
        %v2679 = vand.u32 2147483647, %v2589
        %vm2680 = vcmp.lt.f32.partialorder %v2679, 0.0004427343
        %v2681 = vsel %vm2680, %v2678, %v2675
        %v2682 = vadd.f32 %v2591, 1.0
        %v2683 = vlog2.pop %v2682
        %v2684 = vmul.f32 %v2683, 0.6931472
        %v2685 = vmul.f32 -0.5, %v2591
        %v2686 = vadd.f32 %v2685, 1.0
        %v2687 = vmul.f32 %v2686, %v2591
        %v2688 = vand.u32 2147483647, %v2591
        %vm2689 = vcmp.lt.f32.partialorder %v2688, 0.0004427343
        %v2690 = vsel %vm2689, %v2687, %v2684
        %v2691 = vadd.f32 %v2593, 1.0
        %v2692 = vlog2.pop %v2691
        %v2693 = vmul.f32 %v2692, 0.6931472
        %v2694 = vmul.f32 -0.5, %v2593
        %v2695 = vadd.f32 %v2694, 1.0
        %v2696 = vmul.f32 %v2695, %v2593
        %v2697 = vand.u32 2147483647, %v2593
        %vm2698 = vcmp.lt.f32.partialorder %v2697, 0.0004427343
        %v2699 = vsel %vm2698, %v2696, %v2693
        %v2700 = vadd.f32 %v2595, 1.0
        %v2701 = vlog2.pop %v2700
        %v2702 = vmul.f32 %v2701, 0.6931472
        %v2703 = vmul.f32 -0.5, %v2595
        %v2704 = vadd.f32 %v2703, 1.0
        %v2705 = vmul.f32 %v2704, %v2595
        %v2706 = vand.u32 2147483647, %v2595
        %vm2707 = vcmp.lt.f32.partialorder %v2706, 0.0004427343
        %v2708 = vsel %vm2707, %v2705, %v2702
        %v2709 = vadd.f32 %v2597, 1.0
        %v2710 = vlog2.pop %v2709
        %v2711 = vmul.f32 %v2710, 0.6931472
        %v2712 = vmul.f32 -0.5, %v2597
        %v2713 = vadd.f32 %v2712, 1.0
        %v2714 = vmul.f32 %v2713, %v2597
        %v2715 = vand.u32 2147483647, %v2597
        %vm2716 = vcmp.lt.f32.partialorder %v2715, 0.0004427343
        %v2717 = vsel %vm2716, %v2714, %v2711
        %v2718 = vadd.f32 %v2599, 1.0
        %v2719 = vlog2.pop %v2718
        %v2720 = vmul.f32 %v2719, 0.6931472
        %v2721 = vmul.f32 -0.5, %v2599
        %v2722 = vadd.f32 %v2721, 1.0
        %v2723 = vmul.f32 %v2722, %v2599
        %v2724 = vand.u32 2147483647, %v2599
        %vm2725 = vcmp.lt.f32.partialorder %v2724, 0.0004427343
        %v2726 = vsel %vm2725, %v2723, %v2720
        %v2727 = vadd.f32 %v2601, 1.0
        %v2728 = vlog2.pop %v2727
        %v2729 = vmul.f32 %v2728, 0.6931472
        %v2730 = vmul.f32 -0.5, %v2601
        %v2731 = vadd.f32 %v2730, 1.0
        %v2732 = vmul.f32 %v2731, %v2601
        %v2733 = vand.u32 2147483647, %v2601
        %vm2734 = vcmp.lt.f32.partialorder %v2733, 0.0004427343
        %v2735 = vsel %vm2734, %v2732, %v2729
        %v2736 = vadd.f32 %v2603, 1.0
        %v2737 = vlog2.pop %v2736
        %v2738 = vmul.f32 %v2737, 0.6931472
        %v2739 = vmul.f32 -0.5, %v2603
        %v2740 = vadd.f32 %v2739, 1.0
        %v2741 = vmul.f32 %v2740, %v2603
        %v2742 = vand.u32 2147483647, %v2603
        %vm2743 = vcmp.lt.f32.partialorder %v2742, 0.0004427343
        %v2744 = vsel %vm2743, %v2741, %v2738
        %v2745 = vadd.f32 %v2605, 1.0
        %v2746 = vlog2.pop %v2745
        %v2747 = vmul.f32 %v2746, 0.6931472
        %v2748 = vmul.f32 -0.5, %v2605
        %v2749 = vadd.f32 %v2748, 1.0
        %v2750 = vmul.f32 %v2749, %v2605
        %v2751 = vand.u32 2147483647, %v2605
        %vm2752 = vcmp.lt.f32.partialorder %v2751, 0.0004427343
        %v2753 = vsel %vm2752, %v2750, %v2747
        %v2754 = vadd.f32 %v2607, 1.0
        %v2755 = vlog2.pop %v2754
        %v2756 = vmul.f32 %v2755, 0.6931472
        %v2757 = vmul.f32 -0.5, %v2607
        %v2758 = vadd.f32 %v2757, 1.0
        %v2759 = vmul.f32 %v2758, %v2607
        %v2760 = vand.u32 2147483647, %v2607
        %vm2761 = vcmp.lt.f32.partialorder %v2760, 0.0004427343
        %v2762 = vsel %vm2761, %v2759, %v2756
        %v2763 = vadd.f32 %v2609, 1.0
        %v2764 = vlog2.pop %v2763
        %v2765 = vmul.f32 %v2764, 0.6931472
        %v2766 = vmul.f32 -0.5, %v2609
        %v2767 = vadd.f32 %v2766, 1.0
        %v2768 = vmul.f32 %v2767, %v2609
        %v2769 = vand.u32 2147483647, %v2609
        %vm2770 = vcmp.lt.f32.partialorder %v2769, 0.0004427343
        %v2771 = vsel %vm2770, %v2768, %v2765
        %v2772 = vadd.f32 %v2611, 1.0
        %v2773 = vlog2.pop %v2772
        %v2774 = vmul.f32 %v2773, 0.6931472
        %v2775 = vmul.f32 -0.5, %v2611
        %v2776 = vadd.f32 %v2775, 1.0
        %v2777 = vmul.f32 %v2776, %v2611
        %v2778 = vand.u32 2147483647, %v2611
        %vm2779 = vcmp.lt.f32.partialorder %v2778, 0.0004427343
        %v2780 = vsel %vm2779, %v2777, %v2774
        %v2781 = vadd.f32 %v2613, 1.0
        %v2782 = vlog2.pop %v2781
        %v2783 = vmul.f32 %v2782, 0.6931472
        %v2784 = vmul.f32 -0.5, %v2613
        %v2785 = vadd.f32 %v2784, 1.0
        %v2786 = vmul.f32 %v2785, %v2613
        %v2787 = vand.u32 2147483647, %v2613
        %vm2788 = vcmp.lt.f32.partialorder %v2787, 0.0004427343
        %v2789 = vsel %vm2788, %v2786, %v2783
        %v2790 = vadd.f32 %v2615, 1.0
        %v2791 = vlog2.pop %v2790
        %v2792 = vmul.f32 %v2791, 0.6931472
        %v2793 = vmul.f32 -0.5, %v2615
        %v2794 = vadd.f32 %v2793, 1.0
        %v2795 = vmul.f32 %v2794, %v2615
        %v2796 = vand.u32 2147483647, %v2615
        %vm2797 = vcmp.lt.f32.partialorder %v2796, 0.0004427343
        %v2798 = vsel %vm2797, %v2795, %v2792
        %v2799 = vadd.f32 %v2617, 1.0
        %v2800 = vlog2.pop %v2799
        %v2801 = vmul.f32 %v2800, 0.6931472
        %v2802 = vmul.f32 -0.5, %v2617
        %v2803 = vadd.f32 %v2802, 1.0
        %v2804 = vmul.f32 %v2803, %v2617
        %v2805 = vand.u32 2147483647, %v2617
        %vm2806 = vcmp.lt.f32.partialorder %v2805, 0.0004427343
        %v2807 = vsel %vm2806, %v2804, %v2801
        %v2808 = vadd.f32 %v2619, 1.0
        %v2809 = vlog2.pop %v2808
        %v2810 = vmul.f32 %v2809, 0.6931472
        %v2811 = vmul.f32 -0.5, %v2619
        %v2812 = vadd.f32 %v2811, 1.0
        %v2813 = vmul.f32 %v2812, %v2619
        %v2814 = vand.u32 2147483647, %v2619
        %vm2815 = vcmp.lt.f32.partialorder %v2814, 0.0004427343
        %v2816 = vsel %vm2815, %v2813, %v2810
        %v2817 = vadd.f32 %v2621, 1.0
        %v2818 = vlog2.pop %v2817
        %v2819 = vmul.f32 %v2818, 0.6931472
        %v2820 = vmul.f32 -0.5, %v2621
        %v2821 = vadd.f32 %v2820, 1.0
        %v2822 = vmul.f32 %v2821, %v2621
        %v2823 = vand.u32 2147483647, %v2621
        %vm2824 = vcmp.lt.f32.partialorder %v2823, 0.0004427343
        %v2825 = vsel %vm2824, %v2822, %v2819
        %v2826 = vadd.f32 %v2623, 1.0
        %v2827 = vlog2.pop %v2826
        %v2828 = vmul.f32 %v2827, 0.6931472
        %v2829 = vmul.f32 -0.5, %v2623
        %v2830 = vadd.f32 %v2829, 1.0
        %v2831 = vmul.f32 %v2830, %v2623
        %v2832 = vand.u32 2147483647, %v2623
        %vm2833 = vcmp.lt.f32.partialorder %v2832, 0.0004427343
        %v2834 = vsel %vm2833, %v2831, %v2828
        %v2835 = vadd.f32 %v2625, 1.0
        %v2836 = vlog2.pop %v2835
        %v2837 = vmul.f32 %v2836, 0.6931472
        %v2838 = vmul.f32 -0.5, %v2625
        %v2839 = vadd.f32 %v2838, 1.0
        %v2840 = vmul.f32 %v2839, %v2625
        %v2841 = vand.u32 2147483647, %v2625
        %vm2842 = vcmp.lt.f32.partialorder %v2841, 0.0004427343
        %v2843 = vsel %vm2842, %v2840, %v2837
        %v2844 = vadd.f32 %v2627, 1.0
        %v2845 = vlog2.pop %v2844
        %v2846 = vmul.f32 %v2845, 0.6931472
        %v2847 = vmul.f32 -0.5, %v2627
        %v2848 = vadd.f32 %v2847, 1.0
        %v2849 = vmul.f32 %v2848, %v2627
        %v2850 = vand.u32 2147483647, %v2627
        %vm2851 = vcmp.lt.f32.partialorder %v2850, 0.0004427343
        %v2852 = vsel %vm2851, %v2849, %v2846
        %v2853 = vadd.f32 %v2629, 1.0
        %v2854 = vlog2.pop %v2853
        %v2855 = vmul.f32 %v2854, 0.6931472
        %v2856 = vmul.f32 -0.5, %v2629
        %v2857 = vadd.f32 %v2856, 1.0
        %v2858 = vmul.f32 %v2857, %v2629
        %v2859 = vand.u32 2147483647, %v2629
        %vm2860 = vcmp.lt.f32.partialorder %v2859, 0.0004427343
        %v2861 = vsel %vm2860, %v2858, %v2855
        %v2862 = vadd.f32 %v2631, 1.0
        %v2863 = vlog2.pop %v2862
        %v2864 = vmul.f32 %v2863, 0.6931472
        %v2865 = vmul.f32 -0.5, %v2631
        %v2866 = vadd.f32 %v2865, 1.0
        %v2867 = vmul.f32 %v2866, %v2631
        %v2868 = vand.u32 2147483647, %v2631
        %vm2869 = vcmp.lt.f32.partialorder %v2868, 0.0004427343
        %v2870 = vsel %vm2869, %v2867, %v2864
        %v2871 = vadd.f32 %v2633, 1.0
        %v2872 = vlog2.pop %v2871
        %v2873 = vmul.f32 %v2872, 0.6931472
        %v2874 = vmul.f32 -0.5, %v2633
        %v2875 = vadd.f32 %v2874, 1.0
        %v2876 = vmul.f32 %v2875, %v2633
        %v2877 = vand.u32 2147483647, %v2633
        %vm2878 = vcmp.lt.f32.partialorder %v2877, 0.0004427343
        %v2879 = vsel %vm2878, %v2876, %v2873
        %v2880 = vadd.f32 %v2635, 1.0
        %v2881 = vlog2.pop %v2880
        %v2882 = vmul.f32 %v2881, 0.6931472
        %v2883 = vmul.f32 -0.5, %v2635
        %v2884 = vadd.f32 %v2883, 1.0
        %v2885 = vmul.f32 %v2884, %v2635
        %v2886 = vand.u32 2147483647, %v2635
        %vm2887 = vcmp.lt.f32.partialorder %v2886, 0.0004427343
        %v2888 = vsel %vm2887, %v2885, %v2882
        %v2889 = vadd.f32 %v2637, 1.0
        %v2890 = vlog2.pop %v2889
        %v2891 = vmul.f32 %v2890, 0.6931472
        %v2892 = vmul.f32 -0.5, %v2637
        %v2893 = vadd.f32 %v2892, 1.0
        %v2894 = vmul.f32 %v2893, %v2637
        %v2895 = vand.u32 2147483647, %v2637
        %vm2896 = vcmp.lt.f32.partialorder %v2895, 0.0004427343
        %v2897 = vsel %vm2896, %v2894, %v2891
        %v2898 = vadd.f32 %v2639, 1.0
        %v2899 = vlog2.pop %v2898
        %v2900 = vmul.f32 %v2899, 0.6931472
        %v2901 = vmul.f32 -0.5, %v2639
        %v2902 = vadd.f32 %v2901, 1.0
        %v2903 = vmul.f32 %v2902, %v2639
        %v2904 = vand.u32 2147483647, %v2639
        %vm2905 = vcmp.lt.f32.partialorder %v2904, 0.0004427343
        %v2906 = vsel %vm2905, %v2903, %v2900
        %v2907 = vadd.f32 %v2641, 1.0
        %v2908 = vlog2.pop %v2907
        %v2909 = vmul.f32 %v2908, 0.6931472
        %v2910 = vmul.f32 -0.5, %v2641
        %v2911 = vadd.f32 %v2910, 1.0
        %v2912 = vmul.f32 %v2911, %v2641
        %v2913 = vand.u32 2147483647, %v2641
        %vm2914 = vcmp.lt.f32.partialorder %v2913, 0.0004427343
        %v2915 = vsel %vm2914, %v2912, %v2909
        %v2916 = vadd.f32 %v2643, 1.0
        %v2917 = vlog2.pop %v2916
        %v2918 = vmul.f32 %v2917, 0.6931472
        %v2919 = vmul.f32 -0.5, %v2643
        %v2920 = vadd.f32 %v2919, 1.0
        %v2921 = vmul.f32 %v2920, %v2643
        %v2922 = vand.u32 2147483647, %v2643
        %vm2923 = vcmp.lt.f32.partialorder %v2922, 0.0004427343
        %v2924 = vsel %vm2923, %v2921, %v2918
        %v2925 = vadd.f32 %v2645, 1.0
        %v2926 = vlog2.pop %v2925
        %v2927 = vmul.f32 %v2926, 0.6931472
        %v2928 = vmul.f32 -0.5, %v2645
        %v2929 = vadd.f32 %v2928, 1.0
        %v2930 = vmul.f32 %v2929, %v2645
        %v2931 = vand.u32 2147483647, %v2645
        %vm2932 = vcmp.lt.f32.partialorder %v2931, 0.0004427343
        %v2933 = vsel %vm2932, %v2930, %v2927
        %v2934 = vsel %vm2550, %v2336, %v2654
        %v2935 = vsel %vm2551, %v2365, %v2663
        %v2936 = vsel %vm2552, %v2394, %v2672
        %v2937 = vsel %vm2553, %v2423, %v2681
        %v2938 = vsel %vm2554, %v2452, %v2690
        %v2939 = vsel %vm2555, %v2481, %v2699
        %v2940 = vsel %vm2556, %v2510, %v2708
        %v2941 = vsel %vm2557, %v2539, %v2717
        %v2942 = vsel %vm2558, %v2339, %v2726
        %v2943 = vsel %vm2559, %v2368, %v2735
        %v2944 = vsel %vm2560, %v2397, %v2744
        %v2945 = vsel %vm2561, %v2426, %v2753
        %v2946 = vsel %vm2562, %v2455, %v2762
        %v2947 = vsel %vm2563, %v2484, %v2771
        %v2948 = vsel %vm2564, %v2513, %v2780
        %v2949 = vsel %vm2565, %v2542, %v2789
        %v2950 = vsel %vm2566, %v2342, %v2798
        %v2951 = vsel %vm2567, %v2371, %v2807
        %v2952 = vsel %vm2568, %v2400, %v2816
        %v2953 = vsel %vm2569, %v2429, %v2825
        %v2954 = vsel %vm2570, %v2458, %v2834
        %v2955 = vsel %vm2571, %v2487, %v2843
        %v2956 = vsel %vm2572, %v2516, %v2852
        %v2957 = vsel %vm2573, %v2545, %v2861
        %v2958 = vsel %vm2574, %v2345, %v2870
        %v2959 = vsel %vm2575, %v2374, %v2879
        %v2960 = vsel %vm2576, %v2403, %v2888
        %v2961 = vsel %vm2577, %v2432, %v2897
        %v2962 = vsel %vm2578, %v2461, %v2906
        %v2963 = vsel %vm2579, %v2490, %v2915
        %v2964 = vsel %vm2580, %v2519, %v2924
        %v2965 = vsel %vm2581, %v2548, %v2933
        %v2966 = vld [vmem:[%s1 + $0x80] sm:$0xff]
        %v2967 = vld [vmem:[%s1 + $0x88] sm:$0xff]
        %2968 = vst [vmem:[#allocation1] ss:$2 sm:$0xff] %v172
        %s2969 = scalar_lea.vmem [#allocation1], 16
        %2970 = vst [vmem:[%s2969] ss:$2 sm:$0xff] %v173
        %s2971 = scalar_lea.vmem [#allocation1], 32
        %2972 = vst [vmem:[%s2971] ss:$2 sm:$0xff] %v174
        %s2973 = scalar_lea.vmem [#allocation1], 48
        %2974 = vst [vmem:[%s2973] ss:$2 sm:$0xff] %v175
        %v2975 = vld.sshfl [vmem:[#allocation1] sm:$0xff pattern:$0x75316420]
        %v2976 = vld.sshfl [vmem:[#allocation1 + $0x8] sm:$0xff pattern:$0x75316420]
        %v2977 = vld.sshfl [vmem:[#allocation1 + $0x10] sm:$0xff pattern:$0x75316420]
        %v2978 = vld.sshfl [vmem:[#allocation1 + $0x18] sm:$0xff pattern:$0x75316420]
        %v2979 = vld.sshfl [vmem:[#allocation1 + $0x20] sm:$0xff pattern:$0x75316420]
        %v2980 = vld.sshfl [vmem:[#allocation1 + $0x28] sm:$0xff pattern:$0x75316420]
        %v2981 = vld.sshfl [vmem:[#allocation1 + $0x30] sm:$0xff pattern:$0x75316420]
        %v2982 = vld.sshfl [vmem:[#allocation1 + $0x38] sm:$0xff pattern:$0x75316420]
        %v2984 = vsel %vm223, %v2967, 0
        %v2986 = vsel %vm236, %v2975, 0
        %v2988 = vsel %vm236, %v2976, 0
        %v2990 = vsel %vm236, %v2977, 0
        %v2992 = vsel %vm236, %v2978, 0
        %v2994 = vsel %vm236, %v2979, 0
        %v2996 = vsel %vm236, %v2980, 0
        %v2998 = vsel %vm236, %v2981, 0
        %v3000 = vsel %vm236, %v2982, 0
        %3002 = vmatpush.msra.mxu0 0.0
        %3003 = vmatpush.msra.mxu0 0.0
        %3004 = vmatpush.msra.mxu0 0.0
        %3005 = vmatpush.msra.mxu0 0.0
        %3006 = vmatpush.msra.mxu0 0.0
        %3007 = vmatpush.msra.mxu0 0.0
        %3008 = vmatpush.msra.mxu0 0.0
        %3009 = vmatpush.msra.mxu0 0.0
        %3010 = vmatpush.msra.mxu0 0.0
        %3011 = vmatpush.msra.mxu0 0.0
        %3012 = vmatpush.msra.mxu0 0.0
        %3013 = vmatpush.msra.mxu0 0.0
        %3014 = vmatpush.msra.mxu0 0.0
        %3015 = vmatpush.msra.mxu0 0.0
        %3016 = vmatpush.msra.mxu0 0.0
        %3017 = vmatpush.msra.mxu0 %v2986
        %3018 = vmatmul.f32.gmra.mxu0 %v2984
        %v3019 = vpop.f32.mrf.mxu0
        %v3020 = vadd.f32 0.0, %v3019
        %3021 = vdwg.mxu0
        %3022 = vmatpush.msra.mxu0 0.0
        %3023 = vmatpush.msra.mxu0 0.0
        %3024 = vmatpush.msra.mxu0 0.0
        %3025 = vmatpush.msra.mxu0 0.0
        %3026 = vmatpush.msra.mxu0 0.0
        %3027 = vmatpush.msra.mxu0 0.0
        %3028 = vmatpush.msra.mxu0 0.0
        %3029 = vmatpush.msra.mxu0 0.0
        %3030 = vmatpush.msra.mxu0 0.0
        %3031 = vmatpush.msra.mxu0 0.0
        %3032 = vmatpush.msra.mxu0 0.0
        %3033 = vmatpush.msra.mxu0 0.0
        %3034 = vmatpush.msra.mxu0 0.0
        %3035 = vmatpush.msra.mxu0 0.0
        %3036 = vmatpush.msra.mxu0 0.0
        %3037 = vmatpush.msra.mxu0 %v2988
        %3038 = vmatmul.f32.gmra.mxu0 %v2984
        %v3039 = vpop.f32.mrf.mxu0
        %v3040 = vadd.f32 0.0, %v3039
        %3041 = vdwg.mxu0
        %3042 = vmatpush.msra.mxu0 0.0
        %3043 = vmatpush.msra.mxu0 0.0
        %3044 = vmatpush.msra.mxu0 0.0
        %3045 = vmatpush.msra.mxu0 0.0
        %3046 = vmatpush.msra.mxu0 0.0
        %3047 = vmatpush.msra.mxu0 0.0
        %3048 = vmatpush.msra.mxu0 0.0
        %3049 = vmatpush.msra.mxu0 0.0
        %3050 = vmatpush.msra.mxu0 0.0
        %3051 = vmatpush.msra.mxu0 0.0
        %3052 = vmatpush.msra.mxu0 0.0
        %3053 = vmatpush.msra.mxu0 0.0
        %3054 = vmatpush.msra.mxu0 0.0
        %3055 = vmatpush.msra.mxu0 0.0
        %3056 = vmatpush.msra.mxu0 0.0
        %3057 = vmatpush.msra.mxu0 %v2990
        %3058 = vmatmul.f32.gmra.mxu0 %v2984
        %v3059 = vpop.f32.mrf.mxu0
        %v3060 = vadd.f32 0.0, %v3059
        %3061 = vdwg.mxu0
        %3062 = vmatpush.msra.mxu0 0.0
        %3063 = vmatpush.msra.mxu0 0.0
        %3064 = vmatpush.msra.mxu0 0.0
        %3065 = vmatpush.msra.mxu0 0.0
        %3066 = vmatpush.msra.mxu0 0.0
        %3067 = vmatpush.msra.mxu0 0.0
        %3068 = vmatpush.msra.mxu0 0.0
        %3069 = vmatpush.msra.mxu0 0.0
        %3070 = vmatpush.msra.mxu0 0.0
        %3071 = vmatpush.msra.mxu0 0.0
        %3072 = vmatpush.msra.mxu0 0.0
        %3073 = vmatpush.msra.mxu0 0.0
        %3074 = vmatpush.msra.mxu0 0.0
        %3075 = vmatpush.msra.mxu0 0.0
        %3076 = vmatpush.msra.mxu0 0.0
        %3077 = vmatpush.msra.mxu0 %v2992
        %3078 = vmatmul.f32.gmra.mxu0 %v2984
        %v3079 = vpop.f32.mrf.mxu0
        %v3080 = vadd.f32 0.0, %v3079
        %3081 = vdwg.mxu0
        %3082 = vmatpush.msra.mxu0 0.0
        %3083 = vmatpush.msra.mxu0 0.0
        %3084 = vmatpush.msra.mxu0 0.0
        %3085 = vmatpush.msra.mxu0 0.0
        %3086 = vmatpush.msra.mxu0 0.0
        %3087 = vmatpush.msra.mxu0 0.0
        %3088 = vmatpush.msra.mxu0 0.0
        %3089 = vmatpush.msra.mxu0 0.0
        %3090 = vmatpush.msra.mxu0 0.0
        %3091 = vmatpush.msra.mxu0 0.0
        %3092 = vmatpush.msra.mxu0 0.0
        %3093 = vmatpush.msra.mxu0 0.0
        %3094 = vmatpush.msra.mxu0 0.0
        %3095 = vmatpush.msra.mxu0 0.0
        %3096 = vmatpush.msra.mxu0 0.0
        %3097 = vmatpush.msra.mxu0 %v2994
        %3098 = vmatmul.f32.gmra.mxu0 %v2984
        %v3099 = vpop.f32.mrf.mxu0
        %v3100 = vadd.f32 0.0, %v3099
        %3101 = vdwg.mxu0
        %3102 = vmatpush.msra.mxu0 0.0
        %3103 = vmatpush.msra.mxu0 0.0
        %3104 = vmatpush.msra.mxu0 0.0
        %3105 = vmatpush.msra.mxu0 0.0
        %3106 = vmatpush.msra.mxu0 0.0
        %3107 = vmatpush.msra.mxu0 0.0
        %3108 = vmatpush.msra.mxu0 0.0
        %3109 = vmatpush.msra.mxu0 0.0
        %3110 = vmatpush.msra.mxu0 0.0
        %3111 = vmatpush.msra.mxu0 0.0
        %3112 = vmatpush.msra.mxu0 0.0
        %3113 = vmatpush.msra.mxu0 0.0
        %3114 = vmatpush.msra.mxu0 0.0
        %3115 = vmatpush.msra.mxu0 0.0
        %3116 = vmatpush.msra.mxu0 0.0
        %3117 = vmatpush.msra.mxu0 %v2996
        %3118 = vmatmul.f32.gmra.mxu0 %v2984
        %v3119 = vpop.f32.mrf.mxu0
        %v3120 = vadd.f32 0.0, %v3119
        %3121 = vdwg.mxu0
        %3122 = vmatpush.msra.mxu0 0.0
        %3123 = vmatpush.msra.mxu0 0.0
        %3124 = vmatpush.msra.mxu0 0.0
        %3125 = vmatpush.msra.mxu0 0.0
        %3126 = vmatpush.msra.mxu0 0.0
        %3127 = vmatpush.msra.mxu0 0.0
        %3128 = vmatpush.msra.mxu0 0.0
        %3129 = vmatpush.msra.mxu0 0.0
        %3130 = vmatpush.msra.mxu0 0.0
        %3131 = vmatpush.msra.mxu0 0.0
        %3132 = vmatpush.msra.mxu0 0.0
        %3133 = vmatpush.msra.mxu0 0.0
        %3134 = vmatpush.msra.mxu0 0.0
        %3135 = vmatpush.msra.mxu0 0.0
        %3136 = vmatpush.msra.mxu0 0.0
        %3137 = vmatpush.msra.mxu0 %v2998
        %3138 = vmatmul.f32.gmra.mxu0 %v2984
        %v3139 = vpop.f32.mrf.mxu0
        %v3140 = vadd.f32 0.0, %v3139
        %3141 = vdwg.mxu0
        %3142 = vmatpush.msra.mxu0 0.0
        %3143 = vmatpush.msra.mxu0 0.0
        %3144 = vmatpush.msra.mxu0 0.0
        %3145 = vmatpush.msra.mxu0 0.0
        %3146 = vmatpush.msra.mxu0 0.0
        %3147 = vmatpush.msra.mxu0 0.0
        %3148 = vmatpush.msra.mxu0 0.0
        %3149 = vmatpush.msra.mxu0 0.0
        %3150 = vmatpush.msra.mxu0 0.0
        %3151 = vmatpush.msra.mxu0 0.0
        %3152 = vmatpush.msra.mxu0 0.0
        %3153 = vmatpush.msra.mxu0 0.0
        %3154 = vmatpush.msra.mxu0 0.0
        %3155 = vmatpush.msra.mxu0 0.0
        %3156 = vmatpush.msra.mxu0 0.0
        %3157 = vmatpush.msra.mxu0 %v3000
        %3158 = vmatmul.f32.gmra.mxu0 %v2984
        %v3159 = vpop.f32.mrf.mxu0
        %v3160 = vadd.f32 0.0, %v3159
        %3161 = vdwg.mxu0
        %v3163 = vsel %vm929, %v2966, 0
        %3165 = vmatpush.msra.mxu0 0.0
        %3166 = vmatpush.msra.mxu0 0.0
        %3167 = vmatpush.msra.mxu0 0.0
        %3168 = vmatpush.msra.mxu0 0.0
        %3169 = vmatpush.msra.mxu0 0.0
        %3170 = vmatpush.msra.mxu0 0.0
        %3171 = vmatpush.msra.mxu0 0.0
        %3172 = vmatpush.msra.mxu0 0.0
        %3173 = vmatpush.msra.mxu0 0.0
        %3174 = vmatpush.msra.mxu0 0.0
        %3175 = vmatpush.msra.mxu0 0.0
        %3176 = vmatpush.msra.mxu0 0.0
        %3177 = vmatpush.msra.mxu0 %v2958
        %3178 = vmatpush.msra.mxu0 %v2950
        %3179 = vmatpush.msra.mxu0 %v2942
        %3180 = vmatpush.msra.mxu0 %v2934
        %3181 = vmatmul.f32.gmra.mxu0 %v3163
        %v3182 = vpop.f32.mrf.mxu0
        %v3183 = vadd.f32 %v3020, %v3182
        %3184 = vdwg.mxu0
        %3185 = vmatpush.msra.mxu0 0.0
        %3186 = vmatpush.msra.mxu0 0.0
        %3187 = vmatpush.msra.mxu0 0.0
        %3188 = vmatpush.msra.mxu0 0.0
        %3189 = vmatpush.msra.mxu0 0.0
        %3190 = vmatpush.msra.mxu0 0.0
        %3191 = vmatpush.msra.mxu0 0.0
        %3192 = vmatpush.msra.mxu0 0.0
        %3193 = vmatpush.msra.mxu0 0.0
        %3194 = vmatpush.msra.mxu0 0.0
        %3195 = vmatpush.msra.mxu0 0.0
        %3196 = vmatpush.msra.mxu0 0.0
        %3197 = vmatpush.msra.mxu0 %v2959
        %3198 = vmatpush.msra.mxu0 %v2951
        %3199 = vmatpush.msra.mxu0 %v2943
        %3200 = vmatpush.msra.mxu0 %v2935
        %3201 = vmatmul.f32.gmra.mxu0 %v3163
        %v3202 = vpop.f32.mrf.mxu0
        %v3203 = vadd.f32 %v3040, %v3202
        %3204 = vdwg.mxu0
        %3205 = vmatpush.msra.mxu0 0.0
        %3206 = vmatpush.msra.mxu0 0.0
        %3207 = vmatpush.msra.mxu0 0.0
        %3208 = vmatpush.msra.mxu0 0.0
        %3209 = vmatpush.msra.mxu0 0.0
        %3210 = vmatpush.msra.mxu0 0.0
        %3211 = vmatpush.msra.mxu0 0.0
        %3212 = vmatpush.msra.mxu0 0.0
        %3213 = vmatpush.msra.mxu0 0.0
        %3214 = vmatpush.msra.mxu0 0.0
        %3215 = vmatpush.msra.mxu0 0.0
        %3216 = vmatpush.msra.mxu0 0.0
        %3217 = vmatpush.msra.mxu0 %v2960
        %3218 = vmatpush.msra.mxu0 %v2952
        %3219 = vmatpush.msra.mxu0 %v2944
        %3220 = vmatpush.msra.mxu0 %v2936
        %3221 = vmatmul.f32.gmra.mxu0 %v3163
        %v3222 = vpop.f32.mrf.mxu0
        %v3223 = vadd.f32 %v3060, %v3222
        %3224 = vdwg.mxu0
        %3225 = vmatpush.msra.mxu0 0.0
        %3226 = vmatpush.msra.mxu0 0.0
        %3227 = vmatpush.msra.mxu0 0.0
        %3228 = vmatpush.msra.mxu0 0.0
        %3229 = vmatpush.msra.mxu0 0.0
        %3230 = vmatpush.msra.mxu0 0.0
        %3231 = vmatpush.msra.mxu0 0.0
        %3232 = vmatpush.msra.mxu0 0.0
        %3233 = vmatpush.msra.mxu0 0.0
        %3234 = vmatpush.msra.mxu0 0.0
        %3235 = vmatpush.msra.mxu0 0.0
        %3236 = vmatpush.msra.mxu0 0.0
        %3237 = vmatpush.msra.mxu0 %v2961
        %3238 = vmatpush.msra.mxu0 %v2953
        %3239 = vmatpush.msra.mxu0 %v2945
        %3240 = vmatpush.msra.mxu0 %v2937
        %3241 = vmatmul.f32.gmra.mxu0 %v3163
        %v3242 = vpop.f32.mrf.mxu0
        %v3243 = vadd.f32 %v3080, %v3242
        %3244 = vdwg.mxu0
        %3245 = vmatpush.msra.mxu0 0.0
        %3246 = vmatpush.msra.mxu0 0.0
        %3247 = vmatpush.msra.mxu0 0.0
        %3248 = vmatpush.msra.mxu0 0.0
        %3249 = vmatpush.msra.mxu0 0.0
        %3250 = vmatpush.msra.mxu0 0.0
        %3251 = vmatpush.msra.mxu0 0.0
        %3252 = vmatpush.msra.mxu0 0.0
        %3253 = vmatpush.msra.mxu0 0.0
        %3254 = vmatpush.msra.mxu0 0.0
        %3255 = vmatpush.msra.mxu0 0.0
        %3256 = vmatpush.msra.mxu0 0.0
        %3257 = vmatpush.msra.mxu0 %v2962
        %3258 = vmatpush.msra.mxu0 %v2954
        %3259 = vmatpush.msra.mxu0 %v2946
        %3260 = vmatpush.msra.mxu0 %v2938
        %3261 = vmatmul.f32.gmra.mxu0 %v3163
        %v3262 = vpop.f32.mrf.mxu0
        %v3263 = vadd.f32 %v3100, %v3262
        %3264 = vdwg.mxu0
        %3265 = vmatpush.msra.mxu0 0.0
        %3266 = vmatpush.msra.mxu0 0.0
        %3267 = vmatpush.msra.mxu0 0.0
        %3268 = vmatpush.msra.mxu0 0.0
        %3269 = vmatpush.msra.mxu0 0.0
        %3270 = vmatpush.msra.mxu0 0.0
        %3271 = vmatpush.msra.mxu0 0.0
        %3272 = vmatpush.msra.mxu0 0.0
        %3273 = vmatpush.msra.mxu0 0.0
        %3274 = vmatpush.msra.mxu0 0.0
        %3275 = vmatpush.msra.mxu0 0.0
        %3276 = vmatpush.msra.mxu0 0.0
        %3277 = vmatpush.msra.mxu0 %v2963
        %3278 = vmatpush.msra.mxu0 %v2955
        %3279 = vmatpush.msra.mxu0 %v2947
        %3280 = vmatpush.msra.mxu0 %v2939
        %3281 = vmatmul.f32.gmra.mxu0 %v3163
        %v3282 = vpop.f32.mrf.mxu0
        %v3283 = vadd.f32 %v3120, %v3282
        %3284 = vdwg.mxu0
        %3285 = vmatpush.msra.mxu0 0.0
        %3286 = vmatpush.msra.mxu0 0.0
        %3287 = vmatpush.msra.mxu0 0.0
        %3288 = vmatpush.msra.mxu0 0.0
        %3289 = vmatpush.msra.mxu0 0.0
        %3290 = vmatpush.msra.mxu0 0.0
        %3291 = vmatpush.msra.mxu0 0.0
        %3292 = vmatpush.msra.mxu0 0.0
        %3293 = vmatpush.msra.mxu0 0.0
        %3294 = vmatpush.msra.mxu0 0.0
        %3295 = vmatpush.msra.mxu0 0.0
        %3296 = vmatpush.msra.mxu0 0.0
        %3297 = vmatpush.msra.mxu0 %v2964
        %3298 = vmatpush.msra.mxu0 %v2956
        %3299 = vmatpush.msra.mxu0 %v2948
        %3300 = vmatpush.msra.mxu0 %v2940
        %3301 = vmatmul.f32.gmra.mxu0 %v3163
        %v3302 = vpop.f32.mrf.mxu0
        %v3303 = vadd.f32 %v3140, %v3302
        %3304 = vdwg.mxu0
        %3305 = vmatpush.msra.mxu0 0.0
        %3306 = vmatpush.msra.mxu0 0.0
        %3307 = vmatpush.msra.mxu0 0.0
        %3308 = vmatpush.msra.mxu0 0.0
        %3309 = vmatpush.msra.mxu0 0.0
        %3310 = vmatpush.msra.mxu0 0.0
        %3311 = vmatpush.msra.mxu0 0.0
        %3312 = vmatpush.msra.mxu0 0.0
        %3313 = vmatpush.msra.mxu0 0.0
        %3314 = vmatpush.msra.mxu0 0.0
        %3315 = vmatpush.msra.mxu0 0.0
        %3316 = vmatpush.msra.mxu0 0.0
        %3317 = vmatpush.msra.mxu0 %v2965
        %3318 = vmatpush.msra.mxu0 %v2957
        %3319 = vmatpush.msra.mxu0 %v2949
        %3320 = vmatpush.msra.mxu0 %v2941
        %3321 = vmatmul.f32.gmra.mxu0 %v3163
        %v3322 = vpop.f32.mrf.mxu0
        %v3323 = vadd.f32 %v3160, %v3322
        %3324 = vdwg.mxu0
        %v3325 = vld [vmem:[%s2 + $0x80] sm:$0xff]
        %3327 = vset.pattern.permute.xlu0 0
        %3328 = vperm.xlu0 %3327, %v3325
        %v3329 = vpop.permute.xlu0 %3328
        %v3331 = vadd.f32 %v3183, %v3329
        %v3332 = vadd.f32 %v3203, %v3329
        %v3333 = vadd.f32 %v3223, %v3329
        %v3334 = vadd.f32 %v3243, %v3329
        %v3335 = vadd.f32 %v3263, %v3329
        %v3336 = vadd.f32 %v3283, %v3329
        %v3337 = vadd.f32 %v3303, %v3329
        %v3338 = vadd.f32 %v3323, %v3329
        %v3347 = vrot.slane %v3332, 4
        %v3348 = vrot.slane %v3334, 4
        %v3349 = vrot.slane %v3336, 4
        %v3350 = vrot.slane %v3338, 4
        %vm3351 = vcmask 1043456
        %v3352 = vsel %vm3351, %v3331, %v3347
        %v3353 = vsel %vm3351, %v3333, %v3348
        %v3354 = vsel %vm3351, %v3335, %v3349
        %v3355 = vsel %vm3351, %v3337, %v3350
        %3360 = vst [vmem:[%s164] sm:$0xff] %v3352
        %3361 = vst [vmem:[%s164 + $0x8] sm:$0xff] %v3353
        %3362 = vst [vmem:[%s164 + $0x10] sm:$0xff] %v3354
        %3363 = vst [vmem:[%s164 + $0x18] sm:$0xff] %v3355
        %s3364 = sand.u32 %s93, 1
        %s3365 = scalar_lea.sflag [#allocation3], %s3364
        %s3366 = sand.u32 %s93, 1
        %s3367 = smul.addr %s3366, 32
        %s3368 = scalar_lea.vmem [#allocation2], %s3367
        // Predicated region
        $region33: #{tpu_custom_call.1} parent=31 // pred_check
          %p3369 = pneg %p103
        $region34: #{tpu_custom_call.1} parent=31 // pred_check_branch
          %3371 = sbr.rel (%p3369) target = $region36
        $region35: #{tpu_custom_call.1} parent=31 // pred_region
          %s3372 = smul.u32 8, %s17
          %3374 = vsyncadd %s3365, 0
          %s3375 = smul.addr %s3372, 4
          %s3376 = scalar_lea.hbm %s3, %s3375
          %s3378 = sshll.u32 %s3368, 4
          %s3379 = int_to_ptr.vmem [resolvable:$true] %s3378
          %s3380 = sshll.u32 %s3376, 4
          %s3381 = int_to_ptr.hbm [resolvable:$true] %s3380
          %3383 = dma.vmem_to_hbm [thread:$0]  %s3379, 512, %s3381, %s3365
        $region36: #{tpu_custom_call.1} parent=31 // pred_fallthru
          _
      $region32: #{tpu_custom_call.1} parent=5 // pred_fallthru
        _
      %p3384 = scmp.le.s32.totalorder 2, %s12
      // Predicated region
      $region37: #{tpu_custom_call.1} parent=5 // pred_check
        %p3385 = pneg %p3384
      $region38: #{tpu_custom_call.1} parent=5 // pred_check_branch
        %3387 = sbr.rel (%p3385) target = $region40
      $region39: #{tpu_custom_call.1} parent=5 // pred_region
        %s3388 = ssub.s32 %s12, 2
        // Predicated region
        $region41: #{tpu_custom_call.1} parent=39 // pred_check
          %p3389 = pneg %p109
        $region42: #{tpu_custom_call.1} parent=39 // pred_check_branch
          %3391 = sbr.rel (%p3389) target = $region44
        $region43: #{tpu_custom_call.1} parent=39 // pred_region
          %s3392 = sand.u32 %s94, 1
          %s3393 = scalar_lea.sflag [#allocation3], %s3392
          %s3394 = sand.u32 %s94, 1
          %s3395 = smul.addr %s3394, 32
          %s3396 = scalar_lea.vmem [#allocation2], %s3395
          %3398 = dma.done %s3393, 512
        $region44: #{tpu_custom_call.1} parent=39 // pred_fallthru
          _
      $region40: #{tpu_custom_call.1} parent=5 // pred_fallthru
        _
    $region6: #{tpu_custom_call.1} parent=1 // loop_footer
      %s16 = sadd.s32 1, %s12
    $region7: #{tpu_custom_call.1} parent=1 // loop_footer_branch
      %11 = sbr.rel target = $region3
    $region8: #{tpu_custom_call.1} parent=1 // loop_exit
      _
    %3399 = vsyncpa [#allocation3], 1
    %s3400 = scalar_lea.sflag [#allocation3], 1
    %3401 = vsyncpa %s3400, 1

</llo_original>
